<compile_context>
chip_gen: v7x
topology: tpu7x:2x2x1
jax: 0.10.0
libtpu: 0.0.40
codegen_flags: <defaults>
</compile_context>

<pallas_src>
import math

import jax
import jax.numpy as jnp
from jax.experimental import pallas as pl
from jax.experimental.pallas import tpu as pltpu


K_COLL = 618 * 2         # 1236 raw collision features (streamed unpadded)
SMALL_IN = 8             # [x0, xg, y0, yg, th0, thg, 0, 0]
SMALL_OUT = 24           # 3 branches * 8 features
HID = 64


# ----------------------------------------------------------------------------
# Pallas kernel: fused MLP forward for one (TB, ...) batch tile
# ----------------------------------------------------------------------------
def _dense_reach_kernel(
    small_ref, coll_ref,
    ws_ref, bs_ref,                 # fused x/y/th branch (8, 24) block-diag + (1, 24)
    wc1_ref, bc1_ref,               # collision layer 1 (1236, 64) + (1, 64)
    wc2_ref, bc2_ref,               # collision layer 2 (64, 64) + (1, 64)
    wo1s_ref, wo1c_ref, bo1_ref,    # head layer 1 split: (24, 64), (64, 64), (1, 64)
    wo2t_ref, bo2_ref,              # head layer 2 transposed (1, 64) + (1, 1)
    out_ref,                        # (1, 1, tb) lane-dense sigmoid output
):
    relu = lambda v: jnp.maximum(v, 0.0)

    # Fused x/y/th branches: single (TB, 8) @ (8, 24) matmul (block-diag weight).
    qf = relu(jnp.dot(small_ref[...], ws_ref[...],
                      preferred_element_type=jnp.float32) + bs_ref[...])

    # Collision branch.  Raw f32 tile cast to the weight dtype (bf16 by default)
    # here, in-kernel, so the cast is VPU work hidden under the collision DMA;
    # accumulation and all post-matmul elementwise math stay f32.
    coll = coll_ref[...].astype(wc1_ref.dtype)
    c1 = relu(jnp.dot(coll, wc1_ref[...],
                      preferred_element_type=jnp.float32) + bc1_ref[...])
    c2 = relu(jnp.dot(c1.astype(wc2_ref.dtype), wc2_ref[...],
                      preferred_element_type=jnp.float32) + bc2_ref[...])

    # Output head layer 1: concat([qf, c2]) @ Wo1 expressed as a sum of two matmuls.
    h = relu(jnp.dot(qf, wo1s_ref[...], preferred_element_type=jnp.float32)
             + jnp.dot(c2, wo1c_ref[...], preferred_element_type=jnp.float32)
             + bo1_ref[...])

    # Output head layer 2, computed transposed so the result is lane-dense:
    # (1, 64) contracted with (TB, 64) over the 64-axis -> (1, TB).
    logits_t = jax.lax.dot_general(
        wo2t_ref[...], h,
        dimension_numbers=(((1,), (1,)), ((), ())),
        preferred_element_type=jnp.float32) + bo2_ref[...]

    out_ref[0] = jax.nn.sigmoid(logits_t).astype(out_ref.dtype)


# ----------------------------------------------------------------------------
# Parameter construction (deterministic, PyTorch-Linear-style uniform init)
# ----------------------------------------------------------------------------
def _linear_params(key, fan_in, fan_out):
    kw, kb = jax.random.split(key)
    bound = 1.0 / math.sqrt(fan_in)
    w = jax.random.uniform(kw, (fan_in, fan_out), jnp.float32, -bound, bound)
    b = jax.random.uniform(kb, (1, fan_out), jnp.float32, -bound, bound)
    return w, b


def init_params(seed=0):
    keys = jax.random.split(jax.random.PRNGKey(seed), 8)
    p = {}
    p["wx"], p["bx"] = _linear_params(keys[0], 2, 8)
    p["wy"], p["by"] = _linear_params(keys[1], 2, 8)
    p["wth"], p["bth"] = _linear_params(keys[2], 2, 8)
    p["wc1"], p["bc1"] = _linear_params(keys[3], K_COLL, HID)
    p["wc2"], p["bc2"] = _linear_params(keys[4], HID, HID)
    p["wo1"], p["bo1"] = _linear_params(keys[5], HID + SMALL_OUT, HID)
    p["wo2"], p["bo2"] = _linear_params(keys[6], HID, 1)
    return p


def _round_up(x, m):
    return ((x + m - 1) // m) * m


# ----------------------------------------------------------------------------
# Wrapper: layout glue in plain JAX, hot path in the gridded Pallas kernel
# ----------------------------------------------------------------------------
def dense_reachability_forward(q0s, qgs, collisions, params,
                               *, batch_tile=2048, use_bf16=True):
    n = q0s.shape[0]
    f32 = jnp.float32

    # Reproduce torch.cat((a, b), 0).reshape((n, 2)) exactly (row-major reshape).
    xc = jnp.concatenate([q0s[:, 0], qgs[:, 0]], axis=0).reshape(n, 2)
    yc = jnp.concatenate([q0s[:, 1], qgs[:, 1]], axis=0).reshape(n, 2)
    thc = jnp.concatenate([q0s[:, -1], qgs[:, -1]], axis=0).reshape(n, 2)

    # Fused small-branch input: [x0, xg, y0, yg, th0, thg, 0, 0]  -> (n, 8), f32.
    small = jnp.concatenate(
        [xc, yc, thc, jnp.zeros((n, 2), f32)], axis=-1).astype(f32)

    # nn.Flatten(): (n, 618, 2) -> (n, 1236).  Free row-major reshape — the big
    # collision stream is read from HBM exactly as stored (no pad, no cast pass).
    coll = collisions.reshape(n, K_COLL).astype(f32)

    # ---- batch tiling ------------------------------------------------------
    tb = min(_round_up(batch_tile, 256), _round_up(n, 256))
    num_tiles = pl.cdiv(n, tb)
    if num_tiles < 2 and n > 256:
        # Prefer >= 2 grid steps so the batch axis can shard across both v7x
        # TensorCores (no-op on single-core v5e/v6e).
        tb = _round_up(-(-n // 2), 256)
        num_tiles = pl.cdiv(n, tb)
    padded_n = num_tiles * tb
    if padded_n != n:
        # Tail padding only; pass n as a multiple of the batch tile for the
        # fully zero-copy path.
        small = jnp.pad(small, ((0, padded_n - n), (0, 0)))
        coll = jnp.pad(coll, ((0, padded_n - n), (0, 0)))

    compute_dtype = jnp.bfloat16 if use_bf16 else f32

    # ---- weight packing ----------------------------------------------------
    # Block-diagonal (8, 24) weight for the fused x/y/th branches.
    w_small = jnp.zeros((SMALL_IN, SMALL_OUT), f32)
    w_small = w_small.at[0:2, 0:8].set(params["wx"])
    w_small = w_small.at[2:4, 8:16].set(params["wy"])
    w_small = w_small.at[4:6, 16:24].set(params["wth"])
    b_small = jnp.concatenate([params["bx"], params["by"], params["bth"]],
                              axis=-1)                                  # (1, 24)

    wc1 = params["wc1"].astype(compute_dtype)                           # (1236, 64)
    wc2 = params["wc2"].astype(compute_dtype)                           # (64, 64)
    wo1s = params["wo1"][:SMALL_OUT]                                    # (24, 64)
    wo1c = params["wo1"][SMALL_OUT:]                                    # (64, 64)
    wo2t = params["wo2"].T                                              # (1, 64)

    args = [
        small, coll,
        w_small, b_small,
        wc1, params["bc1"],
        wc2, params["bc2"],
        wo1s, wo1c, params["bo1"],
        wo2t, params["bo2"],
    ]

    def resident(a):
        # Whole array, same block every grid step -> stays resident in VMEM.
        return pl.BlockSpec(a.shape, lambda i: (0,) * a.ndim)

    in_specs = [
        pl.BlockSpec((tb, SMALL_IN), lambda i: (i, 0)),   # small branch (f32)
        pl.BlockSpec((tb, K_COLL), lambda i: (i, 0)),     # collisions (streamed f32)
    ] + [resident(a) for a in args[2:]]

    # Lane-dense output: (num_tiles, 1, tb) blocks, batch on the lane axis.
    out_specs = pl.BlockSpec((1, 1, tb), lambda i: (i, 0, 0))

    flops = 2 * padded_n * (K_COLL * HID + HID * HID + SMALL_IN * SMALL_OUT
                            + SMALL_OUT * HID + HID * HID + HID)
    bytes_accessed = sum(a.size * a.dtype.itemsize for a in args) + padded_n * 4

    # Explicit scoped-VMEM budget: double-buffered collision/small tiles plus
    # the in-kernel casted copy and headroom; floored at 32 MiB, capped below
    # v7x's 64 MiB/TC physical VMEM.
    cast_itemsize = 2 if use_bf16 else 4
    vmem_limit = int(min(
        56 << 20,
        max(32 << 20,
            2 * tb * 1280 * 4
            + 2 * tb * 128 * 4
            + tb * 1280 * cast_itemsize
            + (12 << 20))))

    out = pl.pallas_call(
        _dense_reach_kernel,
        out_shape=jax.ShapeDtypeStruct((num_tiles, 1, tb), f32),
        grid=(num_tiles,),
        in_specs=in_specs,
        out_specs=out_specs,
        compiler_params=pltpu.CompilerParams(
            dimension_semantics=("parallel",),
            vmem_limit_bytes=vmem_limit),
        cost_estimate=pl.CostEstimate(
            flops=flops,
            transcendentals=padded_n,
            bytes_accessed=bytes_accessed),
    )(*args)

    # (num_tiles, 1, tb) -> (padded_n, 1) -> (n, 1)
    return out.reshape(padded_n, 1)[:n]


# ----------------------------------------------------------------------------
# Pure-JAX reference (for correctness check)
# ----------------------------------------------------------------------------
def reference_forward(q0s, qgs, collisions, params):
    n = q0s.shape[0]
    relu = lambda v: jnp.maximum(v, 0.0)
    xc = jnp.concatenate([q0s[:, 0], qgs[:, 0]], axis=0).reshape(n, 2)
    yc = jnp.concatenate([q0s[:, 1], qgs[:, 1]], axis=0).reshape(n, 2)
    thc = jnp.concatenate([q0s[:, -1], qgs[:, -1]], axis=0).reshape(n, 2)
    xf = relu(xc @ params["wx"] + params["bx"])
    yf = relu(yc @ params["wy"] + params["by"])
    thf = relu(thc @ params["wth"] + params["bth"])
    qf = jnp.concatenate([xf, yf, thf], axis=-1)
    coll = collisions.reshape(n, -1)
    c1 = relu(coll @ params["wc1"] + params["bc1"])
    c2 = relu(c1 @ params["wc2"] + params["bc2"])
    everything = jnp.concatenate([qf, c2], axis=-1)
    h = relu(everything @ params["wo1"] + params["bo1"])
    return jax.nn.sigmoid(h @ params["wo2"] + params["bo2"])


if __name__ == "__main__":
    key = jax.random.PRNGKey(0)
    params = init_params(seed=0)

    # --- small smoke test (single grid step) --------------------------------
    k1, k2, k3 = jax.random.split(key, 3)
    N = 8
    q0s = jax.random.normal(k1, (N, 3), jnp.float32)
    qgs = jax.random.normal(k2, (N, 3), jnp.float32)
    collisions = jax.random.normal(k3, (N, 618, 2), jnp.float32)

    ref = reference_forward(q0s, qgs, collisions, params)

    # f32 path: tight check vs reference.
    out_f32 = dense_reachability_forward(q0s, qgs, collisions, params,
                                         use_bf16=False)
    out_f32 = jax.block_until_ready(out_f32)
    assert out_f32.shape == (N, 1)
    assert jnp.allclose(out_f32, ref, atol=1e-4, rtol=1e-4)

    # bf16 collision path (default): looser tolerance (numerics change only on
    # the bandwidth-dominant collision matmuls; accumulation stays f32 and the
    # x/y/th branch stays f32).
    out_bf16 = dense_reachability_forward(q0s, qgs, collisions, params)
    out_bf16 = jax.block_until_ready(out_bf16)
    assert jnp.allclose(out_bf16, ref, atol=2e-2, rtol=2e-2)

    # --- multi-tile test (exercises the batch grid + tail padding) ----------
    k4, k5, k6 = jax.random.split(jax.random.PRNGKey(1), 3)
    N2 = 300
    q0s2 = jax.random.normal(k4, (N2, 3), jnp.float32)
    qgs2 = jax.random.normal(k5, (N2, 3), jnp.float32)
    coll2 = jax.random.normal(k6, (N2, 618, 2), jnp.float32)

    ref2 = reference_forward(q0s2, qgs2, coll2, params)
    out2 = dense_reachability_forward(q0s2, qgs2, coll2, params,
                                      batch_tile=128)   # -> 2 grid steps
    out2 = jax.block_until_ready(out2)
    assert out2.shape == (N2, 1)
    assert jnp.allclose(out2, ref2, atol=2e-2, rtol=2e-2)

    print("KERNEL_OK")
</pallas_src>

<mosaic_0001>
module attributes {stable_mosaic.version = 11 : i64} {
  func.func @_dense_reach_kernel(%arg0: i32, %arg1: memref<256x8xf32, #tpu.memory_space<vmem>>, %arg2: memref<256x1236xf32, #tpu.memory_space<vmem>>, %arg3: memref<8x24xf32, #tpu.memory_space<vmem>>, %arg4: memref<1x24xf32, #tpu.memory_space<vmem>>, %arg5: memref<1236x64xf32, #tpu.memory_space<vmem>>, %arg6: memref<1x64xf32, #tpu.memory_space<vmem>>, %arg7: memref<64x64xf32, #tpu.memory_space<vmem>>, %arg8: memref<1x64xf32, #tpu.memory_space<vmem>>, %arg9: memref<24x64xf32, #tpu.memory_space<vmem>>, %arg10: memref<64x64xf32, #tpu.memory_space<vmem>>, %arg11: memref<1x64xf32, #tpu.memory_space<vmem>>, %arg12: memref<1x64xf32, #tpu.memory_space<vmem>>, %arg13: memref<1x1xf32, #tpu.memory_space<vmem>>, %arg14: memref<1x1x256xf32, #tpu.memory_space<vmem>>) attributes {dimension_semantics = [#tpu.dimension_semantics<parallel>], iteration_bounds = array<i64: 1>, scalar_prefetch = 0 : i64, scratch_operands = 0 : i64, tpu.core_type = #tpu.core_type<tc>, window_params = [{transform_indices = @transform_0, window_bounds = array<i64: 256, 8>}, {transform_indices = @transform_1, window_bounds = array<i64: 256, 1236>}, {pipeline_mode = #tpu.pipeline_mode<synchronous>, transform_indices = @transform_2, window_bounds = array<i64: 8, 24>}, {pipeline_mode = #tpu.pipeline_mode<synchronous>, transform_indices = @transform_3, window_bounds = array<i64: 1, 24>}, {pipeline_mode = #tpu.pipeline_mode<synchronous>, transform_indices = @transform_4, window_bounds = array<i64: 1236, 64>}, {pipeline_mode = #tpu.pipeline_mode<synchronous>, transform_indices = @transform_5, window_bounds = array<i64: 1, 64>}, {pipeline_mode = #tpu.pipeline_mode<synchronous>, transform_indices = @transform_6, window_bounds = array<i64: 64, 64>}, {pipeline_mode = #tpu.pipeline_mode<synchronous>, transform_indices = @transform_7, window_bounds = array<i64: 1, 64>}, {pipeline_mode = #tpu.pipeline_mode<synchronous>, transform_indices = @transform_8, window_bounds = array<i64: 24, 64>}, {pipeline_mode = #tpu.pipeline_mode<synchronous>, transform_indices = @transform_9, window_bounds = array<i64: 64, 64>}, {pipeline_mode = #tpu.pipeline_mode<synchronous>, transform_indices = @transform_10, window_bounds = array<i64: 1, 64>}, {pipeline_mode = #tpu.pipeline_mode<synchronous>, transform_indices = @transform_11, window_bounds = array<i64: 1, 64>}, {pipeline_mode = #tpu.pipeline_mode<synchronous>, transform_indices = @transform_12, window_bounds = array<i64: 1, 1>}, {transform_indices = @transform_13, window_bounds = array<i64: 1, 1, 256>}]} {
    %c0 = arith.constant 0 : index
    %c0_0 = arith.constant 0 : index
    %0 = vector.load %arg1[%c0, %c0_0] : memref<256x8xf32, #tpu.memory_space<vmem>>, vector<256x8xf32>
    %c0_1 = arith.constant 0 : index
    %c0_2 = arith.constant 0 : index
    %1 = vector.load %arg3[%c0_1, %c0_2] : memref<8x24xf32, #tpu.memory_space<vmem>>, vector<8x24xf32>
    %cst = arith.constant dense<0.000000e+00> : vector<256x24xf32>
    %2 = tpu.matmul %0, %1, %cst {dimension_numbers = #tpu.dot_dimension_numbers<[1], [0], [0], [1], [0, 0, 1, 1], [], []>} : vector<256x8xf32>, vector<8x24xf32>, vector<256x24xf32> -> vector<256x24xf32>
    %c0_3 = arith.constant 0 : index
    %c0_4 = arith.constant 0 : index
    %3 = vector.load %arg4[%c0_3, %c0_4] : memref<1x24xf32, #tpu.memory_space<vmem>>, vector<1x24xf32>
    %4 = vector.broadcast %3 : vector<1x24xf32> to vector<256x24xf32>
    %5 = arith.addf %2, %4 : vector<256x24xf32>
    %cst_5 = arith.constant 0.000000e+00 : f32
    %6 = vector.broadcast %cst_5 : f32 to vector<256x24xf32>
    %7 = arith.maximumf %5, %6 : vector<256x24xf32>
    %c0_6 = arith.constant 0 : index
    %c0_7 = arith.constant 0 : index
    %8 = vector.load %arg2[%c0_6, %c0_7] : memref<256x1236xf32, #tpu.memory_space<vmem>>, vector<256x1236xf32>
    %c0_8 = arith.constant 0 : index
    %c0_9 = arith.constant 0 : index
    %9 = vector.load %arg5[%c0_8, %c0_9] : memref<1236x64xf32, #tpu.memory_space<vmem>>, vector<1236x64xf32>
    %cst_10 = arith.constant dense<0.000000e+00> : vector<256x64xf32>
    %10 = tpu.matmul %8, %9, %cst_10 {dimension_numbers = #tpu.dot_dimension_numbers<[1], [0], [0], [1], [0, 0, 1, 1], [], []>} : vector<256x1236xf32>, vector<1236x64xf32>, vector<256x64xf32> -> vector<256x64xf32>
    %c0_11 = arith.constant 0 : index
    %c0_12 = arith.constant 0 : index
    %11 = vector.load %arg6[%c0_11, %c0_12] : memref<1x64xf32, #tpu.memory_space<vmem>>, vector<1x64xf32>
    %12 = vector.broadcast %11 : vector<1x64xf32> to vector<256x64xf32>
    %13 = arith.addf %10, %12 : vector<256x64xf32>
    %cst_13 = arith.constant 0.000000e+00 : f32
    %14 = vector.broadcast %cst_13 : f32 to vector<256x64xf32>
    %15 = arith.maximumf %13, %14 : vector<256x64xf32>
    %c0_14 = arith.constant 0 : index
    %c0_15 = arith.constant 0 : index
    %16 = vector.load %arg7[%c0_14, %c0_15] : memref<64x64xf32, #tpu.memory_space<vmem>>, vector<64x64xf32>
    %cst_16 = arith.constant dense<0.000000e+00> : vector<256x64xf32>
    %17 = tpu.matmul %15, %16, %cst_16 {dimension_numbers = #tpu.dot_dimension_numbers<[1], [0], [0], [1], [0, 0, 1, 1], [], []>} : vector<256x64xf32>, vector<64x64xf32>, vector<256x64xf32> -> vector<256x64xf32>
    %c0_17 = arith.constant 0 : index
    %c0_18 = arith.constant 0 : index
    %18 = vector.load %arg8[%c0_17, %c0_18] : memref<1x64xf32, #tpu.memory_space<vmem>>, vector<1x64xf32>
    %19 = vector.broadcast %18 : vector<1x64xf32> to vector<256x64xf32>
    %20 = arith.addf %17, %19 : vector<256x64xf32>
    %cst_19 = arith.constant 0.000000e+00 : f32
    %21 = vector.broadcast %cst_19 : f32 to vector<256x64xf32>
    %22 = arith.maximumf %20, %21 : vector<256x64xf32>
    %c0_20 = arith.constant 0 : index
    %c0_21 = arith.constant 0 : index
    %23 = vector.load %arg9[%c0_20, %c0_21] : memref<24x64xf32, #tpu.memory_space<vmem>>, vector<24x64xf32>
    %cst_22 = arith.constant dense<0.000000e+00> : vector<256x64xf32>
    %24 = tpu.matmul %7, %23, %cst_22 {dimension_numbers = #tpu.dot_dimension_numbers<[1], [0], [0], [1], [0, 0, 1, 1], [], []>} : vector<256x24xf32>, vector<24x64xf32>, vector<256x64xf32> -> vector<256x64xf32>
    %c0_23 = arith.constant 0 : index
    %c0_24 = arith.constant 0 : index
    %25 = vector.load %arg10[%c0_23, %c0_24] : memref<64x64xf32, #tpu.memory_space<vmem>>, vector<64x64xf32>
    %cst_25 = arith.constant dense<0.000000e+00> : vector<256x64xf32>
    %26 = tpu.matmul %22, %25, %cst_25 {dimension_numbers = #tpu.dot_dimension_numbers<[1], [0], [0], [1], [0, 0, 1, 1], [], []>} : vector<256x64xf32>, vector<64x64xf32>, vector<256x64xf32> -> vector<256x64xf32>
    %27 = arith.addf %24, %26 : vector<256x64xf32>
    %c0_26 = arith.constant 0 : index
    %c0_27 = arith.constant 0 : index
    %28 = vector.load %arg11[%c0_26, %c0_27] : memref<1x64xf32, #tpu.memory_space<vmem>>, vector<1x64xf32>
    %29 = vector.broadcast %28 : vector<1x64xf32> to vector<256x64xf32>
    %30 = arith.addf %27, %29 : vector<256x64xf32>
    %cst_28 = arith.constant 0.000000e+00 : f32
    %31 = vector.broadcast %cst_28 : f32 to vector<256x64xf32>
    %32 = arith.maximumf %30, %31 : vector<256x64xf32>
    %c0_29 = arith.constant 0 : index
    %c0_30 = arith.constant 0 : index
    %33 = vector.load %arg12[%c0_29, %c0_30] : memref<1x64xf32, #tpu.memory_space<vmem>>, vector<1x64xf32>
    %cst_31 = arith.constant dense<0.000000e+00> : vector<1x256xf32>
    %34 = tpu.matmul %33, %32, %cst_31 {dimension_numbers = #tpu.dot_dimension_numbers<[1], [1], [0], [0], [0, 0, 1, 0], [], []>} : vector<1x64xf32>, vector<256x64xf32>, vector<1x256xf32> -> vector<1x256xf32>
    %c0_32 = arith.constant 0 : index
    %c0_33 = arith.constant 0 : index
    %35 = vector.load %arg13[%c0_32, %c0_33] : memref<1x1xf32, #tpu.memory_space<vmem>>, vector<1x1xf32>
    %36 = vector.broadcast %35 : vector<1x1xf32> to vector<1x256xf32>
    %37 = arith.addf %34, %36 : vector<1x256xf32>
    %38 = arith.negf %37 : vector<1x256xf32>
    %39 = math.exp %38 : vector<1x256xf32>
    %cst_34 = arith.constant 1.000000e+00 : f32
    %40 = vector.broadcast %cst_34 : f32 to vector<1x256xf32>
    %41 = arith.addf %40, %39 : vector<1x256xf32>
    %42 = arith.divf %40, %41 : vector<1x256xf32>
    %c0_35 = arith.constant 0 : index
    %c0_36 = arith.constant 0 : index
    %c0_37 = arith.constant 0 : index
    %43 = vector.load %arg14[%c0_35, %c0_36, %c0_37] : memref<1x1x256xf32, #tpu.memory_space<vmem>>, vector<1x1x256xf32>
    %44 = vector.shape_cast %43 : vector<1x1x256xf32> to vector<1x256xf32>
    %45 = vector.shape_cast %42 : vector<1x256xf32> to vector<1x1x256xf32>
    tpu.vector_store %arg14[%c0_35, %c0_36, %c0_37], %45 {strides = array<i32>} : memref<1x1x256xf32, #tpu.memory_space<vmem>>, vector<1x1x256xf32>,
    return
  }
  func.func @transform_0(%arg0: i32) -> (i32, i32) {
    %c0_i32 = arith.constant 0 : i32
    %c0_i32_0 = arith.constant 0 : i32
    return %arg0, %c0_i32 : i32, i32
  }
  func.func @transform_1(%arg0: i32) -> (i32, i32) {
    %c0_i32 = arith.constant 0 : i32
    %c0_i32_0 = arith.constant 0 : i32
    return %arg0, %c0_i32 : i32, i32
  }
  func.func @transform_2(%arg0: i32) -> (i32, i32) {
    %c0_i32 = arith.constant 0 : i32
    %c0_i32_0 = arith.constant 0 : i32
    %c0_i32_1 = arith.constant 0 : i32
    return %c0_i32, %c0_i32_0 : i32, i32
  }
  func.func @transform_3(%arg0: i32) -> (i32, i32) {
    %c0_i32 = arith.constant 0 : i32
    %c0_i32_0 = arith.constant 0 : i32
    %c0_i32_1 = arith.constant 0 : i32
    return %c0_i32, %c0_i32_0 : i32, i32
  }
  func.func @transform_4(%arg0: i32) -> (i32, i32) {
    %c0_i32 = arith.constant 0 : i32
    %c0_i32_0 = arith.constant 0 : i32
    %c0_i32_1 = arith.constant 0 : i32
    return %c0_i32, %c0_i32_0 : i32, i32
  }
  func.func @transform_5(%arg0: i32) -> (i32, i32) {
    %c0_i32 = arith.constant 0 : i32
    %c0_i32_0 = arith.constant 0 : i32
    %c0_i32_1 = arith.constant 0 : i32
    return %c0_i32, %c0_i32_0 : i32, i32
  }
  func.func @transform_6(%arg0: i32) -> (i32, i32) {
    %c0_i32 = arith.constant 0 : i32
    %c0_i32_0 = arith.constant 0 : i32
    %c0_i32_1 = arith.constant 0 : i32
    return %c0_i32, %c0_i32_0 : i32, i32
  }
  func.func @transform_7(%arg0: i32) -> (i32, i32) {
    %c0_i32 = arith.constant 0 : i32
    %c0_i32_0 = arith.constant 0 : i32
    %c0_i32_1 = arith.constant 0 : i32
    return %c0_i32, %c0_i32_0 : i32, i32
  }
  func.func @transform_8(%arg0: i32) -> (i32, i32) {
    %c0_i32 = arith.constant 0 : i32
    %c0_i32_0 = arith.constant 0 : i32
    %c0_i32_1 = arith.constant 0 : i32
    return %c0_i32, %c0_i32_0 : i32, i32
  }
  func.func @transform_9(%arg0: i32) -> (i32, i32) {
    %c0_i32 = arith.constant 0 : i32
    %c0_i32_0 = arith.constant 0 : i32
    %c0_i32_1 = arith.constant 0 : i32
    return %c0_i32, %c0_i32_0 : i32, i32
  }
  func.func @transform_10(%arg0: i32) -> (i32, i32) {
    %c0_i32 = arith.constant 0 : i32
    %c0_i32_0 = arith.constant 0 : i32
    %c0_i32_1 = arith.constant 0 : i32
    return %c0_i32, %c0_i32_0 : i32, i32
  }
  func.func @transform_11(%arg0: i32) -> (i32, i32) {
    %c0_i32 = arith.constant 0 : i32
    %c0_i32_0 = arith.constant 0 : i32
    %c0_i32_1 = arith.constant 0 : i32
    return %c0_i32, %c0_i32_0 : i32, i32
  }
  func.func @transform_12(%arg0: i32) -> (i32, i32) {
    %c0_i32 = arith.constant 0 : i32
    %c0_i32_0 = arith.constant 0 : i32
    %c0_i32_1 = arith.constant 0 : i32
    return %c0_i32, %c0_i32_0 : i32, i32
  }
  func.func @transform_13(%arg0: i32) -> (i32, i32, i32) {
    %c0_i32 = arith.constant 0 : i32
    %c0_i32_0 = arith.constant 0 : i32
    %c0_i32_1 = arith.constant 0 : i32
    return %arg0, %c0_i32, %c0_i32_0 : i32, i32, i32
  }
}

</mosaic_0001>

<llo_original>
// kernel: tpu_custom_call.1
$region0: #{tpu_custom_call.1}
  #allocation0 [shape = 'u32[]', space=smem, size = 0x4, offset = 0x4, fixed_abs, tag = 'smem constant byte address 0x4 - core index']
  #allocation1 [shape = 'u32[144,128]{1,0:T(1,128)}', space=vmem, size = 0x12000, scoped, tag = 'internal scratch']
  #allocation2 [shape = 'f32[1,1]{1,0:T(1,128)S(1)}', space=vmem, size = 0x200, scoped, tag = 'scoped memory for tpu_custom_call.1']
  %s0 = inlined_call_operand.vmem [shape: f32[256,8], index: 0, kind: input, shape index: {}]
  %s1 = inlined_call_operand.vmem [shape: f32[256,1236], index: 1, kind: input, shape index: {}]
  %s2 = inlined_call_operand.vmem [shape: f32[8,24], index: 2, kind: input, shape index: {}]
  %s3 = inlined_call_operand.vmem [shape: f32[1,24], index: 3, kind: input, shape index: {}]
  %s4 = inlined_call_operand.vmem [shape: f32[1236,64], index: 4, kind: input, shape index: {}]
  %s5 = inlined_call_operand.vmem [shape: f32[1,64], index: 5, kind: input, shape index: {}]
  %s6 = inlined_call_operand.vmem [shape: f32[64,64], index: 6, kind: input, shape index: {}]
  %s7 = inlined_call_operand.vmem [shape: f32[1,64], index: 7, kind: input, shape index: {}]
  %s8 = inlined_call_operand.vmem [shape: f32[24,64], index: 8, kind: input, shape index: {}]
  %s9 = inlined_call_operand.vmem [shape: f32[64,64], index: 9, kind: input, shape index: {}]
  %s10 = inlined_call_operand.vmem [shape: f32[1,64], index: 10, kind: input, shape index: {}]
  %s11 = inlined_call_operand.vmem [shape: f32[1,64], index: 11, kind: input, shape index: {}]
  %s12 = inlined_call_operand.<no memory space> [shape: f32[1,1], index: 12, kind: input, shape index: {}]
  %s13 = inlined_call_operand.hbm [shape: f32[1,1,256], index: 13, kind: output, shape index: {}]
  %s14 = sld [smem:[#allocation0]]
  $region62: #{tpu_custom_call.1} parent=0
    _
  %s16 = ssub.s32 1, %s14
  %s17 = scalar_select 0, %s16, %s14
  %v18 = vstv %s12
  %19 = vst [vmem:[#allocation2] sm:$0x1] %v18
  $region1: #{tpu_custom_call.1} parent=0
    #allocation3 [shape = 'u8[1024]{0}', space=vmem, size = 0x400, scoped, tag = 'output window, operand 0, single buffered']
    #allocation4 [shape = 's32[1]{0}', space=sflag, size = 0x4, scoped, tag = 'scoped memory for tpu_custom_call.1']
    %20 = vsyncpa [#allocation4], 0
    // Predicated region
    $region2: #{tpu_custom_call.1} parent=1 // pred_check
      _
    $region3: #{tpu_custom_call.1} parent=1 // pred_check_branch
      %22 = sbr.rel (0) target = $region5
    $region4: #{tpu_custom_call.1} parent=1 // pred_region
      _
    $region5: #{tpu_custom_call.1} parent=1 // pred_fallthru
      _
    // Predicated region
    $region6: #{tpu_custom_call.1} parent=1 // pred_check
      _
    $region7: #{tpu_custom_call.1} parent=1 // pred_check_branch
      %24 = sbr.rel (0) target = $region9
    $region8: #{tpu_custom_call.1} parent=1 // pred_region
      _
    $region9: #{tpu_custom_call.1} parent=1 // pred_fallthru
      _
    // Predicated region
    $region10: #{tpu_custom_call.1} parent=1 // pred_check
      _
    $region11: #{tpu_custom_call.1} parent=1 // pred_check_branch
      %26 = sbr.rel (0) target = $region13
    $region12: #{tpu_custom_call.1} parent=1 // pred_region
      _
    $region13: #{tpu_custom_call.1} parent=1 // pred_fallthru
      _
    // Predicated region
    $region14: #{tpu_custom_call.1} parent=1 // pred_check
      _
    $region15: #{tpu_custom_call.1} parent=1 // pred_check_branch
      %28 = sbr.rel (0) target = $region17
    $region16: #{tpu_custom_call.1} parent=1 // pred_region
      _
    $region17: #{tpu_custom_call.1} parent=1 // pred_fallthru
      _
    // Predicated region
    $region18: #{tpu_custom_call.1} parent=1 // pred_check
      _
    $region19: #{tpu_custom_call.1} parent=1 // pred_check_branch
      %30 = sbr.rel (0) target = $region21
    $region20: #{tpu_custom_call.1} parent=1 // pred_region
      _
    $region21: #{tpu_custom_call.1} parent=1 // pred_fallthru
      _
    // Predicated region
    $region22: #{tpu_custom_call.1} parent=1 // pred_check
      _
    $region23: #{tpu_custom_call.1} parent=1 // pred_check_branch
      %32 = sbr.rel (0) target = $region25
    $region24: #{tpu_custom_call.1} parent=1 // pred_region
      _
    $region25: #{tpu_custom_call.1} parent=1 // pred_fallthru
      _
    // Predicated region
    $region26: #{tpu_custom_call.1} parent=1 // pred_check
      _
    $region27: #{tpu_custom_call.1} parent=1 // pred_check_branch
      %34 = sbr.rel (0) target = $region29
    $region28: #{tpu_custom_call.1} parent=1 // pred_region
      _
    $region29: #{tpu_custom_call.1} parent=1 // pred_fallthru
      _
    // Predicated region
    $region30: #{tpu_custom_call.1} parent=1 // pred_check
      _
    $region31: #{tpu_custom_call.1} parent=1 // pred_check_branch
      %36 = sbr.rel (0) target = $region33
    $region32: #{tpu_custom_call.1} parent=1 // pred_region
      _
    $region33: #{tpu_custom_call.1} parent=1 // pred_fallthru
      _
    // Predicated region
    $region34: #{tpu_custom_call.1} parent=1 // pred_check
      _
    $region35: #{tpu_custom_call.1} parent=1 // pred_check_branch
      %38 = sbr.rel (0) target = $region37
    $region36: #{tpu_custom_call.1} parent=1 // pred_region
      _
    $region37: #{tpu_custom_call.1} parent=1 // pred_fallthru
      _
    // Predicated region
    $region38: #{tpu_custom_call.1} parent=1 // pred_check
      _
    $region39: #{tpu_custom_call.1} parent=1 // pred_check_branch
      %40 = sbr.rel (0) target = $region41
    $region40: #{tpu_custom_call.1} parent=1 // pred_region
      _
    $region41: #{tpu_custom_call.1} parent=1 // pred_fallthru
      _
    // Predicated region
    $region42: #{tpu_custom_call.1} parent=1 // pred_check
      _
    $region43: #{tpu_custom_call.1} parent=1 // pred_check_branch
      %42 = sbr.rel (0) target = $region45
    $region44: #{tpu_custom_call.1} parent=1 // pred_region
      _
    $region45: #{tpu_custom_call.1} parent=1 // pred_fallthru
      _
    // Predicated region
    $region46: #{tpu_custom_call.1} parent=1 // pred_check
      _
    $region47: #{tpu_custom_call.1} parent=1 // pred_check_branch
      %44 = sbr.rel (0) target = $region49
    $region48: #{tpu_custom_call.1} parent=1 // pred_region
      _
    $region49: #{tpu_custom_call.1} parent=1 // pred_fallthru
      _
    // Predicated region
    $region50: #{tpu_custom_call.1} parent=1 // pred_check
      _
    $region51: #{tpu_custom_call.1} parent=1 // pred_check_branch
      %46 = sbr.rel (0) target = $region53
    $region52: #{tpu_custom_call.1} parent=1 // pred_region
      _
    $region53: #{tpu_custom_call.1} parent=1 // pred_fallthru
      _
    %v47 = vld [vmem:[%s0] sm:$0xff]
    %v48 = vld [vmem:[%s0 + $0x8] sm:$0xff]
    %v49 = vld [vmem:[%s0 + $0x10] sm:$0xff]
    %v50 = vld [vmem:[%s0 + $0x18] sm:$0xff]
    %v51 = vld [vmem:[%s0 + $0x20] sm:$0xff]
    %v52 = vld [vmem:[%s0 + $0x28] sm:$0xff]
    %v53 = vld [vmem:[%s0 + $0x30] sm:$0xff]
    %v54 = vld [vmem:[%s0 + $0x38] sm:$0xff]
    %v55 = vld [vmem:[%s0 + $0x40] sm:$0xff]
    %v56 = vld [vmem:[%s0 + $0x48] sm:$0xff]
    %v57 = vld [vmem:[%s0 + $0x50] sm:$0xff]
    %v58 = vld [vmem:[%s0 + $0x58] sm:$0xff]
    %v59 = vld [vmem:[%s0 + $0x60] sm:$0xff]
    %v60 = vld [vmem:[%s0 + $0x68] sm:$0xff]
    %v61 = vld [vmem:[%s0 + $0x70] sm:$0xff]
    %v62 = vld [vmem:[%s0 + $0x78] sm:$0xff]
    %v63 = vld [vmem:[%s0 + $0x80] sm:$0xff]
    %v64 = vld [vmem:[%s0 + $0x88] sm:$0xff]
    %v65 = vld [vmem:[%s0 + $0x90] sm:$0xff]
    %v66 = vld [vmem:[%s0 + $0x98] sm:$0xff]
    %v67 = vld [vmem:[%s0 + $0xa0] sm:$0xff]
    %v68 = vld [vmem:[%s0 + $0xa8] sm:$0xff]
    %v69 = vld [vmem:[%s0 + $0xb0] sm:$0xff]
    %v70 = vld [vmem:[%s0 + $0xb8] sm:$0xff]
    %v71 = vld [vmem:[%s0 + $0xc0] sm:$0xff]
    %v72 = vld [vmem:[%s0 + $0xc8] sm:$0xff]
    %v73 = vld [vmem:[%s0 + $0xd0] sm:$0xff]
    %v74 = vld [vmem:[%s0 + $0xd8] sm:$0xff]
    %v75 = vld [vmem:[%s0 + $0xe0] sm:$0xff]
    %v76 = vld [vmem:[%s0 + $0xe8] sm:$0xff]
    %v77 = vld [vmem:[%s0 + $0xf0] sm:$0xff]
    %v78 = vld [vmem:[%s0 + $0xf8] sm:$0xff]
    %v79 = vld [vmem:[%s2] sm:$0xff]
    %v80 = vld [vmem:[%s3] sm:$0x1]
    %v82 = vlaneseq
    %v83 = vshrl.u32 %v82, 7
    %v84 = vsub.s32 0, %v83
    %v85 = vrot.slane %v80, %v84
    %vm87 = vcmask 64512
    %v89 = vsel %vm87, %v47, 0
    %v92 = vsel %vm87, %v48, 0
    %v95 = vsel %vm87, %v49, 0
    %v98 = vsel %vm87, %v50, 0
    %v101 = vsel %vm87, %v51, 0
    %v104 = vsel %vm87, %v52, 0
    %v107 = vsel %vm87, %v53, 0
    %v110 = vsel %vm87, %v54, 0
    %v113 = vsel %vm87, %v55, 0
    %v116 = vsel %vm87, %v56, 0
    %v119 = vsel %vm87, %v57, 0
    %v122 = vsel %vm87, %v58, 0
    %v125 = vsel %vm87, %v59, 0
    %v128 = vsel %vm87, %v60, 0
    %v131 = vsel %vm87, %v61, 0
    %v134 = vsel %vm87, %v62, 0
    %v137 = vsel %vm87, %v63, 0
    %v140 = vsel %vm87, %v64, 0
    %v143 = vsel %vm87, %v65, 0
    %v146 = vsel %vm87, %v66, 0
    %v149 = vsel %vm87, %v67, 0
    %v152 = vsel %vm87, %v68, 0
    %v155 = vsel %vm87, %v69, 0
    %v158 = vsel %vm87, %v70, 0
    %v161 = vsel %vm87, %v71, 0
    %v164 = vsel %vm87, %v72, 0
    %v167 = vsel %vm87, %v73, 0
    %v170 = vsel %vm87, %v74, 0
    %v173 = vsel %vm87, %v75, 0
    %v176 = vsel %vm87, %v76, 0
    %v179 = vsel %vm87, %v77, 0
    %v182 = vsel %vm87, %v78, 0
    %184 = vmatprep.subr.mxu0 0.0
    %185 = vmatpush1.msra.mxu0 %v79
    %186 = vmatprep.subr.mxu0 0.0
    %187 = vmatpush1.msra.mxu0 0.0
    %188 = vmatprep.subr.mxu0 0.0
    %189 = vmatpush1.msra.mxu0 0.0
    %190 = vmatprep.subr.mxu0 0.0
    %191 = vmatpush1.msra.mxu0 0.0
    %192 = vmatprep.subr.mxu0 0.0
    %193 = vmatpush1.msra.mxu0 0.0
    %194 = vmatprep.subr.mxu0 0.0
    %195 = vmatpush1.msra.mxu0 0.0
    %196 = vmatprep.subr.mxu0 0.0
    %197 = vmatpush1.msra.mxu0 0.0
    %198 = vmatprep.subr.mxu0 0.0
    %199 = vmatpush1.msra.mxu0 0.0
    %200 = vmatprep.subr.mxu0 0.0
    %201 = vmatpush1.msra.mxu0 0.0
    %202 = vmatprep.subr.mxu0 0.0
    %203 = vmatpush1.msra.mxu0 0.0
    %204 = vmatprep.subr.mxu0 0.0
    %205 = vmatpush1.msra.mxu0 0.0
    %206 = vmatprep.subr.mxu0 0.0
    %207 = vmatpush1.msra.mxu0 0.0
    %208 = vmatprep.subr.mxu0 0.0
    %209 = vmatpush1.msra.mxu0 0.0
    %210 = vmatprep.subr.mxu0 0.0
    %211 = vmatpush1.msra.mxu0 0.0
    %212 = vmatprep.subr.mxu0 0.0
    %213 = vmatpush1.msra.mxu0 0.0
    %214 = vmatprep.subr.mxu0 0.0
    %215 = vmatpush1.msra.mxu0 0.0
    %216 = vmatprep.subr.mxu0 0.0
    %217 = vmatpush1.msra.mxu0 0.0
    %218 = vmatprep.subr.mxu0 0.0
    %219 = vmatpush1.msra.mxu0 0.0
    %220 = vmatprep.subr.mxu0 0.0
    %221 = vmatpush1.msra.mxu0 0.0
    %222 = vmatprep.subr.mxu0 0.0
    %223 = vmatpush1.msra.mxu0 0.0
    %224 = vmatprep.subr.mxu0 0.0
    %225 = vmatpush1.msra.mxu0 0.0
    %226 = vmatprep.subr.mxu0 0.0
    %227 = vmatpush1.msra.mxu0 0.0
    %228 = vmatprep.subr.mxu0 0.0
    %229 = vmatpush1.msra.mxu0 0.0
    %230 = vmatprep.subr.mxu0 0.0
    %231 = vmatpush1.msra.mxu0 0.0
    %232 = vmatprep.subr.mxu0 0.0
    %233 = vmatpush1.msra.mxu0 0.0
    %234 = vmatprep.subr.mxu0 0.0
    %235 = vmatpush1.msra.mxu0 0.0
    %236 = vmatprep.subr.mxu0 0.0
    %237 = vmatpush1.msra.mxu0 0.0
    %238 = vmatprep.subr.mxu0 0.0
    %239 = vmatpush1.msra.mxu0 0.0
    %240 = vmatprep.subr.mxu0 0.0
    %241 = vmatpush1.msra.mxu0 0.0
    %242 = vmatprep.subr.mxu0 0.0
    %243 = vmatpush1.msra.mxu0 0.0
    %244 = vmatprep.subr.mxu0 0.0
    %245 = vmatpush1.msra.mxu0 0.0
    %246 = vmatprep.subr.mxu0 0.0
    %247 = vmatpush1.msra.mxu0 0.0
    %248 = vmatprep.mubr.f32.mxu0 0.0
    %249 = vmatmul.mubr.f32.gmra.mrb[0].mxu0 %v89
    %v250 = vpop.f32.mrb[0].mxu0
    %v251 = vadd.f32 %v85, %v250
    %v252 = vpop.f32.mrb[0].mxu0
    %253 = vmatprep.mubr.f32.mxu0 0.0
    %254 = vmatmul.mubr.f32.gmra.mrb[0].mxu0 %v92
    %v255 = vpop.f32.mrb[0].mxu0
    %v256 = vadd.f32 %v85, %v255
    %v257 = vpop.f32.mrb[0].mxu0
    %258 = vmatprep.mubr.f32.mxu0 0.0
    %259 = vmatmul.mubr.f32.gmra.mrb[0].mxu0 %v95
    %v260 = vpop.f32.mrb[0].mxu0
    %v261 = vadd.f32 %v85, %v260
    %v262 = vpop.f32.mrb[0].mxu0
    %263 = vmatprep.mubr.f32.mxu0 0.0
    %264 = vmatmul.mubr.f32.gmra.mrb[0].mxu0 %v98
    %v265 = vpop.f32.mrb[0].mxu0
    %v266 = vadd.f32 %v85, %v265
    %v267 = vpop.f32.mrb[0].mxu0
    %268 = vmatprep.mubr.f32.mxu0 0.0
    %269 = vmatmul.mubr.f32.gmra.mrb[0].mxu0 %v101
    %v270 = vpop.f32.mrb[0].mxu0
    %v271 = vadd.f32 %v85, %v270
    %v272 = vpop.f32.mrb[0].mxu0
    %273 = vmatprep.mubr.f32.mxu0 0.0
    %274 = vmatmul.mubr.f32.gmra.mrb[0].mxu0 %v104
    %v275 = vpop.f32.mrb[0].mxu0
    %v276 = vadd.f32 %v85, %v275
    %v277 = vpop.f32.mrb[0].mxu0
    %278 = vmatprep.mubr.f32.mxu0 0.0
    %279 = vmatmul.mubr.f32.gmra.mrb[0].mxu0 %v107
    %v280 = vpop.f32.mrb[0].mxu0
    %v281 = vadd.f32 %v85, %v280
    %v282 = vpop.f32.mrb[0].mxu0
    %283 = vmatprep.mubr.f32.mxu0 0.0
    %284 = vmatmul.mubr.f32.gmra.mrb[0].mxu0 %v110
    %v285 = vpop.f32.mrb[0].mxu0
    %v286 = vadd.f32 %v85, %v285
    %v287 = vpop.f32.mrb[0].mxu0
    %288 = vmatprep.mubr.f32.mxu0 0.0
    %289 = vmatmul.mubr.f32.gmra.mrb[0].mxu0 %v113
    %v290 = vpop.f32.mrb[0].mxu0
    %v291 = vadd.f32 %v85, %v290
    %v292 = vpop.f32.mrb[0].mxu0
    %293 = vmatprep.mubr.f32.mxu0 0.0
    %294 = vmatmul.mubr.f32.gmra.mrb[0].mxu0 %v116
    %v295 = vpop.f32.mrb[0].mxu0
    %v296 = vadd.f32 %v85, %v295
    %v297 = vpop.f32.mrb[0].mxu0
    %298 = vmatprep.mubr.f32.mxu0 0.0
    %299 = vmatmul.mubr.f32.gmra.mrb[0].mxu0 %v119
    %v300 = vpop.f32.mrb[0].mxu0
    %v301 = vadd.f32 %v85, %v300
    %v302 = vpop.f32.mrb[0].mxu0
    %303 = vmatprep.mubr.f32.mxu0 0.0
    %304 = vmatmul.mubr.f32.gmra.mrb[0].mxu0 %v122
    %v305 = vpop.f32.mrb[0].mxu0
    %v306 = vadd.f32 %v85, %v305
    %v307 = vpop.f32.mrb[0].mxu0
    %308 = vmatprep.mubr.f32.mxu0 0.0
    %309 = vmatmul.mubr.f32.gmra.mrb[0].mxu0 %v125
    %v310 = vpop.f32.mrb[0].mxu0
    %v311 = vadd.f32 %v85, %v310
    %v312 = vpop.f32.mrb[0].mxu0
    %313 = vmatprep.mubr.f32.mxu0 0.0
    %314 = vmatmul.mubr.f32.gmra.mrb[0].mxu0 %v128
    %v315 = vpop.f32.mrb[0].mxu0
    %v316 = vadd.f32 %v85, %v315
    %v317 = vpop.f32.mrb[0].mxu0
    %318 = vmatprep.mubr.f32.mxu0 0.0
    %319 = vmatmul.mubr.f32.gmra.mrb[0].mxu0 %v131
    %v320 = vpop.f32.mrb[0].mxu0
    %v321 = vadd.f32 %v85, %v320
    %v322 = vpop.f32.mrb[0].mxu0
    %323 = vmatprep.mubr.f32.mxu0 0.0
    %324 = vmatmul.mubr.f32.gmra.mrb[0].mxu0 %v134
    %v325 = vpop.f32.mrb[0].mxu0
    %v326 = vadd.f32 %v85, %v325
    %v327 = vpop.f32.mrb[0].mxu0
    %328 = vmatprep.mubr.f32.mxu0 0.0
    %329 = vmatmul.mubr.f32.gmra.mrb[0].mxu0 %v137
    %v330 = vpop.f32.mrb[0].mxu0
    %v331 = vadd.f32 %v85, %v330
    %v332 = vpop.f32.mrb[0].mxu0
    %333 = vmatprep.mubr.f32.mxu0 0.0
    %334 = vmatmul.mubr.f32.gmra.mrb[0].mxu0 %v140
    %v335 = vpop.f32.mrb[0].mxu0
    %v336 = vadd.f32 %v85, %v335
    %v337 = vpop.f32.mrb[0].mxu0
    %338 = vmatprep.mubr.f32.mxu0 0.0
    %339 = vmatmul.mubr.f32.gmra.mrb[0].mxu0 %v143
    %v340 = vpop.f32.mrb[0].mxu0
    %v341 = vadd.f32 %v85, %v340
    %v342 = vpop.f32.mrb[0].mxu0
    %343 = vmatprep.mubr.f32.mxu0 0.0
    %344 = vmatmul.mubr.f32.gmra.mrb[0].mxu0 %v146
    %v345 = vpop.f32.mrb[0].mxu0
    %v346 = vadd.f32 %v85, %v345
    %v347 = vpop.f32.mrb[0].mxu0
    %348 = vmatprep.mubr.f32.mxu0 0.0
    %349 = vmatmul.mubr.f32.gmra.mrb[0].mxu0 %v149
    %v350 = vpop.f32.mrb[0].mxu0
    %v351 = vadd.f32 %v85, %v350
    %v352 = vpop.f32.mrb[0].mxu0
    %353 = vmatprep.mubr.f32.mxu0 0.0
    %354 = vmatmul.mubr.f32.gmra.mrb[0].mxu0 %v152
    %v355 = vpop.f32.mrb[0].mxu0
    %v356 = vadd.f32 %v85, %v355
    %v357 = vpop.f32.mrb[0].mxu0
    %358 = vmatprep.mubr.f32.mxu0 0.0
    %359 = vmatmul.mubr.f32.gmra.mrb[0].mxu0 %v155
    %v360 = vpop.f32.mrb[0].mxu0
    %v361 = vadd.f32 %v85, %v360
    %v362 = vpop.f32.mrb[0].mxu0
    %363 = vmatprep.mubr.f32.mxu0 0.0
    %364 = vmatmul.mubr.f32.gmra.mrb[0].mxu0 %v158
    %v365 = vpop.f32.mrb[0].mxu0
    %v366 = vadd.f32 %v85, %v365
    %v367 = vpop.f32.mrb[0].mxu0
    %368 = vmatprep.mubr.f32.mxu0 0.0
    %369 = vmatmul.mubr.f32.gmra.mrb[0].mxu0 %v161
    %v370 = vpop.f32.mrb[0].mxu0
    %v371 = vadd.f32 %v85, %v370
    %v372 = vpop.f32.mrb[0].mxu0
    %373 = vmatprep.mubr.f32.mxu0 0.0
    %374 = vmatmul.mubr.f32.gmra.mrb[0].mxu0 %v164
    %v375 = vpop.f32.mrb[0].mxu0
    %v376 = vadd.f32 %v85, %v375
    %v377 = vpop.f32.mrb[0].mxu0
    %378 = vmatprep.mubr.f32.mxu0 0.0
    %379 = vmatmul.mubr.f32.gmra.mrb[0].mxu0 %v167
    %v380 = vpop.f32.mrb[0].mxu0
    %v381 = vadd.f32 %v85, %v380
    %v382 = vpop.f32.mrb[0].mxu0
    %383 = vmatprep.mubr.f32.mxu0 0.0
    %384 = vmatmul.mubr.f32.gmra.mrb[0].mxu0 %v170
    %v385 = vpop.f32.mrb[0].mxu0
    %v386 = vadd.f32 %v85, %v385
    %v387 = vpop.f32.mrb[0].mxu0
    %388 = vmatprep.mubr.f32.mxu0 0.0
    %389 = vmatmul.mubr.f32.gmra.mrb[0].mxu0 %v173
    %v390 = vpop.f32.mrb[0].mxu0
    %v391 = vadd.f32 %v85, %v390
    %v392 = vpop.f32.mrb[0].mxu0
    %393 = vmatprep.mubr.f32.mxu0 0.0
    %394 = vmatmul.mubr.f32.gmra.mrb[0].mxu0 %v176
    %v395 = vpop.f32.mrb[0].mxu0
    %v396 = vadd.f32 %v85, %v395
    %v397 = vpop.f32.mrb[0].mxu0
    %398 = vmatprep.mubr.f32.mxu0 0.0
    %399 = vmatmul.mubr.f32.gmra.mrb[0].mxu0 %v179
    %v400 = vpop.f32.mrb[0].mxu0
    %v401 = vadd.f32 %v85, %v400
    %v402 = vpop.f32.mrb[0].mxu0
    %403 = vmatprep.mubr.f32.mxu0 0.0
    %404 = vmatmul.mubr.f32.gmra.mrb[0].mxu0 %v182
    %v405 = vpop.f32.mrb[0].mxu0
    %v406 = vadd.f32 %v85, %v405
    %v407 = vpop.f32.mrb[0].mxu0
    %408 = vdwg.mxu0
    %v409 = vmax.f32 %v251, 0.0
    %v410 = vmax.f32 %v256, 0.0
    %v411 = vmax.f32 %v261, 0.0
    %v412 = vmax.f32 %v266, 0.0
    %v413 = vmax.f32 %v271, 0.0
    %v414 = vmax.f32 %v276, 0.0
    %v415 = vmax.f32 %v281, 0.0
    %v416 = vmax.f32 %v286, 0.0
    %v417 = vmax.f32 %v291, 0.0
    %v418 = vmax.f32 %v296, 0.0
    %v419 = vmax.f32 %v301, 0.0
    %v420 = vmax.f32 %v306, 0.0
    %v421 = vmax.f32 %v311, 0.0
    %v422 = vmax.f32 %v316, 0.0
    %v423 = vmax.f32 %v321, 0.0
    %v424 = vmax.f32 %v326, 0.0
    %v425 = vmax.f32 %v331, 0.0
    %v426 = vmax.f32 %v336, 0.0
    %v427 = vmax.f32 %v341, 0.0
    %v428 = vmax.f32 %v346, 0.0
    %v429 = vmax.f32 %v351, 0.0
    %v430 = vmax.f32 %v356, 0.0
    %v431 = vmax.f32 %v361, 0.0
    %v432 = vmax.f32 %v366, 0.0
    %v433 = vmax.f32 %v371, 0.0
    %v434 = vmax.f32 %v376, 0.0
    %v435 = vmax.f32 %v381, 0.0
    %v436 = vmax.f32 %v386, 0.0
    %v437 = vmax.f32 %v391, 0.0
    %v438 = vmax.f32 %v396, 0.0
    %v439 = vmax.f32 %v401, 0.0
    %v440 = vmax.f32 %v406, 0.0
    %v441 = vld [vmem:[%s1] sm:$0xff]
    %v442 = vld [vmem:[%s1 + $0x8] sm:$0xff]
    %v443 = vld [vmem:[%s1 + $0x10] sm:$0xff]
    %v444 = vld [vmem:[%s1 + $0x18] sm:$0xff]
    %v445 = vld [vmem:[%s1 + $0x20] sm:$0xff]
    %v446 = vld [vmem:[%s1 + $0x28] sm:$0xff]
    %v447 = vld [vmem:[%s1 + $0x30] sm:$0xff]
    %v448 = vld [vmem:[%s1 + $0x38] sm:$0xff]
    %v449 = vld [vmem:[%s1 + $0x40] sm:$0xff]
    %v450 = vld [vmem:[%s1 + $0x48] sm:$0xff]
    %v451 = vld [vmem:[%s1 + $0x50] sm:$0xff]
    %v452 = vld [vmem:[%s1 + $0x58] sm:$0xff]
    %v453 = vld [vmem:[%s1 + $0x60] sm:$0xff]
    %v454 = vld [vmem:[%s1 + $0x68] sm:$0xff]
    %v455 = vld [vmem:[%s1 + $0x70] sm:$0xff]
    %v456 = vld [vmem:[%s1 + $0x78] sm:$0xff]
    %v457 = vld [vmem:[%s1 + $0x80] sm:$0xff]
    %v458 = vld [vmem:[%s1 + $0x88] sm:$0xff]
    %v459 = vld [vmem:[%s1 + $0x90] sm:$0xff]
    %v460 = vld [vmem:[%s1 + $0x98] sm:$0xff]
    %v461 = vld [vmem:[%s1 + $0xa0] sm:$0xff]
    %v462 = vld [vmem:[%s1 + $0xa8] sm:$0xff]
    %v463 = vld [vmem:[%s1 + $0xb0] sm:$0xff]
    %v464 = vld [vmem:[%s1 + $0xb8] sm:$0xff]
    %v465 = vld [vmem:[%s1 + $0xc0] sm:$0xff]
    %v466 = vld [vmem:[%s1 + $0xc8] sm:$0xff]
    %v467 = vld [vmem:[%s1 + $0xd0] sm:$0xff]
    %v468 = vld [vmem:[%s1 + $0xd8] sm:$0xff]
    %v469 = vld [vmem:[%s1 + $0xe0] sm:$0xff]
    %v470 = vld [vmem:[%s1 + $0xe8] sm:$0xff]
    %v471 = vld [vmem:[%s1 + $0xf0] sm:$0xff]
    %v472 = vld [vmem:[%s1 + $0xf8] sm:$0xff]
    %v473 = vld [vmem:[%s1 + $0x100] sm:$0xff]
    %v474 = vld [vmem:[%s1 + $0x108] sm:$0xff]
    %v475 = vld [vmem:[%s1 + $0x110] sm:$0xff]
    %v476 = vld [vmem:[%s1 + $0x118] sm:$0xff]
    %v477 = vld [vmem:[%s1 + $0x120] sm:$0xff]
    %v478 = vld [vmem:[%s1 + $0x128] sm:$0xff]
    %v479 = vld [vmem:[%s1 + $0x130] sm:$0xff]
    %v480 = vld [vmem:[%s1 + $0x138] sm:$0xff]
    %v481 = vld [vmem:[%s1 + $0x140] sm:$0xff]
    %v482 = vld [vmem:[%s1 + $0x148] sm:$0xff]
    %v483 = vld [vmem:[%s1 + $0x150] sm:$0xff]
    %v484 = vld [vmem:[%s1 + $0x158] sm:$0xff]
    %v485 = vld [vmem:[%s1 + $0x160] sm:$0xff]
    %v486 = vld [vmem:[%s1 + $0x168] sm:$0xff]
    %v487 = vld [vmem:[%s1 + $0x170] sm:$0xff]
    %v488 = vld [vmem:[%s1 + $0x178] sm:$0xff]
    %v489 = vld [vmem:[%s1 + $0x180] sm:$0xff]
    %v490 = vld [vmem:[%s1 + $0x188] sm:$0xff]
    %v491 = vld [vmem:[%s1 + $0x190] sm:$0xff]
    %v492 = vld [vmem:[%s1 + $0x198] sm:$0xff]
    %v493 = vld [vmem:[%s1 + $0x1a0] sm:$0xff]
    %v494 = vld [vmem:[%s1 + $0x1a8] sm:$0xff]
    %v495 = vld [vmem:[%s1 + $0x1b0] sm:$0xff]
    %v496 = vld [vmem:[%s1 + $0x1b8] sm:$0xff]
    %v497 = vld [vmem:[%s1 + $0x1c0] sm:$0xff]
    %v498 = vld [vmem:[%s1 + $0x1c8] sm:$0xff]
    %v499 = vld [vmem:[%s1 + $0x1d0] sm:$0xff]
    %v500 = vld [vmem:[%s1 + $0x1d8] sm:$0xff]
    %v501 = vld [vmem:[%s1 + $0x1e0] sm:$0xff]
    %v502 = vld [vmem:[%s1 + $0x1e8] sm:$0xff]
    %v503 = vld [vmem:[%s1 + $0x1f0] sm:$0xff]
    %v504 = vld [vmem:[%s1 + $0x1f8] sm:$0xff]
    %v505 = vld [vmem:[%s1 + $0x200] sm:$0xff]
    %v506 = vld [vmem:[%s1 + $0x208] sm:$0xff]
    %v507 = vld [vmem:[%s1 + $0x210] sm:$0xff]
    %v508 = vld [vmem:[%s1 + $0x218] sm:$0xff]
    %v509 = vld [vmem:[%s1 + $0x220] sm:$0xff]
    %v510 = vld [vmem:[%s1 + $0x228] sm:$0xff]
    %v511 = vld [vmem:[%s1 + $0x230] sm:$0xff]
    %v512 = vld [vmem:[%s1 + $0x238] sm:$0xff]
    %v513 = vld [vmem:[%s1 + $0x240] sm:$0xff]
    %v514 = vld [vmem:[%s1 + $0x248] sm:$0xff]
    %v515 = vld [vmem:[%s1 + $0x250] sm:$0xff]
    %v516 = vld [vmem:[%s1 + $0x258] sm:$0xff]
    %v517 = vld [vmem:[%s1 + $0x260] sm:$0xff]
    %v518 = vld [vmem:[%s1 + $0x268] sm:$0xff]
    %v519 = vld [vmem:[%s1 + $0x270] sm:$0xff]
    %v520 = vld [vmem:[%s1 + $0x278] sm:$0xff]
    %v521 = vld [vmem:[%s1 + $0x280] sm:$0xff]
    %v522 = vld [vmem:[%s1 + $0x288] sm:$0xff]
    %v523 = vld [vmem:[%s1 + $0x290] sm:$0xff]
    %v524 = vld [vmem:[%s1 + $0x298] sm:$0xff]
    %v525 = vld [vmem:[%s1 + $0x2a0] sm:$0xff]
    %v526 = vld [vmem:[%s1 + $0x2a8] sm:$0xff]
    %v527 = vld [vmem:[%s1 + $0x2b0] sm:$0xff]
    %v528 = vld [vmem:[%s1 + $0x2b8] sm:$0xff]
    %v529 = vld [vmem:[%s1 + $0x2c0] sm:$0xff]
    %v530 = vld [vmem:[%s1 + $0x2c8] sm:$0xff]
    %v531 = vld [vmem:[%s1 + $0x2d0] sm:$0xff]
    %v532 = vld [vmem:[%s1 + $0x2d8] sm:$0xff]
    %v533 = vld [vmem:[%s1 + $0x2e0] sm:$0xff]
    %v534 = vld [vmem:[%s1 + $0x2e8] sm:$0xff]
    %v535 = vld [vmem:[%s1 + $0x2f0] sm:$0xff]
    %v536 = vld [vmem:[%s1 + $0x2f8] sm:$0xff]
    %v537 = vld [vmem:[%s1 + $0x300] sm:$0xff]
    %v538 = vld [vmem:[%s1 + $0x308] sm:$0xff]
    %v539 = vld [vmem:[%s1 + $0x310] sm:$0xff]
    %v540 = vld [vmem:[%s1 + $0x318] sm:$0xff]
    %v541 = vld [vmem:[%s1 + $0x320] sm:$0xff]
    %v542 = vld [vmem:[%s1 + $0x328] sm:$0xff]
    %v543 = vld [vmem:[%s1 + $0x330] sm:$0xff]
    %v544 = vld [vmem:[%s1 + $0x338] sm:$0xff]
    %v545 = vld [vmem:[%s1 + $0x340] sm:$0xff]
    %v546 = vld [vmem:[%s1 + $0x348] sm:$0xff]
    %v547 = vld [vmem:[%s1 + $0x350] sm:$0xff]
    %v548 = vld [vmem:[%s1 + $0x358] sm:$0xff]
    %v549 = vld [vmem:[%s1 + $0x360] sm:$0xff]
    %v550 = vld [vmem:[%s1 + $0x368] sm:$0xff]
    %v551 = vld [vmem:[%s1 + $0x370] sm:$0xff]
    %v552 = vld [vmem:[%s1 + $0x378] sm:$0xff]
    %v553 = vld [vmem:[%s1 + $0x380] sm:$0xff]
    %v554 = vld [vmem:[%s1 + $0x388] sm:$0xff]
    %v555 = vld [vmem:[%s1 + $0x390] sm:$0xff]
    %v556 = vld [vmem:[%s1 + $0x398] sm:$0xff]
    %v557 = vld [vmem:[%s1 + $0x3a0] sm:$0xff]
    %v558 = vld [vmem:[%s1 + $0x3a8] sm:$0xff]
    %v559 = vld [vmem:[%s1 + $0x3b0] sm:$0xff]
    %v560 = vld [vmem:[%s1 + $0x3b8] sm:$0xff]
    %v561 = vld [vmem:[%s1 + $0x3c0] sm:$0xff]
    %v562 = vld [vmem:[%s1 + $0x3c8] sm:$0xff]
    %v563 = vld [vmem:[%s1 + $0x3d0] sm:$0xff]
    %v564 = vld [vmem:[%s1 + $0x3d8] sm:$0xff]
    %v565 = vld [vmem:[%s1 + $0x3e0] sm:$0xff]
    %v566 = vld [vmem:[%s1 + $0x3e8] sm:$0xff]
    %v567 = vld [vmem:[%s1 + $0x3f0] sm:$0xff]
    %v568 = vld [vmem:[%s1 + $0x3f8] sm:$0xff]
    %v569 = vld [vmem:[%s1 + $0x400] sm:$0xff]
    %v570 = vld [vmem:[%s1 + $0x408] sm:$0xff]
    %v571 = vld [vmem:[%s1 + $0x410] sm:$0xff]
    %v572 = vld [vmem:[%s1 + $0x418] sm:$0xff]
    %v573 = vld [vmem:[%s1 + $0x420] sm:$0xff]
    %v574 = vld [vmem:[%s1 + $0x428] sm:$0xff]
    %v575 = vld [vmem:[%s1 + $0x430] sm:$0xff]
    %v576 = vld [vmem:[%s1 + $0x438] sm:$0xff]
    %v577 = vld [vmem:[%s1 + $0x440] sm:$0xff]
    %v578 = vld [vmem:[%s1 + $0x448] sm:$0xff]
    %v579 = vld [vmem:[%s1 + $0x450] sm:$0xff]
    %v580 = vld [vmem:[%s1 + $0x458] sm:$0xff]
    %v581 = vld [vmem:[%s1 + $0x460] sm:$0xff]
    %v582 = vld [vmem:[%s1 + $0x468] sm:$0xff]
    %v583 = vld [vmem:[%s1 + $0x470] sm:$0xff]
    %v584 = vld [vmem:[%s1 + $0x478] sm:$0xff]
    %v585 = vld [vmem:[%s1 + $0x480] sm:$0xff]
    %v586 = vld [vmem:[%s1 + $0x488] sm:$0xff]
    %v587 = vld [vmem:[%s1 + $0x490] sm:$0xff]
    %v588 = vld [vmem:[%s1 + $0x498] sm:$0xff]
    %v589 = vld [vmem:[%s1 + $0x4a0] sm:$0xff]
    %v590 = vld [vmem:[%s1 + $0x4a8] sm:$0xff]
    %v591 = vld [vmem:[%s1 + $0x4b0] sm:$0xff]
    %v592 = vld [vmem:[%s1 + $0x4b8] sm:$0xff]
    %v593 = vld [vmem:[%s1 + $0x4c0] sm:$0xff]
    %v594 = vld [vmem:[%s1 + $0x4c8] sm:$0xff]
    %v595 = vld [vmem:[%s1 + $0x4d0] sm:$0xff]
    %v596 = vld [vmem:[%s1 + $0x4d8] sm:$0xff]
    %v597 = vld [vmem:[%s1 + $0x4e0] sm:$0xff]
    %v598 = vld [vmem:[%s1 + $0x4e8] sm:$0xff]
    %v599 = vld [vmem:[%s1 + $0x4f0] sm:$0xff]
    %v600 = vld [vmem:[%s1 + $0x4f8] sm:$0xff]
    %v601 = vld [vmem:[%s1 + $0x500] sm:$0xff]
    %v602 = vld [vmem:[%s1 + $0x508] sm:$0xff]
    %v603 = vld [vmem:[%s1 + $0x510] sm:$0xff]
    %v604 = vld [vmem:[%s1 + $0x518] sm:$0xff]
    %v605 = vld [vmem:[%s1 + $0x520] sm:$0xff]
    %v606 = vld [vmem:[%s1 + $0x528] sm:$0xff]
    %v607 = vld [vmem:[%s1 + $0x530] sm:$0xff]
    %v608 = vld [vmem:[%s1 + $0x538] sm:$0xff]
    %v609 = vld [vmem:[%s1 + $0x540] sm:$0xff]
    %v610 = vld [vmem:[%s1 + $0x548] sm:$0xff]
    %v611 = vld [vmem:[%s1 + $0x550] sm:$0xff]
    %v612 = vld [vmem:[%s1 + $0x558] sm:$0xff]
    %v613 = vld [vmem:[%s1 + $0x560] sm:$0xff]
    %v614 = vld [vmem:[%s1 + $0x568] sm:$0xff]
    %v615 = vld [vmem:[%s1 + $0x570] sm:$0xff]
    %v616 = vld [vmem:[%s1 + $0x578] sm:$0xff]
    %v617 = vld [vmem:[%s1 + $0x580] sm:$0xff]
    %v618 = vld [vmem:[%s1 + $0x588] sm:$0xff]
    %v619 = vld [vmem:[%s1 + $0x590] sm:$0xff]
    %v620 = vld [vmem:[%s1 + $0x598] sm:$0xff]
    %v621 = vld [vmem:[%s1 + $0x5a0] sm:$0xff]
    %v622 = vld [vmem:[%s1 + $0x5a8] sm:$0xff]
    %v623 = vld [vmem:[%s1 + $0x5b0] sm:$0xff]
    %v624 = vld [vmem:[%s1 + $0x5b8] sm:$0xff]
    %v625 = vld [vmem:[%s1 + $0x5c0] sm:$0xff]
    %v626 = vld [vmem:[%s1 + $0x5c8] sm:$0xff]
    %v627 = vld [vmem:[%s1 + $0x5d0] sm:$0xff]
    %v628 = vld [vmem:[%s1 + $0x5d8] sm:$0xff]
    %v629 = vld [vmem:[%s1 + $0x5e0] sm:$0xff]
    %v630 = vld [vmem:[%s1 + $0x5e8] sm:$0xff]
    %v631 = vld [vmem:[%s1 + $0x5f0] sm:$0xff]
    %v632 = vld [vmem:[%s1 + $0x5f8] sm:$0xff]
    %v633 = vld [vmem:[%s1 + $0x600] sm:$0xff]
    %v634 = vld [vmem:[%s1 + $0x608] sm:$0xff]
    %v635 = vld [vmem:[%s1 + $0x610] sm:$0xff]
    %v636 = vld [vmem:[%s1 + $0x618] sm:$0xff]
    %v637 = vld [vmem:[%s1 + $0x620] sm:$0xff]
    %v638 = vld [vmem:[%s1 + $0x628] sm:$0xff]
    %v639 = vld [vmem:[%s1 + $0x630] sm:$0xff]
    %v640 = vld [vmem:[%s1 + $0x638] sm:$0xff]
    %v641 = vld [vmem:[%s1 + $0x640] sm:$0xff]
    %v642 = vld [vmem:[%s1 + $0x648] sm:$0xff]
    %v643 = vld [vmem:[%s1 + $0x650] sm:$0xff]
    %v644 = vld [vmem:[%s1 + $0x658] sm:$0xff]
    %v645 = vld [vmem:[%s1 + $0x660] sm:$0xff]
    %v646 = vld [vmem:[%s1 + $0x668] sm:$0xff]
    %v647 = vld [vmem:[%s1 + $0x670] sm:$0xff]
    %v648 = vld [vmem:[%s1 + $0x678] sm:$0xff]
    %v649 = vld [vmem:[%s1 + $0x680] sm:$0xff]
    %v650 = vld [vmem:[%s1 + $0x688] sm:$0xff]
    %v651 = vld [vmem:[%s1 + $0x690] sm:$0xff]
    %v652 = vld [vmem:[%s1 + $0x698] sm:$0xff]
    %v653 = vld [vmem:[%s1 + $0x6a0] sm:$0xff]
    %v654 = vld [vmem:[%s1 + $0x6a8] sm:$0xff]
    %v655 = vld [vmem:[%s1 + $0x6b0] sm:$0xff]
    %v656 = vld [vmem:[%s1 + $0x6b8] sm:$0xff]
    %v657 = vld [vmem:[%s1 + $0x6c0] sm:$0xff]
    %v658 = vld [vmem:[%s1 + $0x6c8] sm:$0xff]
    %v659 = vld [vmem:[%s1 + $0x6d0] sm:$0xff]
    %v660 = vld [vmem:[%s1 + $0x6d8] sm:$0xff]
    %v661 = vld [vmem:[%s1 + $0x6e0] sm:$0xff]
    %v662 = vld [vmem:[%s1 + $0x6e8] sm:$0xff]
    %v663 = vld [vmem:[%s1 + $0x6f0] sm:$0xff]
    %v664 = vld [vmem:[%s1 + $0x6f8] sm:$0xff]
    %v665 = vld [vmem:[%s1 + $0x700] sm:$0xff]
    %v666 = vld [vmem:[%s1 + $0x708] sm:$0xff]
    %v667 = vld [vmem:[%s1 + $0x710] sm:$0xff]
    %v668 = vld [vmem:[%s1 + $0x718] sm:$0xff]
    %v669 = vld [vmem:[%s1 + $0x720] sm:$0xff]
    %v670 = vld [vmem:[%s1 + $0x728] sm:$0xff]
    %v671 = vld [vmem:[%s1 + $0x730] sm:$0xff]
    %v672 = vld [vmem:[%s1 + $0x738] sm:$0xff]
    %v673 = vld [vmem:[%s1 + $0x740] sm:$0xff]
    %v674 = vld [vmem:[%s1 + $0x748] sm:$0xff]
    %v675 = vld [vmem:[%s1 + $0x750] sm:$0xff]
    %v676 = vld [vmem:[%s1 + $0x758] sm:$0xff]
    %v677 = vld [vmem:[%s1 + $0x760] sm:$0xff]
    %v678 = vld [vmem:[%s1 + $0x768] sm:$0xff]
    %v679 = vld [vmem:[%s1 + $0x770] sm:$0xff]
    %v680 = vld [vmem:[%s1 + $0x778] sm:$0xff]
    %v681 = vld [vmem:[%s1 + $0x780] sm:$0xff]
    %v682 = vld [vmem:[%s1 + $0x788] sm:$0xff]
    %v683 = vld [vmem:[%s1 + $0x790] sm:$0xff]
    %v684 = vld [vmem:[%s1 + $0x798] sm:$0xff]
    %v685 = vld [vmem:[%s1 + $0x7a0] sm:$0xff]
    %v686 = vld [vmem:[%s1 + $0x7a8] sm:$0xff]
    %v687 = vld [vmem:[%s1 + $0x7b0] sm:$0xff]
    %v688 = vld [vmem:[%s1 + $0x7b8] sm:$0xff]
    %v689 = vld [vmem:[%s1 + $0x7c0] sm:$0xff]
    %v690 = vld [vmem:[%s1 + $0x7c8] sm:$0xff]
    %v691 = vld [vmem:[%s1 + $0x7d0] sm:$0xff]
    %v692 = vld [vmem:[%s1 + $0x7d8] sm:$0xff]
    %v693 = vld [vmem:[%s1 + $0x7e0] sm:$0xff]
    %v694 = vld [vmem:[%s1 + $0x7e8] sm:$0xff]
    %v695 = vld [vmem:[%s1 + $0x7f0] sm:$0xff]
    %v696 = vld [vmem:[%s1 + $0x7f8] sm:$0xff]
    %v697 = vld [vmem:[%s1 + $0x800] sm:$0xff]
    %v698 = vld [vmem:[%s1 + $0x808] sm:$0xff]
    %v699 = vld [vmem:[%s1 + $0x810] sm:$0xff]
    %v700 = vld [vmem:[%s1 + $0x818] sm:$0xff]
    %v701 = vld [vmem:[%s1 + $0x820] sm:$0xff]
    %v702 = vld [vmem:[%s1 + $0x828] sm:$0xff]
    %v703 = vld [vmem:[%s1 + $0x830] sm:$0xff]
    %v704 = vld [vmem:[%s1 + $0x838] sm:$0xff]
    %v705 = vld [vmem:[%s1 + $0x840] sm:$0xff]
    %v706 = vld [vmem:[%s1 + $0x848] sm:$0xff]
    %v707 = vld [vmem:[%s1 + $0x850] sm:$0xff]
    %v708 = vld [vmem:[%s1 + $0x858] sm:$0xff]
    %v709 = vld [vmem:[%s1 + $0x860] sm:$0xff]
    %v710 = vld [vmem:[%s1 + $0x868] sm:$0xff]
    %v711 = vld [vmem:[%s1 + $0x870] sm:$0xff]
    %v712 = vld [vmem:[%s1 + $0x878] sm:$0xff]
    %v713 = vld [vmem:[%s1 + $0x880] sm:$0xff]
    %v714 = vld [vmem:[%s1 + $0x888] sm:$0xff]
    %v715 = vld [vmem:[%s1 + $0x890] sm:$0xff]
    %v716 = vld [vmem:[%s1 + $0x898] sm:$0xff]
    %v717 = vld [vmem:[%s1 + $0x8a0] sm:$0xff]
    %v718 = vld [vmem:[%s1 + $0x8a8] sm:$0xff]
    %v719 = vld [vmem:[%s1 + $0x8b0] sm:$0xff]
    %v720 = vld [vmem:[%s1 + $0x8b8] sm:$0xff]
    %v721 = vld [vmem:[%s1 + $0x8c0] sm:$0xff]
    %v722 = vld [vmem:[%s1 + $0x8c8] sm:$0xff]
    %v723 = vld [vmem:[%s1 + $0x8d0] sm:$0xff]
    %v724 = vld [vmem:[%s1 + $0x8d8] sm:$0xff]
    %v725 = vld [vmem:[%s1 + $0x8e0] sm:$0xff]
    %v726 = vld [vmem:[%s1 + $0x8e8] sm:$0xff]
    %v727 = vld [vmem:[%s1 + $0x8f0] sm:$0xff]
    %v728 = vld [vmem:[%s1 + $0x8f8] sm:$0xff]
    %v729 = vld [vmem:[%s1 + $0x900] sm:$0xff]
    %v730 = vld [vmem:[%s1 + $0x908] sm:$0xff]
    %v731 = vld [vmem:[%s1 + $0x910] sm:$0xff]
    %v732 = vld [vmem:[%s1 + $0x918] sm:$0xff]
    %v733 = vld [vmem:[%s1 + $0x920] sm:$0xff]
    %v734 = vld [vmem:[%s1 + $0x928] sm:$0xff]
    %v735 = vld [vmem:[%s1 + $0x930] sm:$0xff]
    %v736 = vld [vmem:[%s1 + $0x938] sm:$0xff]
    %v737 = vld [vmem:[%s1 + $0x940] sm:$0xff]
    %v738 = vld [vmem:[%s1 + $0x948] sm:$0xff]
    %v739 = vld [vmem:[%s1 + $0x950] sm:$0xff]
    %v740 = vld [vmem:[%s1 + $0x958] sm:$0xff]
    %v741 = vld [vmem:[%s1 + $0x960] sm:$0xff]
    %v742 = vld [vmem:[%s1 + $0x968] sm:$0xff]
    %v743 = vld [vmem:[%s1 + $0x970] sm:$0xff]
    %v744 = vld [vmem:[%s1 + $0x978] sm:$0xff]
    %v745 = vld [vmem:[%s1 + $0x980] sm:$0xff]
    %v746 = vld [vmem:[%s1 + $0x988] sm:$0xff]
    %v747 = vld [vmem:[%s1 + $0x990] sm:$0xff]
    %v748 = vld [vmem:[%s1 + $0x998] sm:$0xff]
    %v749 = vld [vmem:[%s1 + $0x9a0] sm:$0xff]
    %v750 = vld [vmem:[%s1 + $0x9a8] sm:$0xff]
    %v751 = vld [vmem:[%s1 + $0x9b0] sm:$0xff]
    %v752 = vld [vmem:[%s1 + $0x9b8] sm:$0xff]
    %v753 = vld [vmem:[%s1 + $0x9c0] sm:$0xff]
    %v754 = vld [vmem:[%s1 + $0x9c8] sm:$0xff]
    %v755 = vld [vmem:[%s1 + $0x9d0] sm:$0xff]
    %v756 = vld [vmem:[%s1 + $0x9d8] sm:$0xff]
    %v757 = vld [vmem:[%s1 + $0x9e0] sm:$0xff]
    %v758 = vld [vmem:[%s1 + $0x9e8] sm:$0xff]
    %v759 = vld [vmem:[%s1 + $0x9f0] sm:$0xff]
    %v760 = vld [vmem:[%s1 + $0x9f8] sm:$0xff]
    %v761 = vld [vmem:[%s4] sm:$0xff]
    %v762 = vld [vmem:[%s4 + $0x8] sm:$0xff]
    %v763 = vld [vmem:[%s4 + $0x10] sm:$0xff]
    %v764 = vld [vmem:[%s4 + $0x18] sm:$0xff]
    %v765 = vld [vmem:[%s4 + $0x20] sm:$0xff]
    %v766 = vld [vmem:[%s4 + $0x28] sm:$0xff]
    %v767 = vld [vmem:[%s4 + $0x30] sm:$0xff]
    %v768 = vld [vmem:[%s4 + $0x38] sm:$0xff]
    %v769 = vld [vmem:[%s4 + $0x40] sm:$0xff]
    %v770 = vld [vmem:[%s4 + $0x48] sm:$0xff]
    %v771 = vld [vmem:[%s4 + $0x50] sm:$0xff]
    %v772 = vld [vmem:[%s4 + $0x58] sm:$0xff]
    %v773 = vld [vmem:[%s4 + $0x60] sm:$0xff]
    %v774 = vld [vmem:[%s4 + $0x68] sm:$0xff]
    %v775 = vld [vmem:[%s4 + $0x70] sm:$0xff]
    %v776 = vld [vmem:[%s4 + $0x78] sm:$0xff]
    %v777 = vld [vmem:[%s4 + $0x80] sm:$0xff]
    %v778 = vld [vmem:[%s4 + $0x88] sm:$0xff]
    %v779 = vld [vmem:[%s4 + $0x90] sm:$0xff]
    %v780 = vld [vmem:[%s4 + $0x98] sm:$0xff]
    %v781 = vld [vmem:[%s4 + $0xa0] sm:$0xff]
    %v782 = vld [vmem:[%s4 + $0xa8] sm:$0xff]
    %v783 = vld [vmem:[%s4 + $0xb0] sm:$0xff]
    %v784 = vld [vmem:[%s4 + $0xb8] sm:$0xff]
    %v785 = vld [vmem:[%s4 + $0xc0] sm:$0xff]
    %v786 = vld [vmem:[%s4 + $0xc8] sm:$0xff]
    %v787 = vld [vmem:[%s4 + $0xd0] sm:$0xff]
    %v788 = vld [vmem:[%s4 + $0xd8] sm:$0xff]
    %v789 = vld [vmem:[%s4 + $0xe0] sm:$0xff]
    %v790 = vld [vmem:[%s4 + $0xe8] sm:$0xff]
    %v791 = vld [vmem:[%s4 + $0xf0] sm:$0xff]
    %v792 = vld [vmem:[%s4 + $0xf8] sm:$0xff]
    %v793 = vld [vmem:[%s4 + $0x100] sm:$0xff]
    %v794 = vld [vmem:[%s4 + $0x108] sm:$0xff]
    %v795 = vld [vmem:[%s4 + $0x110] sm:$0xff]
    %v796 = vld [vmem:[%s4 + $0x118] sm:$0xff]
    %v797 = vld [vmem:[%s4 + $0x120] sm:$0xff]
    %v798 = vld [vmem:[%s4 + $0x128] sm:$0xff]
    %v799 = vld [vmem:[%s4 + $0x130] sm:$0xff]
    %v800 = vld [vmem:[%s4 + $0x138] sm:$0xff]
    %v801 = vld [vmem:[%s4 + $0x140] sm:$0xff]
    %v802 = vld [vmem:[%s4 + $0x148] sm:$0xff]
    %v803 = vld [vmem:[%s4 + $0x150] sm:$0xff]
    %v804 = vld [vmem:[%s4 + $0x158] sm:$0xff]
    %v805 = vld [vmem:[%s4 + $0x160] sm:$0xff]
    %v806 = vld [vmem:[%s4 + $0x168] sm:$0xff]
    %v807 = vld [vmem:[%s4 + $0x170] sm:$0xff]
    %v808 = vld [vmem:[%s4 + $0x178] sm:$0xff]
    %v809 = vld [vmem:[%s4 + $0x180] sm:$0xff]
    %v810 = vld [vmem:[%s4 + $0x188] sm:$0xff]
    %v811 = vld [vmem:[%s4 + $0x190] sm:$0xff]
    %v812 = vld [vmem:[%s4 + $0x198] sm:$0xff]
    %v813 = vld [vmem:[%s4 + $0x1a0] sm:$0xff]
    %v814 = vld [vmem:[%s4 + $0x1a8] sm:$0xff]
    %v815 = vld [vmem:[%s4 + $0x1b0] sm:$0xff]
    %v816 = vld [vmem:[%s4 + $0x1b8] sm:$0xff]
    %v817 = vld [vmem:[%s4 + $0x1c0] sm:$0xff]
    %v818 = vld [vmem:[%s4 + $0x1c8] sm:$0xff]
    %v819 = vld [vmem:[%s4 + $0x1d0] sm:$0xff]
    %v820 = vld [vmem:[%s4 + $0x1d8] sm:$0xff]
    %v821 = vld [vmem:[%s4 + $0x1e0] sm:$0xff]
    %v822 = vld [vmem:[%s4 + $0x1e8] sm:$0xff]
    %v823 = vld [vmem:[%s4 + $0x1f0] sm:$0xff]
    %v824 = vld [vmem:[%s4 + $0x1f8] sm:$0xff]
    %v825 = vld [vmem:[%s4 + $0x200] sm:$0xff]
    %v826 = vld [vmem:[%s4 + $0x208] sm:$0xff]
    %v827 = vld [vmem:[%s4 + $0x210] sm:$0xff]
    %v828 = vld [vmem:[%s4 + $0x218] sm:$0xff]
    %v829 = vld [vmem:[%s4 + $0x220] sm:$0xff]
    %v830 = vld [vmem:[%s4 + $0x228] sm:$0xff]
    %v831 = vld [vmem:[%s4 + $0x230] sm:$0xff]
    %v832 = vld [vmem:[%s4 + $0x238] sm:$0xff]
    %v833 = vld [vmem:[%s4 + $0x240] sm:$0xff]
    %v834 = vld [vmem:[%s4 + $0x248] sm:$0xff]
    %v835 = vld [vmem:[%s4 + $0x250] sm:$0xff]
    %v836 = vld [vmem:[%s4 + $0x258] sm:$0xff]
    %v837 = vld [vmem:[%s4 + $0x260] sm:$0xff]
    %v838 = vld [vmem:[%s4 + $0x268] sm:$0xff]
    %v839 = vld [vmem:[%s4 + $0x270] sm:$0xff]
    %v840 = vld [vmem:[%s4 + $0x278] sm:$0xff]
    %v841 = vld [vmem:[%s4 + $0x280] sm:$0xff]
    %v842 = vld [vmem:[%s4 + $0x288] sm:$0xff]
    %v843 = vld [vmem:[%s4 + $0x290] sm:$0xff]
    %v844 = vld [vmem:[%s4 + $0x298] sm:$0xff]
    %v845 = vld [vmem:[%s4 + $0x2a0] sm:$0xff]
    %v846 = vld [vmem:[%s4 + $0x2a8] sm:$0xff]
    %v847 = vld [vmem:[%s4 + $0x2b0] sm:$0xff]
    %v848 = vld [vmem:[%s4 + $0x2b8] sm:$0xff]
    %v849 = vld [vmem:[%s4 + $0x2c0] sm:$0xff]
    %v850 = vld [vmem:[%s4 + $0x2c8] sm:$0xff]
    %v851 = vld [vmem:[%s4 + $0x2d0] sm:$0xff]
    %v852 = vld [vmem:[%s4 + $0x2d8] sm:$0xff]
    %v853 = vld [vmem:[%s4 + $0x2e0] sm:$0xff]
    %v854 = vld [vmem:[%s4 + $0x2e8] sm:$0xff]
    %v855 = vld [vmem:[%s4 + $0x2f0] sm:$0xff]
    %v856 = vld [vmem:[%s4 + $0x2f8] sm:$0xff]
    %v857 = vld [vmem:[%s4 + $0x300] sm:$0xff]
    %v858 = vld [vmem:[%s4 + $0x308] sm:$0xff]
    %v859 = vld [vmem:[%s4 + $0x310] sm:$0xff]
    %v860 = vld [vmem:[%s4 + $0x318] sm:$0xff]
    %v861 = vld [vmem:[%s4 + $0x320] sm:$0xff]
    %v862 = vld [vmem:[%s4 + $0x328] sm:$0xff]
    %v863 = vld [vmem:[%s4 + $0x330] sm:$0xff]
    %v864 = vld [vmem:[%s4 + $0x338] sm:$0xff]
    %v865 = vld [vmem:[%s4 + $0x340] sm:$0xff]
    %v866 = vld [vmem:[%s4 + $0x348] sm:$0xff]
    %v867 = vld [vmem:[%s4 + $0x350] sm:$0xff]
    %v868 = vld [vmem:[%s4 + $0x358] sm:$0xff]
    %v869 = vld [vmem:[%s4 + $0x360] sm:$0xff]
    %v870 = vld [vmem:[%s4 + $0x368] sm:$0xff]
    %v871 = vld [vmem:[%s4 + $0x370] sm:$0xff]
    %v872 = vld [vmem:[%s4 + $0x378] sm:$0xff]
    %v873 = vld [vmem:[%s4 + $0x380] sm:$0xff]
    %v874 = vld [vmem:[%s4 + $0x388] sm:$0xff]
    %v875 = vld [vmem:[%s4 + $0x390] sm:$0xff]
    %v876 = vld [vmem:[%s4 + $0x398] sm:$0xff]
    %v877 = vld [vmem:[%s4 + $0x3a0] sm:$0xff]
    %v878 = vld [vmem:[%s4 + $0x3a8] sm:$0xff]
    %v879 = vld [vmem:[%s4 + $0x3b0] sm:$0xff]
    %v880 = vld [vmem:[%s4 + $0x3b8] sm:$0xff]
    %v881 = vld [vmem:[%s4 + $0x3c0] sm:$0xff]
    %v882 = vld [vmem:[%s4 + $0x3c8] sm:$0xff]
    %v883 = vld [vmem:[%s4 + $0x3d0] sm:$0xff]
    %v884 = vld [vmem:[%s4 + $0x3d8] sm:$0xff]
    %v885 = vld [vmem:[%s4 + $0x3e0] sm:$0xff]
    %v886 = vld [vmem:[%s4 + $0x3e8] sm:$0xff]
    %v887 = vld [vmem:[%s4 + $0x3f0] sm:$0xff]
    %v888 = vld [vmem:[%s4 + $0x3f8] sm:$0xff]
    %v889 = vld [vmem:[%s4 + $0x400] sm:$0xff]
    %v890 = vld [vmem:[%s4 + $0x408] sm:$0xff]
    %v891 = vld [vmem:[%s4 + $0x410] sm:$0xff]
    %v892 = vld [vmem:[%s4 + $0x418] sm:$0xff]
    %v893 = vld [vmem:[%s4 + $0x420] sm:$0xff]
    %v894 = vld [vmem:[%s4 + $0x428] sm:$0xff]
    %v895 = vld [vmem:[%s4 + $0x430] sm:$0xff]
    %v896 = vld [vmem:[%s4 + $0x438] sm:$0xff]
    %v897 = vld [vmem:[%s4 + $0x440] sm:$0xff]
    %v898 = vld [vmem:[%s4 + $0x448] sm:$0xff]
    %v899 = vld [vmem:[%s4 + $0x450] sm:$0xff]
    %v900 = vld [vmem:[%s4 + $0x458] sm:$0xff]
    %v901 = vld [vmem:[%s4 + $0x460] sm:$0xff]
    %v902 = vld [vmem:[%s4 + $0x468] sm:$0xff]
    %v903 = vld [vmem:[%s4 + $0x470] sm:$0xff]
    %v904 = vld [vmem:[%s4 + $0x478] sm:$0xff]
    %v905 = vld [vmem:[%s4 + $0x480] sm:$0xff]
    %v906 = vld [vmem:[%s4 + $0x488] sm:$0xff]
    %v907 = vld [vmem:[%s4 + $0x490] sm:$0xff]
    %v908 = vld [vmem:[%s4 + $0x498] sm:$0xff]
    %v909 = vld [vmem:[%s4 + $0x4a0] sm:$0xff]
    %v910 = vld [vmem:[%s4 + $0x4a8] sm:$0xff]
    %v911 = vld [vmem:[%s4 + $0x4b0] sm:$0xff]
    %v912 = vld [vmem:[%s4 + $0x4b8] sm:$0xff]
    %v913 = vld [vmem:[%s4 + $0x4c0] sm:$0xff]
    %v914 = vld [vmem:[%s4 + $0x4c8] sm:$0xff]
    %v915 = vld [vmem:[%s4 + $0x4d0] sm:$0xf]
    %v916 = vld [vmem:[%s5] sm:$0x1]
    %v918 = vlaneseq
    %v919 = vshrl.u32 %v918, 7
    %v920 = vsub.s32 0, %v919
    %v921 = vrot.slane %v916, %v920
    %vm923 = vcmask 687104
    %v925 = vsel %vm923, %v450, 0
    %v928 = vsel %vm923, %v460, 0
    %v931 = vsel %vm923, %v470, 0
    %v934 = vsel %vm923, %v480, 0
    %v937 = vsel %vm923, %v490, 0
    %v940 = vsel %vm923, %v500, 0
    %v943 = vsel %vm923, %v510, 0
    %v946 = vsel %vm923, %v520, 0
    %v949 = vsel %vm923, %v530, 0
    %v952 = vsel %vm923, %v540, 0
    %v955 = vsel %vm923, %v550, 0
    %v958 = vsel %vm923, %v560, 0
    %v961 = vsel %vm923, %v570, 0
    %v964 = vsel %vm923, %v580, 0
    %v967 = vsel %vm923, %v590, 0
    %v970 = vsel %vm923, %v600, 0
    %v973 = vsel %vm923, %v610, 0
    %v976 = vsel %vm923, %v620, 0
    %v979 = vsel %vm923, %v630, 0
    %v982 = vsel %vm923, %v640, 0
    %v985 = vsel %vm923, %v650, 0
    %v988 = vsel %vm923, %v660, 0
    %v991 = vsel %vm923, %v670, 0
    %v994 = vsel %vm923, %v680, 0
    %v997 = vsel %vm923, %v690, 0
    %v1000 = vsel %vm923, %v700, 0
    %v1003 = vsel %vm923, %v710, 0
    %v1006 = vsel %vm923, %v720, 0
    %v1009 = vsel %vm923, %v730, 0
    %v1012 = vsel %vm923, %v740, 0
    %v1015 = vsel %vm923, %v750, 0
    %v1018 = vsel %vm923, %v760, 0
    %vm1020 = vcmask 1043456
    %v1022 = vsel %vm1020, %v915, 0
    %1024 = vmatprep.subr.mxu0 0.0
    %1025 = vmatpush1.msra.mxu0 %v761
    %1026 = vmatprep.subr.mxu0 0.0
    %1027 = vmatpush1.msra.mxu0 %v762
    %1028 = vmatprep.subr.mxu0 0.0
    %1029 = vmatpush1.msra.mxu0 %v763
    %1030 = vmatprep.subr.mxu0 0.0
    %1031 = vmatpush1.msra.mxu0 %v764
    %1032 = vmatprep.subr.mxu0 0.0
    %1033 = vmatpush1.msra.mxu0 %v765
    %1034 = vmatprep.subr.mxu0 0.0
    %1035 = vmatpush1.msra.mxu0 %v766
    %1036 = vmatprep.subr.mxu0 0.0
    %1037 = vmatpush1.msra.mxu0 %v767
    %1038 = vmatprep.subr.mxu0 0.0
    %1039 = vmatpush1.msra.mxu0 %v768
    %1040 = vmatprep.subr.mxu0 0.0
    %1041 = vmatpush1.msra.mxu0 %v769
    %1042 = vmatprep.subr.mxu0 0.0
    %1043 = vmatpush1.msra.mxu0 %v770
    %1044 = vmatprep.subr.mxu0 0.0
    %1045 = vmatpush1.msra.mxu0 %v771
    %1046 = vmatprep.subr.mxu0 0.0
    %1047 = vmatpush1.msra.mxu0 %v772
    %1048 = vmatprep.subr.mxu0 0.0
    %1049 = vmatpush1.msra.mxu0 %v773
    %1050 = vmatprep.subr.mxu0 0.0
    %1051 = vmatpush1.msra.mxu0 %v774
    %1052 = vmatprep.subr.mxu0 0.0
    %1053 = vmatpush1.msra.mxu0 %v775
    %1054 = vmatprep.subr.mxu0 0.0
    %1055 = vmatpush1.msra.mxu0 %v776
    %1056 = vmatprep.subr.mxu0 0.0
    %1057 = vmatpush1.msra.mxu0 %v777
    %1058 = vmatprep.subr.mxu0 0.0
    %1059 = vmatpush1.msra.mxu0 %v778
    %1060 = vmatprep.subr.mxu0 0.0
    %1061 = vmatpush1.msra.mxu0 %v779
    %1062 = vmatprep.subr.mxu0 0.0
    %1063 = vmatpush1.msra.mxu0 %v780
    %1064 = vmatprep.subr.mxu0 0.0
    %1065 = vmatpush1.msra.mxu0 %v781
    %1066 = vmatprep.subr.mxu0 0.0
    %1067 = vmatpush1.msra.mxu0 %v782
    %1068 = vmatprep.subr.mxu0 0.0
    %1069 = vmatpush1.msra.mxu0 %v783
    %1070 = vmatprep.subr.mxu0 0.0
    %1071 = vmatpush1.msra.mxu0 %v784
    %1072 = vmatprep.subr.mxu0 0.0
    %1073 = vmatpush1.msra.mxu0 %v785
    %1074 = vmatprep.subr.mxu0 0.0
    %1075 = vmatpush1.msra.mxu0 %v786
    %1076 = vmatprep.subr.mxu0 0.0
    %1077 = vmatpush1.msra.mxu0 %v787
    %1078 = vmatprep.subr.mxu0 0.0
    %1079 = vmatpush1.msra.mxu0 %v788
    %1080 = vmatprep.subr.mxu0 0.0
    %1081 = vmatpush1.msra.mxu0 %v789
    %1082 = vmatprep.subr.mxu0 0.0
    %1083 = vmatpush1.msra.mxu0 %v790
    %1084 = vmatprep.subr.mxu0 0.0
    %1085 = vmatpush1.msra.mxu0 %v791
    %1086 = vmatprep.subr.mxu0 0.0
    %1087 = vmatpush1.msra.mxu0 %v792
    %1088 = vmatprep.mubr.f32.mxu0 %v442
    %1089 = vmatmul.mubr.f32.gmra.mrb[0].mxu0 %v441
    %v1090 = vpop.f32.mrb[0].mxu0
    %v1091 = vadd.f32 %v921, %v1090
    %v1092 = vpop.f32.mrb[0].mxu0
    %1093 = vmatprep.mubr.f32.mxu0 %v452
    %1094 = vmatmul.mubr.f32.gmra.mrb[0].mxu0 %v451
    %v1095 = vpop.f32.mrb[0].mxu0
    %v1096 = vadd.f32 %v921, %v1095
    %v1097 = vpop.f32.mrb[0].mxu0
    %1098 = vmatprep.mubr.f32.mxu0 %v462
    %1099 = vmatmul.mubr.f32.gmra.mrb[0].mxu0 %v461
    %v1100 = vpop.f32.mrb[0].mxu0
    %v1101 = vadd.f32 %v921, %v1100
    %v1102 = vpop.f32.mrb[0].mxu0
    %1103 = vmatprep.mubr.f32.mxu0 %v472
    %1104 = vmatmul.mubr.f32.gmra.mrb[0].mxu0 %v471
    %v1105 = vpop.f32.mrb[0].mxu0
    %v1106 = vadd.f32 %v921, %v1105
    %v1107 = vpop.f32.mrb[0].mxu0
    %1108 = vmatprep.mubr.f32.mxu0 %v482
    %1109 = vmatmul.mubr.f32.gmra.mrb[0].mxu0 %v481
    %v1110 = vpop.f32.mrb[0].mxu0
    %v1111 = vadd.f32 %v921, %v1110
    %v1112 = vpop.f32.mrb[0].mxu0
    %1113 = vmatprep.mubr.f32.mxu0 %v492
    %1114 = vmatmul.mubr.f32.gmra.mrb[0].mxu0 %v491
    %v1115 = vpop.f32.mrb[0].mxu0
    %v1116 = vadd.f32 %v921, %v1115
    %v1117 = vpop.f32.mrb[0].mxu0
    %1118 = vmatprep.mubr.f32.mxu0 %v502
    %1119 = vmatmul.mubr.f32.gmra.mrb[0].mxu0 %v501
    %v1120 = vpop.f32.mrb[0].mxu0
    %v1121 = vadd.f32 %v921, %v1120
    %v1122 = vpop.f32.mrb[0].mxu0
    %1123 = vmatprep.mubr.f32.mxu0 %v512
    %1124 = vmatmul.mubr.f32.gmra.mrb[0].mxu0 %v511
    %v1125 = vpop.f32.mrb[0].mxu0
    %v1126 = vadd.f32 %v921, %v1125
    %v1127 = vpop.f32.mrb[0].mxu0
    %1128 = vmatprep.mubr.f32.mxu0 %v522
    %1129 = vmatmul.mubr.f32.gmra.mrb[0].mxu0 %v521
    %v1130 = vpop.f32.mrb[0].mxu0
    %v1131 = vadd.f32 %v921, %v1130
    %v1132 = vpop.f32.mrb[0].mxu0
    %1133 = vmatprep.mubr.f32.mxu0 %v532
    %1134 = vmatmul.mubr.f32.gmra.mrb[0].mxu0 %v531
    %v1135 = vpop.f32.mrb[0].mxu0
    %v1136 = vadd.f32 %v921, %v1135
    %v1137 = vpop.f32.mrb[0].mxu0
    %1138 = vmatprep.mubr.f32.mxu0 %v542
    %1139 = vmatmul.mubr.f32.gmra.mrb[0].mxu0 %v541
    %v1140 = vpop.f32.mrb[0].mxu0
    %v1141 = vadd.f32 %v921, %v1140
    %v1142 = vpop.f32.mrb[0].mxu0
    %1143 = vmatprep.mubr.f32.mxu0 %v552
    %1144 = vmatmul.mubr.f32.gmra.mrb[0].mxu0 %v551
    %v1145 = vpop.f32.mrb[0].mxu0
    %v1146 = vadd.f32 %v921, %v1145
    %v1147 = vpop.f32.mrb[0].mxu0
    %1148 = vmatprep.mubr.f32.mxu0 %v562
    %1149 = vmatmul.mubr.f32.gmra.mrb[0].mxu0 %v561
    %v1150 = vpop.f32.mrb[0].mxu0
    %v1151 = vadd.f32 %v921, %v1150
    %v1152 = vpop.f32.mrb[0].mxu0
    %1153 = vmatprep.mubr.f32.mxu0 %v572
    %1154 = vmatmul.mubr.f32.gmra.mrb[0].mxu0 %v571
    %v1155 = vpop.f32.mrb[0].mxu0
    %v1156 = vadd.f32 %v921, %v1155
    %v1157 = vpop.f32.mrb[0].mxu0
    %1158 = vmatprep.mubr.f32.mxu0 %v582
    %1159 = vmatmul.mubr.f32.gmra.mrb[0].mxu0 %v581
    %v1160 = vpop.f32.mrb[0].mxu0
    %v1161 = vadd.f32 %v921, %v1160
    %v1162 = vpop.f32.mrb[0].mxu0
    %1163 = vmatprep.mubr.f32.mxu0 %v592
    %1164 = vmatmul.mubr.f32.gmra.mrb[0].mxu0 %v591
    %v1165 = vpop.f32.mrb[0].mxu0
    %v1166 = vadd.f32 %v921, %v1165
    %v1167 = vpop.f32.mrb[0].mxu0
    %1168 = vmatprep.mubr.f32.mxu0 %v602
    %1169 = vmatmul.mubr.f32.gmra.mrb[0].mxu0 %v601
    %v1170 = vpop.f32.mrb[0].mxu0
    %v1171 = vadd.f32 %v921, %v1170
    %v1172 = vpop.f32.mrb[0].mxu0
    %1173 = vmatprep.mubr.f32.mxu0 %v612
    %1174 = vmatmul.mubr.f32.gmra.mrb[0].mxu0 %v611
    %v1175 = vpop.f32.mrb[0].mxu0
    %v1176 = vadd.f32 %v921, %v1175
    %v1177 = vpop.f32.mrb[0].mxu0
    %1178 = vmatprep.mubr.f32.mxu0 %v622
    %1179 = vmatmul.mubr.f32.gmra.mrb[0].mxu0 %v621
    %v1180 = vpop.f32.mrb[0].mxu0
    %v1181 = vadd.f32 %v921, %v1180
    %v1182 = vpop.f32.mrb[0].mxu0
    %1183 = vmatprep.mubr.f32.mxu0 %v632
    %1184 = vmatmul.mubr.f32.gmra.mrb[0].mxu0 %v631
    %v1185 = vpop.f32.mrb[0].mxu0
    %v1186 = vadd.f32 %v921, %v1185
    %v1187 = vpop.f32.mrb[0].mxu0
    %1188 = vmatprep.mubr.f32.mxu0 %v642
    %1189 = vmatmul.mubr.f32.gmra.mrb[0].mxu0 %v641
    %v1190 = vpop.f32.mrb[0].mxu0
    %v1191 = vadd.f32 %v921, %v1190
    %v1192 = vpop.f32.mrb[0].mxu0
    %1193 = vmatprep.mubr.f32.mxu0 %v652
    %1194 = vmatmul.mubr.f32.gmra.mrb[0].mxu0 %v651
    %v1195 = vpop.f32.mrb[0].mxu0
    %v1196 = vadd.f32 %v921, %v1195
    %v1197 = vpop.f32.mrb[0].mxu0
    %1198 = vmatprep.mubr.f32.mxu0 %v662
    %1199 = vmatmul.mubr.f32.gmra.mrb[0].mxu0 %v661
    %v1200 = vpop.f32.mrb[0].mxu0
    %v1201 = vadd.f32 %v921, %v1200
    %v1202 = vpop.f32.mrb[0].mxu0
    %1203 = vmatprep.mubr.f32.mxu0 %v672
    %1204 = vmatmul.mubr.f32.gmra.mrb[0].mxu0 %v671
    %v1205 = vpop.f32.mrb[0].mxu0
    %v1206 = vadd.f32 %v921, %v1205
    %v1207 = vpop.f32.mrb[0].mxu0
    %1208 = vmatprep.mubr.f32.mxu0 %v682
    %1209 = vmatmul.mubr.f32.gmra.mrb[0].mxu0 %v681
    %v1210 = vpop.f32.mrb[0].mxu0
    %v1211 = vadd.f32 %v921, %v1210
    %v1212 = vpop.f32.mrb[0].mxu0
    %1213 = vmatprep.mubr.f32.mxu0 %v692
    %1214 = vmatmul.mubr.f32.gmra.mrb[0].mxu0 %v691
    %v1215 = vpop.f32.mrb[0].mxu0
    %v1216 = vadd.f32 %v921, %v1215
    %v1217 = vpop.f32.mrb[0].mxu0
    %1218 = vmatprep.mubr.f32.mxu0 %v702
    %1219 = vmatmul.mubr.f32.gmra.mrb[0].mxu0 %v701
    %v1220 = vpop.f32.mrb[0].mxu0
    %v1221 = vadd.f32 %v921, %v1220
    %v1222 = vpop.f32.mrb[0].mxu0
    %1223 = vmatprep.mubr.f32.mxu0 %v712
    %1224 = vmatmul.mubr.f32.gmra.mrb[0].mxu0 %v711
    %v1225 = vpop.f32.mrb[0].mxu0
    %v1226 = vadd.f32 %v921, %v1225
    %v1227 = vpop.f32.mrb[0].mxu0
    %1228 = vmatprep.mubr.f32.mxu0 %v722
    %1229 = vmatmul.mubr.f32.gmra.mrb[0].mxu0 %v721
    %v1230 = vpop.f32.mrb[0].mxu0
    %v1231 = vadd.f32 %v921, %v1230
    %v1232 = vpop.f32.mrb[0].mxu0
    %1233 = vmatprep.mubr.f32.mxu0 %v732
    %1234 = vmatmul.mubr.f32.gmra.mrb[0].mxu0 %v731
    %v1235 = vpop.f32.mrb[0].mxu0
    %v1236 = vadd.f32 %v921, %v1235
    %v1237 = vpop.f32.mrb[0].mxu0
    %1238 = vmatprep.mubr.f32.mxu0 %v742
    %1239 = vmatmul.mubr.f32.gmra.mrb[0].mxu0 %v741
    %v1240 = vpop.f32.mrb[0].mxu0
    %v1241 = vadd.f32 %v921, %v1240
    %v1242 = vpop.f32.mrb[0].mxu0
    %1243 = vmatprep.mubr.f32.mxu0 %v752
    %1244 = vmatmul.mubr.f32.gmra.mrb[0].mxu0 %v751
    %v1245 = vpop.f32.mrb[0].mxu0
    %v1246 = vadd.f32 %v921, %v1245
    %v1247 = vpop.f32.mrb[0].mxu0
    %1248 = vdwg.mxu0
    %1249 = vmatprep.subr.mxu0 0.0
    %1250 = vmatpush1.msra.mxu0 %v793
    %1251 = vmatprep.subr.mxu0 0.0
    %1252 = vmatpush1.msra.mxu0 %v794
    %1253 = vmatprep.subr.mxu0 0.0
    %1254 = vmatpush1.msra.mxu0 %v795
    %1255 = vmatprep.subr.mxu0 0.0
    %1256 = vmatpush1.msra.mxu0 %v796
    %1257 = vmatprep.subr.mxu0 0.0
    %1258 = vmatpush1.msra.mxu0 %v797
    %1259 = vmatprep.subr.mxu0 0.0
    %1260 = vmatpush1.msra.mxu0 %v798
    %1261 = vmatprep.subr.mxu0 0.0
    %1262 = vmatpush1.msra.mxu0 %v799
    %1263 = vmatprep.subr.mxu0 0.0
    %1264 = vmatpush1.msra.mxu0 %v800
    %1265 = vmatprep.subr.mxu0 0.0
    %1266 = vmatpush1.msra.mxu0 %v801
    %1267 = vmatprep.subr.mxu0 0.0
    %1268 = vmatpush1.msra.mxu0 %v802
    %1269 = vmatprep.subr.mxu0 0.0
    %1270 = vmatpush1.msra.mxu0 %v803
    %1271 = vmatprep.subr.mxu0 0.0
    %1272 = vmatpush1.msra.mxu0 %v804
    %1273 = vmatprep.subr.mxu0 0.0
    %1274 = vmatpush1.msra.mxu0 %v805
    %1275 = vmatprep.subr.mxu0 0.0
    %1276 = vmatpush1.msra.mxu0 %v806
    %1277 = vmatprep.subr.mxu0 0.0
    %1278 = vmatpush1.msra.mxu0 %v807
    %1279 = vmatprep.subr.mxu0 0.0
    %1280 = vmatpush1.msra.mxu0 %v808
    %1281 = vmatprep.subr.mxu0 0.0
    %1282 = vmatpush1.msra.mxu0 %v809
    %1283 = vmatprep.subr.mxu0 0.0
    %1284 = vmatpush1.msra.mxu0 %v810
    %1285 = vmatprep.subr.mxu0 0.0
    %1286 = vmatpush1.msra.mxu0 %v811
    %1287 = vmatprep.subr.mxu0 0.0
    %1288 = vmatpush1.msra.mxu0 %v812
    %1289 = vmatprep.subr.mxu0 0.0
    %1290 = vmatpush1.msra.mxu0 %v813
    %1291 = vmatprep.subr.mxu0 0.0
    %1292 = vmatpush1.msra.mxu0 %v814
    %1293 = vmatprep.subr.mxu0 0.0
    %1294 = vmatpush1.msra.mxu0 %v815
    %1295 = vmatprep.subr.mxu0 0.0
    %1296 = vmatpush1.msra.mxu0 %v816
    %1297 = vmatprep.subr.mxu0 0.0
    %1298 = vmatpush1.msra.mxu0 %v817
    %1299 = vmatprep.subr.mxu0 0.0
    %1300 = vmatpush1.msra.mxu0 %v818
    %1301 = vmatprep.subr.mxu0 0.0
    %1302 = vmatpush1.msra.mxu0 %v819
    %1303 = vmatprep.subr.mxu0 0.0
    %1304 = vmatpush1.msra.mxu0 %v820
    %1305 = vmatprep.subr.mxu0 0.0
    %1306 = vmatpush1.msra.mxu0 %v821
    %1307 = vmatprep.subr.mxu0 0.0
    %1308 = vmatpush1.msra.mxu0 %v822
    %1309 = vmatprep.subr.mxu0 0.0
    %1310 = vmatpush1.msra.mxu0 %v823
    %1311 = vmatprep.subr.mxu0 0.0
    %1312 = vmatpush1.msra.mxu0 %v824
    %1313 = vmatprep.mubr.f32.mxu0 %v444
    %1314 = vmatmul.mubr.f32.gmra.mrb[0].mxu0 %v443
    %v1315 = vpop.f32.mrb[0].mxu0
    %v1316 = vadd.f32 %v1091, %v1315
    %v1317 = vpop.f32.mrb[0].mxu0
    %1318 = vmatprep.mubr.f32.mxu0 %v454
    %1319 = vmatmul.mubr.f32.gmra.mrb[0].mxu0 %v453
    %v1320 = vpop.f32.mrb[0].mxu0
    %v1321 = vadd.f32 %v1096, %v1320
    %v1322 = vpop.f32.mrb[0].mxu0
    %1323 = vmatprep.mubr.f32.mxu0 %v464
    %1324 = vmatmul.mubr.f32.gmra.mrb[0].mxu0 %v463
    %v1325 = vpop.f32.mrb[0].mxu0
    %v1326 = vadd.f32 %v1101, %v1325
    %v1327 = vpop.f32.mrb[0].mxu0
    %1328 = vmatprep.mubr.f32.mxu0 %v474
    %1329 = vmatmul.mubr.f32.gmra.mrb[0].mxu0 %v473
    %v1330 = vpop.f32.mrb[0].mxu0
    %v1331 = vadd.f32 %v1106, %v1330
    %v1332 = vpop.f32.mrb[0].mxu0
    %1333 = vmatprep.mubr.f32.mxu0 %v484
    %1334 = vmatmul.mubr.f32.gmra.mrb[0].mxu0 %v483
    %v1335 = vpop.f32.mrb[0].mxu0
    %v1336 = vadd.f32 %v1111, %v1335
    %v1337 = vpop.f32.mrb[0].mxu0
    %1338 = vmatprep.mubr.f32.mxu0 %v494
    %1339 = vmatmul.mubr.f32.gmra.mrb[0].mxu0 %v493
    %v1340 = vpop.f32.mrb[0].mxu0
    %v1341 = vadd.f32 %v1116, %v1340
    %v1342 = vpop.f32.mrb[0].mxu0
    %1343 = vmatprep.mubr.f32.mxu0 %v504
    %1344 = vmatmul.mubr.f32.gmra.mrb[0].mxu0 %v503
    %v1345 = vpop.f32.mrb[0].mxu0
    %v1346 = vadd.f32 %v1121, %v1345
    %v1347 = vpop.f32.mrb[0].mxu0
    %1348 = vmatprep.mubr.f32.mxu0 %v514
    %1349 = vmatmul.mubr.f32.gmra.mrb[0].mxu0 %v513
    %v1350 = vpop.f32.mrb[0].mxu0
    %v1351 = vadd.f32 %v1126, %v1350
    %v1352 = vpop.f32.mrb[0].mxu0
    %1353 = vmatprep.mubr.f32.mxu0 %v524
    %1354 = vmatmul.mubr.f32.gmra.mrb[0].mxu0 %v523
    %v1355 = vpop.f32.mrb[0].mxu0
    %v1356 = vadd.f32 %v1131, %v1355
    %v1357 = vpop.f32.mrb[0].mxu0
    %1358 = vmatprep.mubr.f32.mxu0 %v534
    %1359 = vmatmul.mubr.f32.gmra.mrb[0].mxu0 %v533
    %v1360 = vpop.f32.mrb[0].mxu0
    %v1361 = vadd.f32 %v1136, %v1360
    %v1362 = vpop.f32.mrb[0].mxu0
    %1363 = vmatprep.mubr.f32.mxu0 %v544
    %1364 = vmatmul.mubr.f32.gmra.mrb[0].mxu0 %v543
    %v1365 = vpop.f32.mrb[0].mxu0
    %v1366 = vadd.f32 %v1141, %v1365
    %v1367 = vpop.f32.mrb[0].mxu0
    %1368 = vmatprep.mubr.f32.mxu0 %v554
    %1369 = vmatmul.mubr.f32.gmra.mrb[0].mxu0 %v553
    %v1370 = vpop.f32.mrb[0].mxu0
    %v1371 = vadd.f32 %v1146, %v1370
    %v1372 = vpop.f32.mrb[0].mxu0
    %1373 = vmatprep.mubr.f32.mxu0 %v564
    %1374 = vmatmul.mubr.f32.gmra.mrb[0].mxu0 %v563
    %v1375 = vpop.f32.mrb[0].mxu0
    %v1376 = vadd.f32 %v1151, %v1375
    %v1377 = vpop.f32.mrb[0].mxu0
    %1378 = vmatprep.mubr.f32.mxu0 %v574
    %1379 = vmatmul.mubr.f32.gmra.mrb[0].mxu0 %v573
    %v1380 = vpop.f32.mrb[0].mxu0
    %v1381 = vadd.f32 %v1156, %v1380
    %v1382 = vpop.f32.mrb[0].mxu0
    %1383 = vmatprep.mubr.f32.mxu0 %v584
    %1384 = vmatmul.mubr.f32.gmra.mrb[0].mxu0 %v583
    %v1385 = vpop.f32.mrb[0].mxu0
    %v1386 = vadd.f32 %v1161, %v1385
    %v1387 = vpop.f32.mrb[0].mxu0
    %1388 = vmatprep.mubr.f32.mxu0 %v594
    %1389 = vmatmul.mubr.f32.gmra.mrb[0].mxu0 %v593
    %v1390 = vpop.f32.mrb[0].mxu0
    %v1391 = vadd.f32 %v1166, %v1390
    %v1392 = vpop.f32.mrb[0].mxu0
    %1393 = vmatprep.mubr.f32.mxu0 %v604
    %1394 = vmatmul.mubr.f32.gmra.mrb[0].mxu0 %v603
    %v1395 = vpop.f32.mrb[0].mxu0
    %v1396 = vadd.f32 %v1171, %v1395
    %v1397 = vpop.f32.mrb[0].mxu0
    %1398 = vmatprep.mubr.f32.mxu0 %v614
    %1399 = vmatmul.mubr.f32.gmra.mrb[0].mxu0 %v613
    %v1400 = vpop.f32.mrb[0].mxu0
    %v1401 = vadd.f32 %v1176, %v1400
    %v1402 = vpop.f32.mrb[0].mxu0
    %1403 = vmatprep.mubr.f32.mxu0 %v624
    %1404 = vmatmul.mubr.f32.gmra.mrb[0].mxu0 %v623
    %v1405 = vpop.f32.mrb[0].mxu0
    %v1406 = vadd.f32 %v1181, %v1405
    %v1407 = vpop.f32.mrb[0].mxu0
    %1408 = vmatprep.mubr.f32.mxu0 %v634
    %1409 = vmatmul.mubr.f32.gmra.mrb[0].mxu0 %v633
    %v1410 = vpop.f32.mrb[0].mxu0
    %v1411 = vadd.f32 %v1186, %v1410
    %v1412 = vpop.f32.mrb[0].mxu0
    %1413 = vmatprep.mubr.f32.mxu0 %v644
    %1414 = vmatmul.mubr.f32.gmra.mrb[0].mxu0 %v643
    %v1415 = vpop.f32.mrb[0].mxu0
    %v1416 = vadd.f32 %v1191, %v1415
    %v1417 = vpop.f32.mrb[0].mxu0
    %1418 = vmatprep.mubr.f32.mxu0 %v654
    %1419 = vmatmul.mubr.f32.gmra.mrb[0].mxu0 %v653
    %v1420 = vpop.f32.mrb[0].mxu0
    %v1421 = vadd.f32 %v1196, %v1420
    %v1422 = vpop.f32.mrb[0].mxu0
    %1423 = vmatprep.mubr.f32.mxu0 %v664
    %1424 = vmatmul.mubr.f32.gmra.mrb[0].mxu0 %v663
    %v1425 = vpop.f32.mrb[0].mxu0
    %v1426 = vadd.f32 %v1201, %v1425
    %v1427 = vpop.f32.mrb[0].mxu0
    %1428 = vmatprep.mubr.f32.mxu0 %v674
    %1429 = vmatmul.mubr.f32.gmra.mrb[0].mxu0 %v673
    %v1430 = vpop.f32.mrb[0].mxu0
    %v1431 = vadd.f32 %v1206, %v1430
    %v1432 = vpop.f32.mrb[0].mxu0
    %1433 = vmatprep.mubr.f32.mxu0 %v684
    %1434 = vmatmul.mubr.f32.gmra.mrb[0].mxu0 %v683
    %v1435 = vpop.f32.mrb[0].mxu0
    %v1436 = vadd.f32 %v1211, %v1435
    %v1437 = vpop.f32.mrb[0].mxu0
    %1438 = vmatprep.mubr.f32.mxu0 %v694
    %1439 = vmatmul.mubr.f32.gmra.mrb[0].mxu0 %v693
    %v1440 = vpop.f32.mrb[0].mxu0
    %v1441 = vadd.f32 %v1216, %v1440
    %v1442 = vpop.f32.mrb[0].mxu0
    %1443 = vmatprep.mubr.f32.mxu0 %v704
    %1444 = vmatmul.mubr.f32.gmra.mrb[0].mxu0 %v703
    %v1445 = vpop.f32.mrb[0].mxu0
    %v1446 = vadd.f32 %v1221, %v1445
    %v1447 = vpop.f32.mrb[0].mxu0
    %1448 = vmatprep.mubr.f32.mxu0 %v714
    %1449 = vmatmul.mubr.f32.gmra.mrb[0].mxu0 %v713
    %v1450 = vpop.f32.mrb[0].mxu0
    %v1451 = vadd.f32 %v1226, %v1450
    %v1452 = vpop.f32.mrb[0].mxu0
    %1453 = vmatprep.mubr.f32.mxu0 %v724
    %1454 = vmatmul.mubr.f32.gmra.mrb[0].mxu0 %v723
    %v1455 = vpop.f32.mrb[0].mxu0
    %v1456 = vadd.f32 %v1231, %v1455
    %v1457 = vpop.f32.mrb[0].mxu0
    %1458 = vmatprep.mubr.f32.mxu0 %v734
    %1459 = vmatmul.mubr.f32.gmra.mrb[0].mxu0 %v733
    %v1460 = vpop.f32.mrb[0].mxu0
    %v1461 = vadd.f32 %v1236, %v1460
    %v1462 = vpop.f32.mrb[0].mxu0
    %1463 = vmatprep.mubr.f32.mxu0 %v744
    %1464 = vmatmul.mubr.f32.gmra.mrb[0].mxu0 %v743
    %v1465 = vpop.f32.mrb[0].mxu0
    %v1466 = vadd.f32 %v1241, %v1465
    %v1467 = vpop.f32.mrb[0].mxu0
    %1468 = vmatprep.mubr.f32.mxu0 %v754
    %1469 = vmatmul.mubr.f32.gmra.mrb[0].mxu0 %v753
    %v1470 = vpop.f32.mrb[0].mxu0
    %v1471 = vadd.f32 %v1246, %v1470
    %v1472 = vpop.f32.mrb[0].mxu0
    %1473 = vdwg.mxu0
    %1474 = vmatprep.subr.mxu0 0.0
    %1475 = vmatpush1.msra.mxu0 %v825
    %1476 = vmatprep.subr.mxu0 0.0
    %1477 = vmatpush1.msra.mxu0 %v826
    %1478 = vmatprep.subr.mxu0 0.0
    %1479 = vmatpush1.msra.mxu0 %v827
    %1480 = vmatprep.subr.mxu0 0.0
    %1481 = vmatpush1.msra.mxu0 %v828
    %1482 = vmatprep.subr.mxu0 0.0
    %1483 = vmatpush1.msra.mxu0 %v829
    %1484 = vmatprep.subr.mxu0 0.0
    %1485 = vmatpush1.msra.mxu0 %v830
    %1486 = vmatprep.subr.mxu0 0.0
    %1487 = vmatpush1.msra.mxu0 %v831
    %1488 = vmatprep.subr.mxu0 0.0
    %1489 = vmatpush1.msra.mxu0 %v832
    %1490 = vmatprep.subr.mxu0 0.0
    %1491 = vmatpush1.msra.mxu0 %v833
    %1492 = vmatprep.subr.mxu0 0.0
    %1493 = vmatpush1.msra.mxu0 %v834
    %1494 = vmatprep.subr.mxu0 0.0
    %1495 = vmatpush1.msra.mxu0 %v835
    %1496 = vmatprep.subr.mxu0 0.0
    %1497 = vmatpush1.msra.mxu0 %v836
    %1498 = vmatprep.subr.mxu0 0.0
    %1499 = vmatpush1.msra.mxu0 %v837
    %1500 = vmatprep.subr.mxu0 0.0
    %1501 = vmatpush1.msra.mxu0 %v838
    %1502 = vmatprep.subr.mxu0 0.0
    %1503 = vmatpush1.msra.mxu0 %v839
    %1504 = vmatprep.subr.mxu0 0.0
    %1505 = vmatpush1.msra.mxu0 %v840
    %1506 = vmatprep.subr.mxu0 0.0
    %1507 = vmatpush1.msra.mxu0 %v841
    %1508 = vmatprep.subr.mxu0 0.0
    %1509 = vmatpush1.msra.mxu0 %v842
    %1510 = vmatprep.subr.mxu0 0.0
    %1511 = vmatpush1.msra.mxu0 %v843
    %1512 = vmatprep.subr.mxu0 0.0
    %1513 = vmatpush1.msra.mxu0 %v844
    %1514 = vmatprep.subr.mxu0 0.0
    %1515 = vmatpush1.msra.mxu0 %v845
    %1516 = vmatprep.subr.mxu0 0.0
    %1517 = vmatpush1.msra.mxu0 %v846
    %1518 = vmatprep.subr.mxu0 0.0
    %1519 = vmatpush1.msra.mxu0 %v847
    %1520 = vmatprep.subr.mxu0 0.0
    %1521 = vmatpush1.msra.mxu0 %v848
    %1522 = vmatprep.subr.mxu0 0.0
    %1523 = vmatpush1.msra.mxu0 %v849
    %1524 = vmatprep.subr.mxu0 0.0
    %1525 = vmatpush1.msra.mxu0 %v850
    %1526 = vmatprep.subr.mxu0 0.0
    %1527 = vmatpush1.msra.mxu0 %v851
    %1528 = vmatprep.subr.mxu0 0.0
    %1529 = vmatpush1.msra.mxu0 %v852
    %1530 = vmatprep.subr.mxu0 0.0
    %1531 = vmatpush1.msra.mxu0 %v853
    %1532 = vmatprep.subr.mxu0 0.0
    %1533 = vmatpush1.msra.mxu0 %v854
    %1534 = vmatprep.subr.mxu0 0.0
    %1535 = vmatpush1.msra.mxu0 %v855
    %1536 = vmatprep.subr.mxu0 0.0
    %1537 = vmatpush1.msra.mxu0 %v856
    %1538 = vmatprep.mubr.f32.mxu0 %v446
    %1539 = vmatmul.mubr.f32.gmra.mrb[0].mxu0 %v445
    %v1540 = vpop.f32.mrb[0].mxu0
    %v1541 = vadd.f32 %v1316, %v1540
    %v1542 = vpop.f32.mrb[0].mxu0
    %1543 = vmatprep.mubr.f32.mxu0 %v456
    %1544 = vmatmul.mubr.f32.gmra.mrb[0].mxu0 %v455
    %v1545 = vpop.f32.mrb[0].mxu0
    %v1546 = vadd.f32 %v1321, %v1545
    %v1547 = vpop.f32.mrb[0].mxu0
    %1548 = vmatprep.mubr.f32.mxu0 %v466
    %1549 = vmatmul.mubr.f32.gmra.mrb[0].mxu0 %v465
    %v1550 = vpop.f32.mrb[0].mxu0
    %v1551 = vadd.f32 %v1326, %v1550
    %v1552 = vpop.f32.mrb[0].mxu0
    %1553 = vmatprep.mubr.f32.mxu0 %v476
    %1554 = vmatmul.mubr.f32.gmra.mrb[0].mxu0 %v475
    %v1555 = vpop.f32.mrb[0].mxu0
    %v1556 = vadd.f32 %v1331, %v1555
    %v1557 = vpop.f32.mrb[0].mxu0
    %1558 = vmatprep.mubr.f32.mxu0 %v486
    %1559 = vmatmul.mubr.f32.gmra.mrb[0].mxu0 %v485
    %v1560 = vpop.f32.mrb[0].mxu0
    %v1561 = vadd.f32 %v1336, %v1560
    %v1562 = vpop.f32.mrb[0].mxu0
    %1563 = vmatprep.mubr.f32.mxu0 %v496
    %1564 = vmatmul.mubr.f32.gmra.mrb[0].mxu0 %v495
    %v1565 = vpop.f32.mrb[0].mxu0
    %v1566 = vadd.f32 %v1341, %v1565
    %v1567 = vpop.f32.mrb[0].mxu0
    %1568 = vmatprep.mubr.f32.mxu0 %v506
    %1569 = vmatmul.mubr.f32.gmra.mrb[0].mxu0 %v505
    %v1570 = vpop.f32.mrb[0].mxu0
    %v1571 = vadd.f32 %v1346, %v1570
    %v1572 = vpop.f32.mrb[0].mxu0
    %1573 = vmatprep.mubr.f32.mxu0 %v516
    %1574 = vmatmul.mubr.f32.gmra.mrb[0].mxu0 %v515
    %v1575 = vpop.f32.mrb[0].mxu0
    %v1576 = vadd.f32 %v1351, %v1575
    %v1577 = vpop.f32.mrb[0].mxu0
    %1578 = vmatprep.mubr.f32.mxu0 %v526
    %1579 = vmatmul.mubr.f32.gmra.mrb[0].mxu0 %v525
    %v1580 = vpop.f32.mrb[0].mxu0
    %v1581 = vadd.f32 %v1356, %v1580
    %v1582 = vpop.f32.mrb[0].mxu0
    %1583 = vmatprep.mubr.f32.mxu0 %v536
    %1584 = vmatmul.mubr.f32.gmra.mrb[0].mxu0 %v535
    %v1585 = vpop.f32.mrb[0].mxu0
    %v1586 = vadd.f32 %v1361, %v1585
    %v1587 = vpop.f32.mrb[0].mxu0
    %1588 = vmatprep.mubr.f32.mxu0 %v546
    %1589 = vmatmul.mubr.f32.gmra.mrb[0].mxu0 %v545
    %v1590 = vpop.f32.mrb[0].mxu0
    %v1591 = vadd.f32 %v1366, %v1590
    %v1592 = vpop.f32.mrb[0].mxu0
    %1593 = vmatprep.mubr.f32.mxu0 %v556
    %1594 = vmatmul.mubr.f32.gmra.mrb[0].mxu0 %v555
    %v1595 = vpop.f32.mrb[0].mxu0
    %v1596 = vadd.f32 %v1371, %v1595
    %v1597 = vpop.f32.mrb[0].mxu0
    %1598 = vmatprep.mubr.f32.mxu0 %v566
    %1599 = vmatmul.mubr.f32.gmra.mrb[0].mxu0 %v565
    %v1600 = vpop.f32.mrb[0].mxu0
    %v1601 = vadd.f32 %v1376, %v1600
    %v1602 = vpop.f32.mrb[0].mxu0
    %1603 = vmatprep.mubr.f32.mxu0 %v576
    %1604 = vmatmul.mubr.f32.gmra.mrb[0].mxu0 %v575
    %v1605 = vpop.f32.mrb[0].mxu0
    %v1606 = vadd.f32 %v1381, %v1605
    %v1607 = vpop.f32.mrb[0].mxu0
    %1608 = vmatprep.mubr.f32.mxu0 %v586
    %1609 = vmatmul.mubr.f32.gmra.mrb[0].mxu0 %v585
    %v1610 = vpop.f32.mrb[0].mxu0
    %v1611 = vadd.f32 %v1386, %v1610
    %v1612 = vpop.f32.mrb[0].mxu0
    %1613 = vmatprep.mubr.f32.mxu0 %v596
    %1614 = vmatmul.mubr.f32.gmra.mrb[0].mxu0 %v595
    %v1615 = vpop.f32.mrb[0].mxu0
    %v1616 = vadd.f32 %v1391, %v1615
    %v1617 = vpop.f32.mrb[0].mxu0
    %1618 = vmatprep.mubr.f32.mxu0 %v606
    %1619 = vmatmul.mubr.f32.gmra.mrb[0].mxu0 %v605
    %v1620 = vpop.f32.mrb[0].mxu0
    %v1621 = vadd.f32 %v1396, %v1620
    %v1622 = vpop.f32.mrb[0].mxu0
    %1623 = vmatprep.mubr.f32.mxu0 %v616
    %1624 = vmatmul.mubr.f32.gmra.mrb[0].mxu0 %v615
    %v1625 = vpop.f32.mrb[0].mxu0
    %v1626 = vadd.f32 %v1401, %v1625
    %v1627 = vpop.f32.mrb[0].mxu0
    %1628 = vmatprep.mubr.f32.mxu0 %v626
    %1629 = vmatmul.mubr.f32.gmra.mrb[0].mxu0 %v625
    %v1630 = vpop.f32.mrb[0].mxu0
    %v1631 = vadd.f32 %v1406, %v1630
    %v1632 = vpop.f32.mrb[0].mxu0
    %1633 = vmatprep.mubr.f32.mxu0 %v636
    %1634 = vmatmul.mubr.f32.gmra.mrb[0].mxu0 %v635
    %v1635 = vpop.f32.mrb[0].mxu0
    %v1636 = vadd.f32 %v1411, %v1635
    %v1637 = vpop.f32.mrb[0].mxu0
    %1638 = vmatprep.mubr.f32.mxu0 %v646
    %1639 = vmatmul.mubr.f32.gmra.mrb[0].mxu0 %v645
    %v1640 = vpop.f32.mrb[0].mxu0
    %v1641 = vadd.f32 %v1416, %v1640
    %v1642 = vpop.f32.mrb[0].mxu0
    %1643 = vmatprep.mubr.f32.mxu0 %v656
    %1644 = vmatmul.mubr.f32.gmra.mrb[0].mxu0 %v655
    %v1645 = vpop.f32.mrb[0].mxu0
    %v1646 = vadd.f32 %v1421, %v1645
    %v1647 = vpop.f32.mrb[0].mxu0
    %1648 = vmatprep.mubr.f32.mxu0 %v666
    %1649 = vmatmul.mubr.f32.gmra.mrb[0].mxu0 %v665
    %v1650 = vpop.f32.mrb[0].mxu0
    %v1651 = vadd.f32 %v1426, %v1650
    %v1652 = vpop.f32.mrb[0].mxu0
    %1653 = vmatprep.mubr.f32.mxu0 %v676
    %1654 = vmatmul.mubr.f32.gmra.mrb[0].mxu0 %v675
    %v1655 = vpop.f32.mrb[0].mxu0
    %v1656 = vadd.f32 %v1431, %v1655
    %v1657 = vpop.f32.mrb[0].mxu0
    %1658 = vmatprep.mubr.f32.mxu0 %v686
    %1659 = vmatmul.mubr.f32.gmra.mrb[0].mxu0 %v685
    %v1660 = vpop.f32.mrb[0].mxu0
    %v1661 = vadd.f32 %v1436, %v1660
    %v1662 = vpop.f32.mrb[0].mxu0
    %1663 = vmatprep.mubr.f32.mxu0 %v696
    %1664 = vmatmul.mubr.f32.gmra.mrb[0].mxu0 %v695
    %v1665 = vpop.f32.mrb[0].mxu0
    %v1666 = vadd.f32 %v1441, %v1665
    %v1667 = vpop.f32.mrb[0].mxu0
    %1668 = vmatprep.mubr.f32.mxu0 %v706
    %1669 = vmatmul.mubr.f32.gmra.mrb[0].mxu0 %v705
    %v1670 = vpop.f32.mrb[0].mxu0
    %v1671 = vadd.f32 %v1446, %v1670
    %v1672 = vpop.f32.mrb[0].mxu0
    %1673 = vmatprep.mubr.f32.mxu0 %v716
    %1674 = vmatmul.mubr.f32.gmra.mrb[0].mxu0 %v715
    %v1675 = vpop.f32.mrb[0].mxu0
    %v1676 = vadd.f32 %v1451, %v1675
    %v1677 = vpop.f32.mrb[0].mxu0
    %1678 = vmatprep.mubr.f32.mxu0 %v726
    %1679 = vmatmul.mubr.f32.gmra.mrb[0].mxu0 %v725
    %v1680 = vpop.f32.mrb[0].mxu0
    %v1681 = vadd.f32 %v1456, %v1680
    %v1682 = vpop.f32.mrb[0].mxu0
    %1683 = vmatprep.mubr.f32.mxu0 %v736
    %1684 = vmatmul.mubr.f32.gmra.mrb[0].mxu0 %v735
    %v1685 = vpop.f32.mrb[0].mxu0
    %v1686 = vadd.f32 %v1461, %v1685
    %v1687 = vpop.f32.mrb[0].mxu0
    %1688 = vmatprep.mubr.f32.mxu0 %v746
    %1689 = vmatmul.mubr.f32.gmra.mrb[0].mxu0 %v745
    %v1690 = vpop.f32.mrb[0].mxu0
    %v1691 = vadd.f32 %v1466, %v1690
    %v1692 = vpop.f32.mrb[0].mxu0
    %1693 = vmatprep.mubr.f32.mxu0 %v756
    %1694 = vmatmul.mubr.f32.gmra.mrb[0].mxu0 %v755
    %v1695 = vpop.f32.mrb[0].mxu0
    %v1696 = vadd.f32 %v1471, %v1695
    %v1697 = vpop.f32.mrb[0].mxu0
    %1698 = vdwg.mxu0
    %1699 = vmatprep.subr.mxu0 0.0
    %1700 = vmatpush1.msra.mxu0 %v857
    %1701 = vmatprep.subr.mxu0 0.0
    %1702 = vmatpush1.msra.mxu0 %v858
    %1703 = vmatprep.subr.mxu0 0.0
    %1704 = vmatpush1.msra.mxu0 %v859
    %1705 = vmatprep.subr.mxu0 0.0
    %1706 = vmatpush1.msra.mxu0 %v860
    %1707 = vmatprep.subr.mxu0 0.0
    %1708 = vmatpush1.msra.mxu0 %v861
    %1709 = vmatprep.subr.mxu0 0.0
    %1710 = vmatpush1.msra.mxu0 %v862
    %1711 = vmatprep.subr.mxu0 0.0
    %1712 = vmatpush1.msra.mxu0 %v863
    %1713 = vmatprep.subr.mxu0 0.0
    %1714 = vmatpush1.msra.mxu0 %v864
    %1715 = vmatprep.subr.mxu0 0.0
    %1716 = vmatpush1.msra.mxu0 %v865
    %1717 = vmatprep.subr.mxu0 0.0
    %1718 = vmatpush1.msra.mxu0 %v866
    %1719 = vmatprep.subr.mxu0 0.0
    %1720 = vmatpush1.msra.mxu0 %v867
    %1721 = vmatprep.subr.mxu0 0.0
    %1722 = vmatpush1.msra.mxu0 %v868
    %1723 = vmatprep.subr.mxu0 0.0
    %1724 = vmatpush1.msra.mxu0 %v869
    %1725 = vmatprep.subr.mxu0 0.0
    %1726 = vmatpush1.msra.mxu0 %v870
    %1727 = vmatprep.subr.mxu0 0.0
    %1728 = vmatpush1.msra.mxu0 %v871
    %1729 = vmatprep.subr.mxu0 0.0
    %1730 = vmatpush1.msra.mxu0 %v872
    %1731 = vmatprep.subr.mxu0 0.0
    %1732 = vmatpush1.msra.mxu0 %v873
    %1733 = vmatprep.subr.mxu0 0.0
    %1734 = vmatpush1.msra.mxu0 %v874
    %1735 = vmatprep.subr.mxu0 0.0
    %1736 = vmatpush1.msra.mxu0 %v875
    %1737 = vmatprep.subr.mxu0 0.0
    %1738 = vmatpush1.msra.mxu0 %v876
    %1739 = vmatprep.subr.mxu0 0.0
    %1740 = vmatpush1.msra.mxu0 %v877
    %1741 = vmatprep.subr.mxu0 0.0
    %1742 = vmatpush1.msra.mxu0 %v878
    %1743 = vmatprep.subr.mxu0 0.0
    %1744 = vmatpush1.msra.mxu0 %v879
    %1745 = vmatprep.subr.mxu0 0.0
    %1746 = vmatpush1.msra.mxu0 %v880
    %1747 = vmatprep.subr.mxu0 0.0
    %1748 = vmatpush1.msra.mxu0 %v881
    %1749 = vmatprep.subr.mxu0 0.0
    %1750 = vmatpush1.msra.mxu0 %v882
    %1751 = vmatprep.subr.mxu0 0.0
    %1752 = vmatpush1.msra.mxu0 %v883
    %1753 = vmatprep.subr.mxu0 0.0
    %1754 = vmatpush1.msra.mxu0 %v884
    %1755 = vmatprep.subr.mxu0 0.0
    %1756 = vmatpush1.msra.mxu0 %v885
    %1757 = vmatprep.subr.mxu0 0.0
    %1758 = vmatpush1.msra.mxu0 %v886
    %1759 = vmatprep.subr.mxu0 0.0
    %1760 = vmatpush1.msra.mxu0 %v887
    %1761 = vmatprep.subr.mxu0 0.0
    %1762 = vmatpush1.msra.mxu0 %v888
    %1763 = vmatprep.mubr.f32.mxu0 %v448
    %1764 = vmatmul.mubr.f32.gmra.mrb[0].mxu0 %v447
    %v1765 = vpop.f32.mrb[0].mxu0
    %v1766 = vadd.f32 %v1541, %v1765
    %v1767 = vpop.f32.mrb[0].mxu0
    %1768 = vmatprep.mubr.f32.mxu0 %v458
    %1769 = vmatmul.mubr.f32.gmra.mrb[0].mxu0 %v457
    %v1770 = vpop.f32.mrb[0].mxu0
    %v1771 = vadd.f32 %v1546, %v1770
    %v1772 = vpop.f32.mrb[0].mxu0
    %1773 = vmatprep.mubr.f32.mxu0 %v468
    %1774 = vmatmul.mubr.f32.gmra.mrb[0].mxu0 %v467
    %v1775 = vpop.f32.mrb[0].mxu0
    %v1776 = vadd.f32 %v1551, %v1775
    %v1777 = vpop.f32.mrb[0].mxu0
    %1778 = vmatprep.mubr.f32.mxu0 %v478
    %1779 = vmatmul.mubr.f32.gmra.mrb[0].mxu0 %v477
    %v1780 = vpop.f32.mrb[0].mxu0
    %v1781 = vadd.f32 %v1556, %v1780
    %v1782 = vpop.f32.mrb[0].mxu0
    %1783 = vmatprep.mubr.f32.mxu0 %v488
    %1784 = vmatmul.mubr.f32.gmra.mrb[0].mxu0 %v487
    %v1785 = vpop.f32.mrb[0].mxu0
    %v1786 = vadd.f32 %v1561, %v1785
    %v1787 = vpop.f32.mrb[0].mxu0
    %1788 = vmatprep.mubr.f32.mxu0 %v498
    %1789 = vmatmul.mubr.f32.gmra.mrb[0].mxu0 %v497
    %v1790 = vpop.f32.mrb[0].mxu0
    %v1791 = vadd.f32 %v1566, %v1790
    %v1792 = vpop.f32.mrb[0].mxu0
    %1793 = vmatprep.mubr.f32.mxu0 %v508
    %1794 = vmatmul.mubr.f32.gmra.mrb[0].mxu0 %v507
    %v1795 = vpop.f32.mrb[0].mxu0
    %v1796 = vadd.f32 %v1571, %v1795
    %v1797 = vpop.f32.mrb[0].mxu0
    %1798 = vmatprep.mubr.f32.mxu0 %v518
    %1799 = vmatmul.mubr.f32.gmra.mrb[0].mxu0 %v517
    %v1800 = vpop.f32.mrb[0].mxu0
    %v1801 = vadd.f32 %v1576, %v1800
    %v1802 = vpop.f32.mrb[0].mxu0
    %1803 = vmatprep.mubr.f32.mxu0 %v528
    %1804 = vmatmul.mubr.f32.gmra.mrb[0].mxu0 %v527
    %v1805 = vpop.f32.mrb[0].mxu0
    %v1806 = vadd.f32 %v1581, %v1805
    %v1807 = vpop.f32.mrb[0].mxu0
    %1808 = vmatprep.mubr.f32.mxu0 %v538
    %1809 = vmatmul.mubr.f32.gmra.mrb[0].mxu0 %v537
    %v1810 = vpop.f32.mrb[0].mxu0
    %v1811 = vadd.f32 %v1586, %v1810
    %v1812 = vpop.f32.mrb[0].mxu0
    %1813 = vmatprep.mubr.f32.mxu0 %v548
    %1814 = vmatmul.mubr.f32.gmra.mrb[0].mxu0 %v547
    %v1815 = vpop.f32.mrb[0].mxu0
    %v1816 = vadd.f32 %v1591, %v1815
    %v1817 = vpop.f32.mrb[0].mxu0
    %1818 = vmatprep.mubr.f32.mxu0 %v558
    %1819 = vmatmul.mubr.f32.gmra.mrb[0].mxu0 %v557
    %v1820 = vpop.f32.mrb[0].mxu0
    %v1821 = vadd.f32 %v1596, %v1820
    %v1822 = vpop.f32.mrb[0].mxu0
    %1823 = vmatprep.mubr.f32.mxu0 %v568
    %1824 = vmatmul.mubr.f32.gmra.mrb[0].mxu0 %v567
    %v1825 = vpop.f32.mrb[0].mxu0
    %v1826 = vadd.f32 %v1601, %v1825
    %v1827 = vpop.f32.mrb[0].mxu0
    %1828 = vmatprep.mubr.f32.mxu0 %v578
    %1829 = vmatmul.mubr.f32.gmra.mrb[0].mxu0 %v577
    %v1830 = vpop.f32.mrb[0].mxu0
    %v1831 = vadd.f32 %v1606, %v1830
    %v1832 = vpop.f32.mrb[0].mxu0
    %1833 = vmatprep.mubr.f32.mxu0 %v588
    %1834 = vmatmul.mubr.f32.gmra.mrb[0].mxu0 %v587
    %v1835 = vpop.f32.mrb[0].mxu0
    %v1836 = vadd.f32 %v1611, %v1835
    %v1837 = vpop.f32.mrb[0].mxu0
    %1838 = vmatprep.mubr.f32.mxu0 %v598
    %1839 = vmatmul.mubr.f32.gmra.mrb[0].mxu0 %v597
    %v1840 = vpop.f32.mrb[0].mxu0
    %v1841 = vadd.f32 %v1616, %v1840
    %v1842 = vpop.f32.mrb[0].mxu0
    %1843 = vmatprep.mubr.f32.mxu0 %v608
    %1844 = vmatmul.mubr.f32.gmra.mrb[0].mxu0 %v607
    %v1845 = vpop.f32.mrb[0].mxu0
    %v1846 = vadd.f32 %v1621, %v1845
    %v1847 = vpop.f32.mrb[0].mxu0
    %1848 = vmatprep.mubr.f32.mxu0 %v618
    %1849 = vmatmul.mubr.f32.gmra.mrb[0].mxu0 %v617
    %v1850 = vpop.f32.mrb[0].mxu0
    %v1851 = vadd.f32 %v1626, %v1850
    %v1852 = vpop.f32.mrb[0].mxu0
    %1853 = vmatprep.mubr.f32.mxu0 %v628
    %1854 = vmatmul.mubr.f32.gmra.mrb[0].mxu0 %v627
    %v1855 = vpop.f32.mrb[0].mxu0
    %v1856 = vadd.f32 %v1631, %v1855
    %v1857 = vpop.f32.mrb[0].mxu0
    %1858 = vmatprep.mubr.f32.mxu0 %v638
    %1859 = vmatmul.mubr.f32.gmra.mrb[0].mxu0 %v637
    %v1860 = vpop.f32.mrb[0].mxu0
    %v1861 = vadd.f32 %v1636, %v1860
    %v1862 = vpop.f32.mrb[0].mxu0
    %1863 = vmatprep.mubr.f32.mxu0 %v648
    %1864 = vmatmul.mubr.f32.gmra.mrb[0].mxu0 %v647
    %v1865 = vpop.f32.mrb[0].mxu0
    %v1866 = vadd.f32 %v1641, %v1865
    %v1867 = vpop.f32.mrb[0].mxu0
    %1868 = vmatprep.mubr.f32.mxu0 %v658
    %1869 = vmatmul.mubr.f32.gmra.mrb[0].mxu0 %v657
    %v1870 = vpop.f32.mrb[0].mxu0
    %v1871 = vadd.f32 %v1646, %v1870
    %v1872 = vpop.f32.mrb[0].mxu0
    %1873 = vmatprep.mubr.f32.mxu0 %v668
    %1874 = vmatmul.mubr.f32.gmra.mrb[0].mxu0 %v667
    %v1875 = vpop.f32.mrb[0].mxu0
    %v1876 = vadd.f32 %v1651, %v1875
    %v1877 = vpop.f32.mrb[0].mxu0
    %1878 = vmatprep.mubr.f32.mxu0 %v678
    %1879 = vmatmul.mubr.f32.gmra.mrb[0].mxu0 %v677
    %v1880 = vpop.f32.mrb[0].mxu0
    %v1881 = vadd.f32 %v1656, %v1880
    %v1882 = vpop.f32.mrb[0].mxu0
    %1883 = vmatprep.mubr.f32.mxu0 %v688
    %1884 = vmatmul.mubr.f32.gmra.mrb[0].mxu0 %v687
    %v1885 = vpop.f32.mrb[0].mxu0
    %v1886 = vadd.f32 %v1661, %v1885
    %v1887 = vpop.f32.mrb[0].mxu0
    %1888 = vmatprep.mubr.f32.mxu0 %v698
    %1889 = vmatmul.mubr.f32.gmra.mrb[0].mxu0 %v697
    %v1890 = vpop.f32.mrb[0].mxu0
    %v1891 = vadd.f32 %v1666, %v1890
    %v1892 = vpop.f32.mrb[0].mxu0
    %1893 = vmatprep.mubr.f32.mxu0 %v708
    %1894 = vmatmul.mubr.f32.gmra.mrb[0].mxu0 %v707
    %v1895 = vpop.f32.mrb[0].mxu0
    %v1896 = vadd.f32 %v1671, %v1895
    %v1897 = vpop.f32.mrb[0].mxu0
    %1898 = vmatprep.mubr.f32.mxu0 %v718
    %1899 = vmatmul.mubr.f32.gmra.mrb[0].mxu0 %v717
    %v1900 = vpop.f32.mrb[0].mxu0
    %v1901 = vadd.f32 %v1676, %v1900
    %v1902 = vpop.f32.mrb[0].mxu0
    %1903 = vmatprep.mubr.f32.mxu0 %v728
    %1904 = vmatmul.mubr.f32.gmra.mrb[0].mxu0 %v727
    %v1905 = vpop.f32.mrb[0].mxu0
    %v1906 = vadd.f32 %v1681, %v1905
    %v1907 = vpop.f32.mrb[0].mxu0
    %1908 = vmatprep.mubr.f32.mxu0 %v738
    %1909 = vmatmul.mubr.f32.gmra.mrb[0].mxu0 %v737
    %v1910 = vpop.f32.mrb[0].mxu0
    %v1911 = vadd.f32 %v1686, %v1910
    %v1912 = vpop.f32.mrb[0].mxu0
    %1913 = vmatprep.mubr.f32.mxu0 %v748
    %1914 = vmatmul.mubr.f32.gmra.mrb[0].mxu0 %v747
    %v1915 = vpop.f32.mrb[0].mxu0
    %v1916 = vadd.f32 %v1691, %v1915
    %v1917 = vpop.f32.mrb[0].mxu0
    %1918 = vmatprep.mubr.f32.mxu0 %v758
    %1919 = vmatmul.mubr.f32.gmra.mrb[0].mxu0 %v757
    %v1920 = vpop.f32.mrb[0].mxu0
    %v1921 = vadd.f32 %v1696, %v1920
    %v1922 = vpop.f32.mrb[0].mxu0
    %1923 = vdwg.mxu0
    %1924 = vmatprep.subr.mxu0 0.0
    %1925 = vmatpush1.msra.mxu0 %v889
    %1926 = vmatprep.subr.mxu0 0.0
    %1927 = vmatpush1.msra.mxu0 %v890
    %1928 = vmatprep.subr.mxu0 0.0
    %1929 = vmatpush1.msra.mxu0 %v891
    %1930 = vmatprep.subr.mxu0 0.0
    %1931 = vmatpush1.msra.mxu0 %v892
    %1932 = vmatprep.subr.mxu0 0.0
    %1933 = vmatpush1.msra.mxu0 %v893
    %1934 = vmatprep.subr.mxu0 0.0
    %1935 = vmatpush1.msra.mxu0 %v894
    %1936 = vmatprep.subr.mxu0 0.0
    %1937 = vmatpush1.msra.mxu0 %v895
    %1938 = vmatprep.subr.mxu0 0.0
    %1939 = vmatpush1.msra.mxu0 %v896
    %1940 = vmatprep.subr.mxu0 0.0
    %1941 = vmatpush1.msra.mxu0 %v897
    %1942 = vmatprep.subr.mxu0 0.0
    %1943 = vmatpush1.msra.mxu0 %v898
    %1944 = vmatprep.subr.mxu0 0.0
    %1945 = vmatpush1.msra.mxu0 %v899
    %1946 = vmatprep.subr.mxu0 0.0
    %1947 = vmatpush1.msra.mxu0 %v900
    %1948 = vmatprep.subr.mxu0 0.0
    %1949 = vmatpush1.msra.mxu0 %v901
    %1950 = vmatprep.subr.mxu0 0.0
    %1951 = vmatpush1.msra.mxu0 %v902
    %1952 = vmatprep.subr.mxu0 0.0
    %1953 = vmatpush1.msra.mxu0 %v903
    %1954 = vmatprep.subr.mxu0 0.0
    %1955 = vmatpush1.msra.mxu0 %v904
    %1956 = vmatprep.subr.mxu0 0.0
    %1957 = vmatpush1.msra.mxu0 %v905
    %1958 = vmatprep.subr.mxu0 0.0
    %1959 = vmatpush1.msra.mxu0 %v906
    %1960 = vmatprep.subr.mxu0 0.0
    %1961 = vmatpush1.msra.mxu0 %v907
    %1962 = vmatprep.subr.mxu0 0.0
    %1963 = vmatpush1.msra.mxu0 %v908
    %1964 = vmatprep.subr.mxu0 0.0
    %1965 = vmatpush1.msra.mxu0 %v909
    %1966 = vmatprep.subr.mxu0 0.0
    %1967 = vmatpush1.msra.mxu0 %v910
    %1968 = vmatprep.subr.mxu0 0.0
    %1969 = vmatpush1.msra.mxu0 %v911
    %1970 = vmatprep.subr.mxu0 0.0
    %1971 = vmatpush1.msra.mxu0 %v912
    %1972 = vmatprep.subr.mxu0 0.0
    %1973 = vmatpush1.msra.mxu0 %v913
    %1974 = vmatprep.subr.mxu0 0.0
    %1975 = vmatpush1.msra.mxu0 %v914
    %1976 = vmatprep.subr.mxu0 0.0
    %1977 = vmatpush1.msra.mxu0 %v1022
    %1978 = vmatprep.subr.mxu0 0.0
    %1979 = vmatpush1.msra.mxu0 0.0
    %1980 = vmatprep.subr.mxu0 0.0
    %1981 = vmatpush1.msra.mxu0 0.0
    %1982 = vmatprep.subr.mxu0 0.0
    %1983 = vmatpush1.msra.mxu0 0.0
    %1984 = vmatprep.subr.mxu0 0.0
    %1985 = vmatpush1.msra.mxu0 0.0
    %1986 = vmatprep.subr.mxu0 0.0
    %1987 = vmatpush1.msra.mxu0 0.0
    %1988 = vmatprep.mubr.f32.mxu0 %v925
    %1989 = vmatmul.mubr.f32.gmra.mrb[0].mxu0 %v449
    %v1990 = vpop.f32.mrb[0].mxu0
    %v1991 = vadd.f32 %v1766, %v1990
    %v1992 = vpop.f32.mrb[0].mxu0
    %1993 = vmatprep.mubr.f32.mxu0 %v928
    %1994 = vmatmul.mubr.f32.gmra.mrb[0].mxu0 %v459
    %v1995 = vpop.f32.mrb[0].mxu0
    %v1996 = vadd.f32 %v1771, %v1995
    %v1997 = vpop.f32.mrb[0].mxu0
    %1998 = vmatprep.mubr.f32.mxu0 %v931
    %1999 = vmatmul.mubr.f32.gmra.mrb[0].mxu0 %v469
    %v2000 = vpop.f32.mrb[0].mxu0
    %v2001 = vadd.f32 %v1776, %v2000
    %v2002 = vpop.f32.mrb[0].mxu0
    %2003 = vmatprep.mubr.f32.mxu0 %v934
    %2004 = vmatmul.mubr.f32.gmra.mrb[0].mxu0 %v479
    %v2005 = vpop.f32.mrb[0].mxu0
    %v2006 = vadd.f32 %v1781, %v2005
    %v2007 = vpop.f32.mrb[0].mxu0
    %2008 = vmatprep.mubr.f32.mxu0 %v937
    %2009 = vmatmul.mubr.f32.gmra.mrb[0].mxu0 %v489
    %v2010 = vpop.f32.mrb[0].mxu0
    %v2011 = vadd.f32 %v1786, %v2010
    %v2012 = vpop.f32.mrb[0].mxu0
    %2013 = vmatprep.mubr.f32.mxu0 %v940
    %2014 = vmatmul.mubr.f32.gmra.mrb[0].mxu0 %v499
    %v2015 = vpop.f32.mrb[0].mxu0
    %v2016 = vadd.f32 %v1791, %v2015
    %v2017 = vpop.f32.mrb[0].mxu0
    %2018 = vmatprep.mubr.f32.mxu0 %v943
    %2019 = vmatmul.mubr.f32.gmra.mrb[0].mxu0 %v509
    %v2020 = vpop.f32.mrb[0].mxu0
    %v2021 = vadd.f32 %v1796, %v2020
    %v2022 = vpop.f32.mrb[0].mxu0
    %2023 = vmatprep.mubr.f32.mxu0 %v946
    %2024 = vmatmul.mubr.f32.gmra.mrb[0].mxu0 %v519
    %v2025 = vpop.f32.mrb[0].mxu0
    %v2026 = vadd.f32 %v1801, %v2025
    %v2027 = vpop.f32.mrb[0].mxu0
    %2028 = vmatprep.mubr.f32.mxu0 %v949
    %2029 = vmatmul.mubr.f32.gmra.mrb[0].mxu0 %v529
    %v2030 = vpop.f32.mrb[0].mxu0
    %v2031 = vadd.f32 %v1806, %v2030
    %v2032 = vpop.f32.mrb[0].mxu0
    %2033 = vmatprep.mubr.f32.mxu0 %v952
    %2034 = vmatmul.mubr.f32.gmra.mrb[0].mxu0 %v539
    %v2035 = vpop.f32.mrb[0].mxu0
    %v2036 = vadd.f32 %v1811, %v2035
    %v2037 = vpop.f32.mrb[0].mxu0
    %2038 = vmatprep.mubr.f32.mxu0 %v955
    %2039 = vmatmul.mubr.f32.gmra.mrb[0].mxu0 %v549
    %v2040 = vpop.f32.mrb[0].mxu0
    %v2041 = vadd.f32 %v1816, %v2040
    %v2042 = vpop.f32.mrb[0].mxu0
    %2043 = vmatprep.mubr.f32.mxu0 %v958
    %2044 = vmatmul.mubr.f32.gmra.mrb[0].mxu0 %v559
    %v2045 = vpop.f32.mrb[0].mxu0
    %v2046 = vadd.f32 %v1821, %v2045
    %v2047 = vpop.f32.mrb[0].mxu0
    %2048 = vmatprep.mubr.f32.mxu0 %v961
    %2049 = vmatmul.mubr.f32.gmra.mrb[0].mxu0 %v569
    %v2050 = vpop.f32.mrb[0].mxu0
    %v2051 = vadd.f32 %v1826, %v2050
    %v2052 = vpop.f32.mrb[0].mxu0
    %2053 = vmatprep.mubr.f32.mxu0 %v964
    %2054 = vmatmul.mubr.f32.gmra.mrb[0].mxu0 %v579
    %v2055 = vpop.f32.mrb[0].mxu0
    %v2056 = vadd.f32 %v1831, %v2055
    %v2057 = vpop.f32.mrb[0].mxu0
    %2058 = vmatprep.mubr.f32.mxu0 %v967
    %2059 = vmatmul.mubr.f32.gmra.mrb[0].mxu0 %v589
    %v2060 = vpop.f32.mrb[0].mxu0
    %v2061 = vadd.f32 %v1836, %v2060
    %v2062 = vpop.f32.mrb[0].mxu0
    %2063 = vmatprep.mubr.f32.mxu0 %v970
    %2064 = vmatmul.mubr.f32.gmra.mrb[0].mxu0 %v599
    %v2065 = vpop.f32.mrb[0].mxu0
    %v2066 = vadd.f32 %v1841, %v2065
    %v2067 = vpop.f32.mrb[0].mxu0
    %2068 = vmatprep.mubr.f32.mxu0 %v973
    %2069 = vmatmul.mubr.f32.gmra.mrb[0].mxu0 %v609
    %v2070 = vpop.f32.mrb[0].mxu0
    %v2071 = vadd.f32 %v1846, %v2070
    %v2072 = vpop.f32.mrb[0].mxu0
    %2073 = vmatprep.mubr.f32.mxu0 %v976
    %2074 = vmatmul.mubr.f32.gmra.mrb[0].mxu0 %v619
    %v2075 = vpop.f32.mrb[0].mxu0
    %v2076 = vadd.f32 %v1851, %v2075
    %v2077 = vpop.f32.mrb[0].mxu0
    %2078 = vmatprep.mubr.f32.mxu0 %v979
    %2079 = vmatmul.mubr.f32.gmra.mrb[0].mxu0 %v629
    %v2080 = vpop.f32.mrb[0].mxu0
    %v2081 = vadd.f32 %v1856, %v2080
    %v2082 = vpop.f32.mrb[0].mxu0
    %2083 = vmatprep.mubr.f32.mxu0 %v982
    %2084 = vmatmul.mubr.f32.gmra.mrb[0].mxu0 %v639
    %v2085 = vpop.f32.mrb[0].mxu0
    %v2086 = vadd.f32 %v1861, %v2085
    %v2087 = vpop.f32.mrb[0].mxu0
    %2088 = vmatprep.mubr.f32.mxu0 %v985
    %2089 = vmatmul.mubr.f32.gmra.mrb[0].mxu0 %v649
    %v2090 = vpop.f32.mrb[0].mxu0
    %v2091 = vadd.f32 %v1866, %v2090
    %v2092 = vpop.f32.mrb[0].mxu0
    %2093 = vmatprep.mubr.f32.mxu0 %v988
    %2094 = vmatmul.mubr.f32.gmra.mrb[0].mxu0 %v659
    %v2095 = vpop.f32.mrb[0].mxu0
    %v2096 = vadd.f32 %v1871, %v2095
    %v2097 = vpop.f32.mrb[0].mxu0
    %2098 = vmatprep.mubr.f32.mxu0 %v991
    %2099 = vmatmul.mubr.f32.gmra.mrb[0].mxu0 %v669
    %v2100 = vpop.f32.mrb[0].mxu0
    %v2101 = vadd.f32 %v1876, %v2100
    %v2102 = vpop.f32.mrb[0].mxu0
    %2103 = vmatprep.mubr.f32.mxu0 %v994
    %2104 = vmatmul.mubr.f32.gmra.mrb[0].mxu0 %v679
    %v2105 = vpop.f32.mrb[0].mxu0
    %v2106 = vadd.f32 %v1881, %v2105
    %v2107 = vpop.f32.mrb[0].mxu0
    %2108 = vmatprep.mubr.f32.mxu0 %v997
    %2109 = vmatmul.mubr.f32.gmra.mrb[0].mxu0 %v689
    %v2110 = vpop.f32.mrb[0].mxu0
    %v2111 = vadd.f32 %v1886, %v2110
    %v2112 = vpop.f32.mrb[0].mxu0
    %2113 = vmatprep.mubr.f32.mxu0 %v1000
    %2114 = vmatmul.mubr.f32.gmra.mrb[0].mxu0 %v699
    %v2115 = vpop.f32.mrb[0].mxu0
    %v2116 = vadd.f32 %v1891, %v2115
    %v2117 = vpop.f32.mrb[0].mxu0
    %2118 = vmatprep.mubr.f32.mxu0 %v1003
    %2119 = vmatmul.mubr.f32.gmra.mrb[0].mxu0 %v709
    %v2120 = vpop.f32.mrb[0].mxu0
    %v2121 = vadd.f32 %v1896, %v2120
    %v2122 = vpop.f32.mrb[0].mxu0
    %2123 = vmatprep.mubr.f32.mxu0 %v1006
    %2124 = vmatmul.mubr.f32.gmra.mrb[0].mxu0 %v719
    %v2125 = vpop.f32.mrb[0].mxu0
    %v2126 = vadd.f32 %v1901, %v2125
    %v2127 = vpop.f32.mrb[0].mxu0
    %2128 = vmatprep.mubr.f32.mxu0 %v1009
    %2129 = vmatmul.mubr.f32.gmra.mrb[0].mxu0 %v729
    %v2130 = vpop.f32.mrb[0].mxu0
    %v2131 = vadd.f32 %v1906, %v2130
    %v2132 = vpop.f32.mrb[0].mxu0
    %2133 = vmatprep.mubr.f32.mxu0 %v1012
    %2134 = vmatmul.mubr.f32.gmra.mrb[0].mxu0 %v739
    %v2135 = vpop.f32.mrb[0].mxu0
    %v2136 = vadd.f32 %v1911, %v2135
    %v2137 = vpop.f32.mrb[0].mxu0
    %2138 = vmatprep.mubr.f32.mxu0 %v1015
    %2139 = vmatmul.mubr.f32.gmra.mrb[0].mxu0 %v749
    %v2140 = vpop.f32.mrb[0].mxu0
    %v2141 = vadd.f32 %v1916, %v2140
    %v2142 = vpop.f32.mrb[0].mxu0
    %2143 = vmatprep.mubr.f32.mxu0 %v1018
    %2144 = vmatmul.mubr.f32.gmra.mrb[0].mxu0 %v759
    %v2145 = vpop.f32.mrb[0].mxu0
    %v2146 = vadd.f32 %v1921, %v2145
    %v2147 = vpop.f32.mrb[0].mxu0
    %2148 = vdwg.mxu0
    %v2149 = vmax.f32 %v1991, 0.0
    %v2150 = vmax.f32 %v1996, 0.0
    %v2151 = vmax.f32 %v2001, 0.0
    %v2152 = vmax.f32 %v2006, 0.0
    %v2153 = vmax.f32 %v2011, 0.0
    %v2154 = vmax.f32 %v2016, 0.0
    %v2155 = vmax.f32 %v2021, 0.0
    %v2156 = vmax.f32 %v2026, 0.0
    %v2157 = vmax.f32 %v2031, 0.0
    %v2158 = vmax.f32 %v2036, 0.0
    %v2159 = vmax.f32 %v2041, 0.0
    %v2160 = vmax.f32 %v2046, 0.0
    %v2161 = vmax.f32 %v2051, 0.0
    %v2162 = vmax.f32 %v2056, 0.0
    %v2163 = vmax.f32 %v2061, 0.0
    %v2164 = vmax.f32 %v2066, 0.0
    %v2165 = vmax.f32 %v2071, 0.0
    %v2166 = vmax.f32 %v2076, 0.0
    %v2167 = vmax.f32 %v2081, 0.0
    %v2168 = vmax.f32 %v2086, 0.0
    %v2169 = vmax.f32 %v2091, 0.0
    %v2170 = vmax.f32 %v2096, 0.0
    %v2171 = vmax.f32 %v2101, 0.0
    %v2172 = vmax.f32 %v2106, 0.0
    %v2173 = vmax.f32 %v2111, 0.0
    %v2174 = vmax.f32 %v2116, 0.0
    %v2175 = vmax.f32 %v2121, 0.0
    %v2176 = vmax.f32 %v2126, 0.0
    %v2177 = vmax.f32 %v2131, 0.0
    %v2178 = vmax.f32 %v2136, 0.0
    %v2179 = vmax.f32 %v2141, 0.0
    %v2180 = vmax.f32 %v2146, 0.0
    %v2181 = vld [vmem:[%s6] sm:$0xff]
    %v2182 = vld [vmem:[%s6 + $0x8] sm:$0xff]
    %v2183 = vld [vmem:[%s6 + $0x10] sm:$0xff]
    %v2184 = vld [vmem:[%s6 + $0x18] sm:$0xff]
    %v2185 = vld [vmem:[%s6 + $0x20] sm:$0xff]
    %v2186 = vld [vmem:[%s6 + $0x28] sm:$0xff]
    %v2187 = vld [vmem:[%s6 + $0x30] sm:$0xff]
    %v2188 = vld [vmem:[%s6 + $0x38] sm:$0xff]
    %v2189 = vld [vmem:[%s7] sm:$0x1]
    %v2191 = vlaneseq
    %v2192 = vshrl.u32 %v2191, 7
    %v2193 = vsub.s32 0, %v2192
    %v2194 = vrot.slane %v2189, %v2193
    %vm2196 = vcmask 523264
    %v2198 = vsel %vm2196, %v2149, 0
    %v2201 = vsel %vm2196, %v2150, 0
    %v2204 = vsel %vm2196, %v2151, 0
    %v2207 = vsel %vm2196, %v2152, 0
    %v2210 = vsel %vm2196, %v2153, 0
    %v2213 = vsel %vm2196, %v2154, 0
    %v2216 = vsel %vm2196, %v2155, 0
    %v2219 = vsel %vm2196, %v2156, 0
    %v2222 = vsel %vm2196, %v2157, 0
    %v2225 = vsel %vm2196, %v2158, 0
    %v2228 = vsel %vm2196, %v2159, 0
    %v2231 = vsel %vm2196, %v2160, 0
    %v2234 = vsel %vm2196, %v2161, 0
    %v2237 = vsel %vm2196, %v2162, 0
    %v2240 = vsel %vm2196, %v2163, 0
    %v2243 = vsel %vm2196, %v2164, 0
    %v2246 = vsel %vm2196, %v2165, 0
    %v2249 = vsel %vm2196, %v2166, 0
    %v2252 = vsel %vm2196, %v2167, 0
    %v2255 = vsel %vm2196, %v2168, 0
    %v2258 = vsel %vm2196, %v2169, 0
    %v2261 = vsel %vm2196, %v2170, 0
    %v2264 = vsel %vm2196, %v2171, 0
    %v2267 = vsel %vm2196, %v2172, 0
    %v2270 = vsel %vm2196, %v2173, 0
    %v2273 = vsel %vm2196, %v2174, 0
    %v2276 = vsel %vm2196, %v2175, 0
    %v2279 = vsel %vm2196, %v2176, 0
    %v2282 = vsel %vm2196, %v2177, 0
    %v2285 = vsel %vm2196, %v2178, 0
    %v2288 = vsel %vm2196, %v2179, 0
    %v2291 = vsel %vm2196, %v2180, 0
    %2293 = vmatprep.subr.mxu0 0.0
    %2294 = vmatpush1.msra.mxu0 %v2181
    %2295 = vmatprep.subr.mxu0 0.0
    %2296 = vmatpush1.msra.mxu0 %v2182
    %2297 = vmatprep.subr.mxu0 0.0
    %2298 = vmatpush1.msra.mxu0 %v2183
    %2299 = vmatprep.subr.mxu0 0.0
    %2300 = vmatpush1.msra.mxu0 %v2184
    %2301 = vmatprep.subr.mxu0 0.0
    %2302 = vmatpush1.msra.mxu0 %v2185
    %2303 = vmatprep.subr.mxu0 0.0
    %2304 = vmatpush1.msra.mxu0 %v2186
    %2305 = vmatprep.subr.mxu0 0.0
    %2306 = vmatpush1.msra.mxu0 %v2187
    %2307 = vmatprep.subr.mxu0 0.0
    %2308 = vmatpush1.msra.mxu0 %v2188
    %2309 = vmatprep.subr.mxu0 0.0
    %2310 = vmatpush1.msra.mxu0 0.0
    %2311 = vmatprep.subr.mxu0 0.0
    %2312 = vmatpush1.msra.mxu0 0.0
    %2313 = vmatprep.subr.mxu0 0.0
    %2314 = vmatpush1.msra.mxu0 0.0
    %2315 = vmatprep.subr.mxu0 0.0
    %2316 = vmatpush1.msra.mxu0 0.0
    %2317 = vmatprep.subr.mxu0 0.0
    %2318 = vmatpush1.msra.mxu0 0.0
    %2319 = vmatprep.subr.mxu0 0.0
    %2320 = vmatpush1.msra.mxu0 0.0
    %2321 = vmatprep.subr.mxu0 0.0
    %2322 = vmatpush1.msra.mxu0 0.0
    %2323 = vmatprep.subr.mxu0 0.0
    %2324 = vmatpush1.msra.mxu0 0.0
    %2325 = vmatprep.subr.mxu0 0.0
    %2326 = vmatpush1.msra.mxu0 0.0
    %2327 = vmatprep.subr.mxu0 0.0
    %2328 = vmatpush1.msra.mxu0 0.0
    %2329 = vmatprep.subr.mxu0 0.0
    %2330 = vmatpush1.msra.mxu0 0.0
    %2331 = vmatprep.subr.mxu0 0.0
    %2332 = vmatpush1.msra.mxu0 0.0
    %2333 = vmatprep.subr.mxu0 0.0
    %2334 = vmatpush1.msra.mxu0 0.0
    %2335 = vmatprep.subr.mxu0 0.0
    %2336 = vmatpush1.msra.mxu0 0.0
    %2337 = vmatprep.subr.mxu0 0.0
    %2338 = vmatpush1.msra.mxu0 0.0
    %2339 = vmatprep.subr.mxu0 0.0
    %2340 = vmatpush1.msra.mxu0 0.0
    %2341 = vmatprep.subr.mxu0 0.0
    %2342 = vmatpush1.msra.mxu0 0.0
    %2343 = vmatprep.subr.mxu0 0.0
    %2344 = vmatpush1.msra.mxu0 0.0
    %2345 = vmatprep.subr.mxu0 0.0
    %2346 = vmatpush1.msra.mxu0 0.0
    %2347 = vmatprep.subr.mxu0 0.0
    %2348 = vmatpush1.msra.mxu0 0.0
    %2349 = vmatprep.subr.mxu0 0.0
    %2350 = vmatpush1.msra.mxu0 0.0
    %2351 = vmatprep.subr.mxu0 0.0
    %2352 = vmatpush1.msra.mxu0 0.0
    %2353 = vmatprep.subr.mxu0 0.0
    %2354 = vmatpush1.msra.mxu0 0.0
    %2355 = vmatprep.subr.mxu0 0.0
    %2356 = vmatpush1.msra.mxu0 0.0
    %2357 = vmatprep.mubr.f32.mxu0 0.0
    %2358 = vmatmul.mubr.f32.gmra.mrb[0].mxu0 %v2198
    %v2359 = vpop.f32.mrb[0].mxu0
    %v2360 = vadd.f32 %v2194, %v2359
    %v2361 = vpop.f32.mrb[0].mxu0
    %2362 = vmatprep.mubr.f32.mxu0 0.0
    %2363 = vmatmul.mubr.f32.gmra.mrb[0].mxu0 %v2201
    %v2364 = vpop.f32.mrb[0].mxu0
    %v2365 = vadd.f32 %v2194, %v2364
    %v2366 = vpop.f32.mrb[0].mxu0
    %2367 = vmatprep.mubr.f32.mxu0 0.0
    %2368 = vmatmul.mubr.f32.gmra.mrb[0].mxu0 %v2204
    %v2369 = vpop.f32.mrb[0].mxu0
    %v2370 = vadd.f32 %v2194, %v2369
    %v2371 = vpop.f32.mrb[0].mxu0
    %2372 = vmatprep.mubr.f32.mxu0 0.0
    %2373 = vmatmul.mubr.f32.gmra.mrb[0].mxu0 %v2207
    %v2374 = vpop.f32.mrb[0].mxu0
    %v2375 = vadd.f32 %v2194, %v2374
    %v2376 = vpop.f32.mrb[0].mxu0
    %2377 = vmatprep.mubr.f32.mxu0 0.0
    %2378 = vmatmul.mubr.f32.gmra.mrb[0].mxu0 %v2210
    %v2379 = vpop.f32.mrb[0].mxu0
    %v2380 = vadd.f32 %v2194, %v2379
    %v2381 = vpop.f32.mrb[0].mxu0
    %2382 = vmatprep.mubr.f32.mxu0 0.0
    %2383 = vmatmul.mubr.f32.gmra.mrb[0].mxu0 %v2213
    %v2384 = vpop.f32.mrb[0].mxu0
    %v2385 = vadd.f32 %v2194, %v2384
    %v2386 = vpop.f32.mrb[0].mxu0
    %2387 = vmatprep.mubr.f32.mxu0 0.0
    %2388 = vmatmul.mubr.f32.gmra.mrb[0].mxu0 %v2216
    %v2389 = vpop.f32.mrb[0].mxu0
    %v2390 = vadd.f32 %v2194, %v2389
    %v2391 = vpop.f32.mrb[0].mxu0
    %2392 = vmatprep.mubr.f32.mxu0 0.0
    %2393 = vmatmul.mubr.f32.gmra.mrb[0].mxu0 %v2219
    %v2394 = vpop.f32.mrb[0].mxu0
    %v2395 = vadd.f32 %v2194, %v2394
    %v2396 = vpop.f32.mrb[0].mxu0
    %2397 = vmatprep.mubr.f32.mxu0 0.0
    %2398 = vmatmul.mubr.f32.gmra.mrb[0].mxu0 %v2222
    %v2399 = vpop.f32.mrb[0].mxu0
    %v2400 = vadd.f32 %v2194, %v2399
    %v2401 = vpop.f32.mrb[0].mxu0
    %2402 = vmatprep.mubr.f32.mxu0 0.0
    %2403 = vmatmul.mubr.f32.gmra.mrb[0].mxu0 %v2225
    %v2404 = vpop.f32.mrb[0].mxu0
    %v2405 = vadd.f32 %v2194, %v2404
    %v2406 = vpop.f32.mrb[0].mxu0
    %2407 = vmatprep.mubr.f32.mxu0 0.0
    %2408 = vmatmul.mubr.f32.gmra.mrb[0].mxu0 %v2228
    %v2409 = vpop.f32.mrb[0].mxu0
    %v2410 = vadd.f32 %v2194, %v2409
    %v2411 = vpop.f32.mrb[0].mxu0
    %2412 = vmatprep.mubr.f32.mxu0 0.0
    %2413 = vmatmul.mubr.f32.gmra.mrb[0].mxu0 %v2231
    %v2414 = vpop.f32.mrb[0].mxu0
    %v2415 = vadd.f32 %v2194, %v2414
    %v2416 = vpop.f32.mrb[0].mxu0
    %2417 = vmatprep.mubr.f32.mxu0 0.0
    %2418 = vmatmul.mubr.f32.gmra.mrb[0].mxu0 %v2234
    %v2419 = vpop.f32.mrb[0].mxu0
    %v2420 = vadd.f32 %v2194, %v2419
    %v2421 = vpop.f32.mrb[0].mxu0
    %2422 = vmatprep.mubr.f32.mxu0 0.0
    %2423 = vmatmul.mubr.f32.gmra.mrb[0].mxu0 %v2237
    %v2424 = vpop.f32.mrb[0].mxu0
    %v2425 = vadd.f32 %v2194, %v2424
    %v2426 = vpop.f32.mrb[0].mxu0
    %2427 = vmatprep.mubr.f32.mxu0 0.0
    %2428 = vmatmul.mubr.f32.gmra.mrb[0].mxu0 %v2240
    %v2429 = vpop.f32.mrb[0].mxu0
    %v2430 = vadd.f32 %v2194, %v2429
    %v2431 = vpop.f32.mrb[0].mxu0
    %2432 = vmatprep.mubr.f32.mxu0 0.0
    %2433 = vmatmul.mubr.f32.gmra.mrb[0].mxu0 %v2243
    %v2434 = vpop.f32.mrb[0].mxu0
    %v2435 = vadd.f32 %v2194, %v2434
    %v2436 = vpop.f32.mrb[0].mxu0
    %2437 = vmatprep.mubr.f32.mxu0 0.0
    %2438 = vmatmul.mubr.f32.gmra.mrb[0].mxu0 %v2246
    %v2439 = vpop.f32.mrb[0].mxu0
    %v2440 = vadd.f32 %v2194, %v2439
    %v2441 = vpop.f32.mrb[0].mxu0
    %2442 = vmatprep.mubr.f32.mxu0 0.0
    %2443 = vmatmul.mubr.f32.gmra.mrb[0].mxu0 %v2249
    %v2444 = vpop.f32.mrb[0].mxu0
    %v2445 = vadd.f32 %v2194, %v2444
    %v2446 = vpop.f32.mrb[0].mxu0
    %2447 = vmatprep.mubr.f32.mxu0 0.0
    %2448 = vmatmul.mubr.f32.gmra.mrb[0].mxu0 %v2252
    %v2449 = vpop.f32.mrb[0].mxu0
    %v2450 = vadd.f32 %v2194, %v2449
    %v2451 = vpop.f32.mrb[0].mxu0
    %2452 = vmatprep.mubr.f32.mxu0 0.0
    %2453 = vmatmul.mubr.f32.gmra.mrb[0].mxu0 %v2255
    %v2454 = vpop.f32.mrb[0].mxu0
    %v2455 = vadd.f32 %v2194, %v2454
    %v2456 = vpop.f32.mrb[0].mxu0
    %2457 = vmatprep.mubr.f32.mxu0 0.0
    %2458 = vmatmul.mubr.f32.gmra.mrb[0].mxu0 %v2258
    %v2459 = vpop.f32.mrb[0].mxu0
    %v2460 = vadd.f32 %v2194, %v2459
    %v2461 = vpop.f32.mrb[0].mxu0
    %2462 = vmatprep.mubr.f32.mxu0 0.0
    %2463 = vmatmul.mubr.f32.gmra.mrb[0].mxu0 %v2261
    %v2464 = vpop.f32.mrb[0].mxu0
    %v2465 = vadd.f32 %v2194, %v2464
    %v2466 = vpop.f32.mrb[0].mxu0
    %2467 = vmatprep.mubr.f32.mxu0 0.0
    %2468 = vmatmul.mubr.f32.gmra.mrb[0].mxu0 %v2264
    %v2469 = vpop.f32.mrb[0].mxu0
    %v2470 = vadd.f32 %v2194, %v2469
    %v2471 = vpop.f32.mrb[0].mxu0
    %2472 = vmatprep.mubr.f32.mxu0 0.0
    %2473 = vmatmul.mubr.f32.gmra.mrb[0].mxu0 %v2267
    %v2474 = vpop.f32.mrb[0].mxu0
    %v2475 = vadd.f32 %v2194, %v2474
    %v2476 = vpop.f32.mrb[0].mxu0
    %2477 = vmatprep.mubr.f32.mxu0 0.0
    %2478 = vmatmul.mubr.f32.gmra.mrb[0].mxu0 %v2270
    %v2479 = vpop.f32.mrb[0].mxu0
    %v2480 = vadd.f32 %v2194, %v2479
    %v2481 = vpop.f32.mrb[0].mxu0
    %2482 = vmatprep.mubr.f32.mxu0 0.0
    %2483 = vmatmul.mubr.f32.gmra.mrb[0].mxu0 %v2273
    %v2484 = vpop.f32.mrb[0].mxu0
    %v2485 = vadd.f32 %v2194, %v2484
    %v2486 = vpop.f32.mrb[0].mxu0
    %2487 = vmatprep.mubr.f32.mxu0 0.0
    %2488 = vmatmul.mubr.f32.gmra.mrb[0].mxu0 %v2276
    %v2489 = vpop.f32.mrb[0].mxu0
    %v2490 = vadd.f32 %v2194, %v2489
    %v2491 = vpop.f32.mrb[0].mxu0
    %2492 = vmatprep.mubr.f32.mxu0 0.0
    %2493 = vmatmul.mubr.f32.gmra.mrb[0].mxu0 %v2279
    %v2494 = vpop.f32.mrb[0].mxu0
    %v2495 = vadd.f32 %v2194, %v2494
    %v2496 = vpop.f32.mrb[0].mxu0
    %2497 = vmatprep.mubr.f32.mxu0 0.0
    %2498 = vmatmul.mubr.f32.gmra.mrb[0].mxu0 %v2282
    %v2499 = vpop.f32.mrb[0].mxu0
    %v2500 = vadd.f32 %v2194, %v2499
    %v2501 = vpop.f32.mrb[0].mxu0
    %2502 = vmatprep.mubr.f32.mxu0 0.0
    %2503 = vmatmul.mubr.f32.gmra.mrb[0].mxu0 %v2285
    %v2504 = vpop.f32.mrb[0].mxu0
    %v2505 = vadd.f32 %v2194, %v2504
    %v2506 = vpop.f32.mrb[0].mxu0
    %2507 = vmatprep.mubr.f32.mxu0 0.0
    %2508 = vmatmul.mubr.f32.gmra.mrb[0].mxu0 %v2288
    %v2509 = vpop.f32.mrb[0].mxu0
    %v2510 = vadd.f32 %v2194, %v2509
    %v2511 = vpop.f32.mrb[0].mxu0
    %2512 = vmatprep.mubr.f32.mxu0 0.0
    %2513 = vmatmul.mubr.f32.gmra.mrb[0].mxu0 %v2291
    %v2514 = vpop.f32.mrb[0].mxu0
    %v2515 = vadd.f32 %v2194, %v2514
    %v2516 = vpop.f32.mrb[0].mxu0
    %2517 = vdwg.mxu0
    %v2518 = vmax.f32 %v2360, 0.0
    %v2519 = vmax.f32 %v2365, 0.0
    %v2520 = vmax.f32 %v2370, 0.0
    %v2521 = vmax.f32 %v2375, 0.0
    %v2522 = vmax.f32 %v2380, 0.0
    %v2523 = vmax.f32 %v2385, 0.0
    %v2524 = vmax.f32 %v2390, 0.0
    %v2525 = vmax.f32 %v2395, 0.0
    %v2526 = vmax.f32 %v2400, 0.0
    %v2527 = vmax.f32 %v2405, 0.0
    %v2528 = vmax.f32 %v2410, 0.0
    %v2529 = vmax.f32 %v2415, 0.0
    %v2530 = vmax.f32 %v2420, 0.0
    %v2531 = vmax.f32 %v2425, 0.0
    %v2532 = vmax.f32 %v2430, 0.0
    %v2533 = vmax.f32 %v2435, 0.0
    %v2534 = vmax.f32 %v2440, 0.0
    %v2535 = vmax.f32 %v2445, 0.0
    %v2536 = vmax.f32 %v2450, 0.0
    %v2537 = vmax.f32 %v2455, 0.0
    %v2538 = vmax.f32 %v2460, 0.0
    %v2539 = vmax.f32 %v2465, 0.0
    %v2540 = vmax.f32 %v2470, 0.0
    %v2541 = vmax.f32 %v2475, 0.0
    %v2542 = vmax.f32 %v2480, 0.0
    %v2543 = vmax.f32 %v2485, 0.0
    %v2544 = vmax.f32 %v2490, 0.0
    %v2545 = vmax.f32 %v2495, 0.0
    %v2546 = vmax.f32 %v2500, 0.0
    %v2547 = vmax.f32 %v2505, 0.0
    %v2548 = vmax.f32 %v2510, 0.0
    %v2549 = vmax.f32 %v2515, 0.0
    %v2550 = vld [vmem:[%s8] sm:$0xff]
    %v2551 = vld [vmem:[%s8 + $0x8] sm:$0xff]
    %v2552 = vld [vmem:[%s8 + $0x10] sm:$0xff]
    %v2553 = vld [vmem:[%s9] sm:$0xff]
    %v2554 = vld [vmem:[%s9 + $0x8] sm:$0xff]
    %v2555 = vld [vmem:[%s9 + $0x10] sm:$0xff]
    %v2556 = vld [vmem:[%s9 + $0x18] sm:$0xff]
    %v2557 = vld [vmem:[%s9 + $0x20] sm:$0xff]
    %v2558 = vld [vmem:[%s9 + $0x28] sm:$0xff]
    %v2559 = vld [vmem:[%s9 + $0x30] sm:$0xff]
    %v2560 = vld [vmem:[%s9 + $0x38] sm:$0xff]
    %v2562 = vsel %vm2196, %v2518, 0
    %v2565 = vsel %vm2196, %v2519, 0
    %v2568 = vsel %vm2196, %v2520, 0
    %v2571 = vsel %vm2196, %v2521, 0
    %v2574 = vsel %vm2196, %v2522, 0
    %v2577 = vsel %vm2196, %v2523, 0
    %v2580 = vsel %vm2196, %v2524, 0
    %v2583 = vsel %vm2196, %v2525, 0
    %v2586 = vsel %vm2196, %v2526, 0
    %v2589 = vsel %vm2196, %v2527, 0
    %v2592 = vsel %vm2196, %v2528, 0
    %v2595 = vsel %vm2196, %v2529, 0
    %v2598 = vsel %vm2196, %v2530, 0
    %v2601 = vsel %vm2196, %v2531, 0
    %v2604 = vsel %vm2196, %v2532, 0
    %v2607 = vsel %vm2196, %v2533, 0
    %v2610 = vsel %vm2196, %v2534, 0
    %v2613 = vsel %vm2196, %v2535, 0
    %v2616 = vsel %vm2196, %v2536, 0
    %v2619 = vsel %vm2196, %v2537, 0
    %v2622 = vsel %vm2196, %v2538, 0
    %v2625 = vsel %vm2196, %v2539, 0
    %v2628 = vsel %vm2196, %v2540, 0
    %v2631 = vsel %vm2196, %v2541, 0
    %v2634 = vsel %vm2196, %v2542, 0
    %v2637 = vsel %vm2196, %v2543, 0
    %v2640 = vsel %vm2196, %v2544, 0
    %v2643 = vsel %vm2196, %v2545, 0
    %v2646 = vsel %vm2196, %v2546, 0
    %v2649 = vsel %vm2196, %v2547, 0
    %v2652 = vsel %vm2196, %v2548, 0
    %v2655 = vsel %vm2196, %v2549, 0
    %2657 = vmatprep.subr.mxu0 0.0
    %2658 = vmatpush1.msra.mxu0 %v2553
    %2659 = vmatprep.subr.mxu0 0.0
    %2660 = vmatpush1.msra.mxu0 %v2554
    %2661 = vmatprep.subr.mxu0 0.0
    %2662 = vmatpush1.msra.mxu0 %v2555
    %2663 = vmatprep.subr.mxu0 0.0
    %2664 = vmatpush1.msra.mxu0 %v2556
    %2665 = vmatprep.subr.mxu0 0.0
    %2666 = vmatpush1.msra.mxu0 %v2557
    %2667 = vmatprep.subr.mxu0 0.0
    %2668 = vmatpush1.msra.mxu0 %v2558
    %2669 = vmatprep.subr.mxu0 0.0
    %2670 = vmatpush1.msra.mxu0 %v2559
    %2671 = vmatprep.subr.mxu0 0.0
    %2672 = vmatpush1.msra.mxu0 %v2560
    %2673 = vmatprep.subr.mxu0 0.0
    %2674 = vmatpush1.msra.mxu0 0.0
    %2675 = vmatprep.subr.mxu0 0.0
    %2676 = vmatpush1.msra.mxu0 0.0
    %2677 = vmatprep.subr.mxu0 0.0
    %2678 = vmatpush1.msra.mxu0 0.0
    %2679 = vmatprep.subr.mxu0 0.0
    %2680 = vmatpush1.msra.mxu0 0.0
    %2681 = vmatprep.subr.mxu0 0.0
    %2682 = vmatpush1.msra.mxu0 0.0
    %2683 = vmatprep.subr.mxu0 0.0
    %2684 = vmatpush1.msra.mxu0 0.0
    %2685 = vmatprep.subr.mxu0 0.0
    %2686 = vmatpush1.msra.mxu0 0.0
    %2687 = vmatprep.subr.mxu0 0.0
    %2688 = vmatpush1.msra.mxu0 0.0
    %2689 = vmatprep.subr.mxu0 0.0
    %2690 = vmatpush1.msra.mxu0 0.0
    %2691 = vmatprep.subr.mxu0 0.0
    %2692 = vmatpush1.msra.mxu0 0.0
    %2693 = vmatprep.subr.mxu0 0.0
    %2694 = vmatpush1.msra.mxu0 0.0
    %2695 = vmatprep.subr.mxu0 0.0
    %2696 = vmatpush1.msra.mxu0 0.0
    %2697 = vmatprep.subr.mxu0 0.0
    %2698 = vmatpush1.msra.mxu0 0.0
    %2699 = vmatprep.subr.mxu0 0.0
    %2700 = vmatpush1.msra.mxu0 0.0
    %2701 = vmatprep.subr.mxu0 0.0
    %2702 = vmatpush1.msra.mxu0 0.0
    %2703 = vmatprep.subr.mxu0 0.0
    %2704 = vmatpush1.msra.mxu0 0.0
    %2705 = vmatprep.subr.mxu0 0.0
    %2706 = vmatpush1.msra.mxu0 0.0
    %2707 = vmatprep.subr.mxu0 0.0
    %2708 = vmatpush1.msra.mxu0 0.0
    %2709 = vmatprep.subr.mxu0 0.0
    %2710 = vmatpush1.msra.mxu0 0.0
    %2711 = vmatprep.subr.mxu0 0.0
    %2712 = vmatpush1.msra.mxu0 0.0
    %2713 = vmatprep.subr.mxu0 0.0
    %2714 = vmatpush1.msra.mxu0 0.0
    %2715 = vmatprep.subr.mxu0 0.0
    %2716 = vmatpush1.msra.mxu0 0.0
    %2717 = vmatprep.subr.mxu0 0.0
    %2718 = vmatpush1.msra.mxu0 0.0
    %2719 = vmatprep.subr.mxu0 0.0
    %2720 = vmatpush1.msra.mxu0 0.0
    %2721 = vmatprep.mubr.f32.mxu0 0.0
    %2722 = vmatmul.mubr.f32.gmra.mrb[0].mxu0 %v2562
    %v2723 = vpop.f32.mrb[0].mxu0
    %v2724 = vadd.f32 0.0, %v2723
    %v2725 = vpop.f32.mrb[0].mxu0
    %2726 = vmatprep.mubr.f32.mxu0 0.0
    %2727 = vmatmul.mubr.f32.gmra.mrb[0].mxu0 %v2565
    %v2728 = vpop.f32.mrb[0].mxu0
    %v2729 = vadd.f32 0.0, %v2728
    %v2730 = vpop.f32.mrb[0].mxu0
    %2731 = vmatprep.mubr.f32.mxu0 0.0
    %2732 = vmatmul.mubr.f32.gmra.mrb[0].mxu0 %v2568
    %v2733 = vpop.f32.mrb[0].mxu0
    %v2734 = vadd.f32 0.0, %v2733
    %v2735 = vpop.f32.mrb[0].mxu0
    %2736 = vmatprep.mubr.f32.mxu0 0.0
    %2737 = vmatmul.mubr.f32.gmra.mrb[0].mxu0 %v2571
    %v2738 = vpop.f32.mrb[0].mxu0
    %v2739 = vadd.f32 0.0, %v2738
    %v2740 = vpop.f32.mrb[0].mxu0
    %2741 = vmatprep.mubr.f32.mxu0 0.0
    %2742 = vmatmul.mubr.f32.gmra.mrb[0].mxu0 %v2574
    %v2743 = vpop.f32.mrb[0].mxu0
    %v2744 = vadd.f32 0.0, %v2743
    %v2745 = vpop.f32.mrb[0].mxu0
    %2746 = vmatprep.mubr.f32.mxu0 0.0
    %2747 = vmatmul.mubr.f32.gmra.mrb[0].mxu0 %v2577
    %v2748 = vpop.f32.mrb[0].mxu0
    %v2749 = vadd.f32 0.0, %v2748
    %v2750 = vpop.f32.mrb[0].mxu0
    %2751 = vmatprep.mubr.f32.mxu0 0.0
    %2752 = vmatmul.mubr.f32.gmra.mrb[0].mxu0 %v2580
    %v2753 = vpop.f32.mrb[0].mxu0
    %v2754 = vadd.f32 0.0, %v2753
    %v2755 = vpop.f32.mrb[0].mxu0
    %2756 = vmatprep.mubr.f32.mxu0 0.0
    %2757 = vmatmul.mubr.f32.gmra.mrb[0].mxu0 %v2583
    %v2758 = vpop.f32.mrb[0].mxu0
    %v2759 = vadd.f32 0.0, %v2758
    %v2760 = vpop.f32.mrb[0].mxu0
    %2761 = vmatprep.mubr.f32.mxu0 0.0
    %2762 = vmatmul.mubr.f32.gmra.mrb[0].mxu0 %v2586
    %v2763 = vpop.f32.mrb[0].mxu0
    %v2764 = vadd.f32 0.0, %v2763
    %v2765 = vpop.f32.mrb[0].mxu0
    %2766 = vmatprep.mubr.f32.mxu0 0.0
    %2767 = vmatmul.mubr.f32.gmra.mrb[0].mxu0 %v2589
    %v2768 = vpop.f32.mrb[0].mxu0
    %v2769 = vadd.f32 0.0, %v2768
    %v2770 = vpop.f32.mrb[0].mxu0
    %2771 = vmatprep.mubr.f32.mxu0 0.0
    %2772 = vmatmul.mubr.f32.gmra.mrb[0].mxu0 %v2592
    %v2773 = vpop.f32.mrb[0].mxu0
    %v2774 = vadd.f32 0.0, %v2773
    %v2775 = vpop.f32.mrb[0].mxu0
    %2776 = vmatprep.mubr.f32.mxu0 0.0
    %2777 = vmatmul.mubr.f32.gmra.mrb[0].mxu0 %v2595
    %v2778 = vpop.f32.mrb[0].mxu0
    %v2779 = vadd.f32 0.0, %v2778
    %v2780 = vpop.f32.mrb[0].mxu0
    %2781 = vmatprep.mubr.f32.mxu0 0.0
    %2782 = vmatmul.mubr.f32.gmra.mrb[0].mxu0 %v2598
    %v2783 = vpop.f32.mrb[0].mxu0
    %v2784 = vadd.f32 0.0, %v2783
    %v2785 = vpop.f32.mrb[0].mxu0
    %2786 = vmatprep.mubr.f32.mxu0 0.0
    %2787 = vmatmul.mubr.f32.gmra.mrb[0].mxu0 %v2601
    %v2788 = vpop.f32.mrb[0].mxu0
    %v2789 = vadd.f32 0.0, %v2788
    %v2790 = vpop.f32.mrb[0].mxu0
    %2791 = vmatprep.mubr.f32.mxu0 0.0
    %2792 = vmatmul.mubr.f32.gmra.mrb[0].mxu0 %v2604
    %v2793 = vpop.f32.mrb[0].mxu0
    %v2794 = vadd.f32 0.0, %v2793
    %v2795 = vpop.f32.mrb[0].mxu0
    %2796 = vmatprep.mubr.f32.mxu0 0.0
    %2797 = vmatmul.mubr.f32.gmra.mrb[0].mxu0 %v2607
    %v2798 = vpop.f32.mrb[0].mxu0
    %v2799 = vadd.f32 0.0, %v2798
    %v2800 = vpop.f32.mrb[0].mxu0
    %2801 = vmatprep.mubr.f32.mxu0 0.0
    %2802 = vmatmul.mubr.f32.gmra.mrb[0].mxu0 %v2610
    %v2803 = vpop.f32.mrb[0].mxu0
    %v2804 = vadd.f32 0.0, %v2803
    %v2805 = vpop.f32.mrb[0].mxu0
    %2806 = vmatprep.mubr.f32.mxu0 0.0
    %2807 = vmatmul.mubr.f32.gmra.mrb[0].mxu0 %v2613
    %v2808 = vpop.f32.mrb[0].mxu0
    %v2809 = vadd.f32 0.0, %v2808
    %v2810 = vpop.f32.mrb[0].mxu0
    %2811 = vmatprep.mubr.f32.mxu0 0.0
    %2812 = vmatmul.mubr.f32.gmra.mrb[0].mxu0 %v2616
    %v2813 = vpop.f32.mrb[0].mxu0
    %v2814 = vadd.f32 0.0, %v2813
    %v2815 = vpop.f32.mrb[0].mxu0
    %2816 = vmatprep.mubr.f32.mxu0 0.0
    %2817 = vmatmul.mubr.f32.gmra.mrb[0].mxu0 %v2619
    %v2818 = vpop.f32.mrb[0].mxu0
    %v2819 = vadd.f32 0.0, %v2818
    %v2820 = vpop.f32.mrb[0].mxu0
    %2821 = vmatprep.mubr.f32.mxu0 0.0
    %2822 = vmatmul.mubr.f32.gmra.mrb[0].mxu0 %v2622
    %v2823 = vpop.f32.mrb[0].mxu0
    %v2824 = vadd.f32 0.0, %v2823
    %v2825 = vpop.f32.mrb[0].mxu0
    %2826 = vmatprep.mubr.f32.mxu0 0.0
    %2827 = vmatmul.mubr.f32.gmra.mrb[0].mxu0 %v2625
    %v2828 = vpop.f32.mrb[0].mxu0
    %v2829 = vadd.f32 0.0, %v2828
    %v2830 = vpop.f32.mrb[0].mxu0
    %2831 = vmatprep.mubr.f32.mxu0 0.0
    %2832 = vmatmul.mubr.f32.gmra.mrb[0].mxu0 %v2628
    %v2833 = vpop.f32.mrb[0].mxu0
    %v2834 = vadd.f32 0.0, %v2833
    %v2835 = vpop.f32.mrb[0].mxu0
    %2836 = vmatprep.mubr.f32.mxu0 0.0
    %2837 = vmatmul.mubr.f32.gmra.mrb[0].mxu0 %v2631
    %v2838 = vpop.f32.mrb[0].mxu0
    %v2839 = vadd.f32 0.0, %v2838
    %v2840 = vpop.f32.mrb[0].mxu0
    %2841 = vmatprep.mubr.f32.mxu0 0.0
    %2842 = vmatmul.mubr.f32.gmra.mrb[0].mxu0 %v2634
    %v2843 = vpop.f32.mrb[0].mxu0
    %v2844 = vadd.f32 0.0, %v2843
    %v2845 = vpop.f32.mrb[0].mxu0
    %2846 = vmatprep.mubr.f32.mxu0 0.0
    %2847 = vmatmul.mubr.f32.gmra.mrb[0].mxu0 %v2637
    %v2848 = vpop.f32.mrb[0].mxu0
    %v2849 = vadd.f32 0.0, %v2848
    %v2850 = vpop.f32.mrb[0].mxu0
    %2851 = vmatprep.mubr.f32.mxu0 0.0
    %2852 = vmatmul.mubr.f32.gmra.mrb[0].mxu0 %v2640
    %v2853 = vpop.f32.mrb[0].mxu0
    %v2854 = vadd.f32 0.0, %v2853
    %v2855 = vpop.f32.mrb[0].mxu0
    %2856 = vmatprep.mubr.f32.mxu0 0.0
    %2857 = vmatmul.mubr.f32.gmra.mrb[0].mxu0 %v2643
    %v2858 = vpop.f32.mrb[0].mxu0
    %v2859 = vadd.f32 0.0, %v2858
    %v2860 = vpop.f32.mrb[0].mxu0
    %2861 = vmatprep.mubr.f32.mxu0 0.0
    %2862 = vmatmul.mubr.f32.gmra.mrb[0].mxu0 %v2646
    %v2863 = vpop.f32.mrb[0].mxu0
    %v2864 = vadd.f32 0.0, %v2863
    %v2865 = vpop.f32.mrb[0].mxu0
    %2866 = vmatprep.mubr.f32.mxu0 0.0
    %2867 = vmatmul.mubr.f32.gmra.mrb[0].mxu0 %v2649
    %v2868 = vpop.f32.mrb[0].mxu0
    %v2869 = vadd.f32 0.0, %v2868
    %v2870 = vpop.f32.mrb[0].mxu0
    %2871 = vmatprep.mubr.f32.mxu0 0.0
    %2872 = vmatmul.mubr.f32.gmra.mrb[0].mxu0 %v2652
    %v2873 = vpop.f32.mrb[0].mxu0
    %v2874 = vadd.f32 0.0, %v2873
    %v2875 = vpop.f32.mrb[0].mxu0
    %2876 = vmatprep.mubr.f32.mxu0 0.0
    %2877 = vmatmul.mubr.f32.gmra.mrb[0].mxu0 %v2655
    %v2878 = vpop.f32.mrb[0].mxu0
    %v2879 = vadd.f32 0.0, %v2878
    %v2880 = vpop.f32.mrb[0].mxu0
    %2881 = vdwg.mxu0
    %vm2882 = vcmask 195584
    %v2884 = vsel %vm2882, %v409, 0
    %v2887 = vsel %vm2882, %v410, 0
    %v2890 = vsel %vm2882, %v411, 0
    %v2893 = vsel %vm2882, %v412, 0
    %v2896 = vsel %vm2882, %v413, 0
    %v2899 = vsel %vm2882, %v414, 0
    %v2902 = vsel %vm2882, %v415, 0
    %v2905 = vsel %vm2882, %v416, 0
    %v2908 = vsel %vm2882, %v417, 0
    %v2911 = vsel %vm2882, %v418, 0
    %v2914 = vsel %vm2882, %v419, 0
    %v2917 = vsel %vm2882, %v420, 0
    %v2920 = vsel %vm2882, %v421, 0
    %v2923 = vsel %vm2882, %v422, 0
    %v2926 = vsel %vm2882, %v423, 0
    %v2929 = vsel %vm2882, %v424, 0
    %v2932 = vsel %vm2882, %v425, 0
    %v2935 = vsel %vm2882, %v426, 0
    %v2938 = vsel %vm2882, %v427, 0
    %v2941 = vsel %vm2882, %v428, 0
    %v2944 = vsel %vm2882, %v429, 0
    %v2947 = vsel %vm2882, %v430, 0
    %v2950 = vsel %vm2882, %v431, 0
    %v2953 = vsel %vm2882, %v432, 0
    %v2956 = vsel %vm2882, %v433, 0
    %v2959 = vsel %vm2882, %v434, 0
    %v2962 = vsel %vm2882, %v435, 0
    %v2965 = vsel %vm2882, %v436, 0
    %v2968 = vsel %vm2882, %v437, 0
    %v2971 = vsel %vm2882, %v438, 0
    %v2974 = vsel %vm2882, %v439, 0
    %v2977 = vsel %vm2882, %v440, 0
    %2979 = vmatprep.subr.mxu0 0.0
    %2980 = vmatpush1.msra.mxu0 %v2550
    %2981 = vmatprep.subr.mxu0 0.0
    %2982 = vmatpush1.msra.mxu0 %v2551
    %2983 = vmatprep.subr.mxu0 0.0
    %2984 = vmatpush1.msra.mxu0 %v2552
    %2985 = vmatprep.subr.mxu0 0.0
    %2986 = vmatpush1.msra.mxu0 0.0
    %2987 = vmatprep.subr.mxu0 0.0
    %2988 = vmatpush1.msra.mxu0 0.0
    %2989 = vmatprep.subr.mxu0 0.0
    %2990 = vmatpush1.msra.mxu0 0.0
    %2991 = vmatprep.subr.mxu0 0.0
    %2992 = vmatpush1.msra.mxu0 0.0
    %2993 = vmatprep.subr.mxu0 0.0
    %2994 = vmatpush1.msra.mxu0 0.0
    %2995 = vmatprep.subr.mxu0 0.0
    %2996 = vmatpush1.msra.mxu0 0.0
    %2997 = vmatprep.subr.mxu0 0.0
    %2998 = vmatpush1.msra.mxu0 0.0
    %2999 = vmatprep.subr.mxu0 0.0
    %3000 = vmatpush1.msra.mxu0 0.0
    %3001 = vmatprep.subr.mxu0 0.0
    %3002 = vmatpush1.msra.mxu0 0.0
    %3003 = vmatprep.subr.mxu0 0.0
    %3004 = vmatpush1.msra.mxu0 0.0
    %3005 = vmatprep.subr.mxu0 0.0
    %3006 = vmatpush1.msra.mxu0 0.0
    %3007 = vmatprep.subr.mxu0 0.0
    %3008 = vmatpush1.msra.mxu0 0.0
    %3009 = vmatprep.subr.mxu0 0.0
    %3010 = vmatpush1.msra.mxu0 0.0
    %3011 = vmatprep.subr.mxu0 0.0
    %3012 = vmatpush1.msra.mxu0 0.0
    %3013 = vmatprep.subr.mxu0 0.0
    %3014 = vmatpush1.msra.mxu0 0.0
    %3015 = vmatprep.subr.mxu0 0.0
    %3016 = vmatpush1.msra.mxu0 0.0
    %3017 = vmatprep.subr.mxu0 0.0
    %3018 = vmatpush1.msra.mxu0 0.0
    %3019 = vmatprep.subr.mxu0 0.0
    %3020 = vmatpush1.msra.mxu0 0.0
    %3021 = vmatprep.subr.mxu0 0.0
    %3022 = vmatpush1.msra.mxu0 0.0
    %3023 = vmatprep.subr.mxu0 0.0
    %3024 = vmatpush1.msra.mxu0 0.0
    %3025 = vmatprep.subr.mxu0 0.0
    %3026 = vmatpush1.msra.mxu0 0.0
    %3027 = vmatprep.subr.mxu0 0.0
    %3028 = vmatpush1.msra.mxu0 0.0
    %3029 = vmatprep.subr.mxu0 0.0
    %3030 = vmatpush1.msra.mxu0 0.0
    %3031 = vmatprep.subr.mxu0 0.0
    %3032 = vmatpush1.msra.mxu0 0.0
    %3033 = vmatprep.subr.mxu0 0.0
    %3034 = vmatpush1.msra.mxu0 0.0
    %3035 = vmatprep.subr.mxu0 0.0
    %3036 = vmatpush1.msra.mxu0 0.0
    %3037 = vmatprep.subr.mxu0 0.0
    %3038 = vmatpush1.msra.mxu0 0.0
    %3039 = vmatprep.subr.mxu0 0.0
    %3040 = vmatpush1.msra.mxu0 0.0
    %3041 = vmatprep.subr.mxu0 0.0
    %3042 = vmatpush1.msra.mxu0 0.0
    %3043 = vmatprep.mubr.f32.mxu0 0.0
    %3044 = vmatmul.mubr.f32.gmra.mrb[0].mxu0 %v2884
    %v3045 = vpop.f32.mrb[0].mxu0
    %v3046 = vadd.f32 %v2724, %v3045
    %v3047 = vpop.f32.mrb[0].mxu0
    %3048 = vmatprep.mubr.f32.mxu0 0.0
    %3049 = vmatmul.mubr.f32.gmra.mrb[0].mxu0 %v2887
    %v3050 = vpop.f32.mrb[0].mxu0
    %v3051 = vadd.f32 %v2729, %v3050
    %v3052 = vpop.f32.mrb[0].mxu0
    %3053 = vmatprep.mubr.f32.mxu0 0.0
    %3054 = vmatmul.mubr.f32.gmra.mrb[0].mxu0 %v2890
    %v3055 = vpop.f32.mrb[0].mxu0
    %v3056 = vadd.f32 %v2734, %v3055
    %v3057 = vpop.f32.mrb[0].mxu0
    %3058 = vmatprep.mubr.f32.mxu0 0.0
    %3059 = vmatmul.mubr.f32.gmra.mrb[0].mxu0 %v2893
    %v3060 = vpop.f32.mrb[0].mxu0
    %v3061 = vadd.f32 %v2739, %v3060
    %v3062 = vpop.f32.mrb[0].mxu0
    %3063 = vmatprep.mubr.f32.mxu0 0.0
    %3064 = vmatmul.mubr.f32.gmra.mrb[0].mxu0 %v2896
    %v3065 = vpop.f32.mrb[0].mxu0
    %v3066 = vadd.f32 %v2744, %v3065
    %v3067 = vpop.f32.mrb[0].mxu0
    %3068 = vmatprep.mubr.f32.mxu0 0.0
    %3069 = vmatmul.mubr.f32.gmra.mrb[0].mxu0 %v2899
    %v3070 = vpop.f32.mrb[0].mxu0
    %v3071 = vadd.f32 %v2749, %v3070
    %v3072 = vpop.f32.mrb[0].mxu0
    %3073 = vmatprep.mubr.f32.mxu0 0.0
    %3074 = vmatmul.mubr.f32.gmra.mrb[0].mxu0 %v2902
    %v3075 = vpop.f32.mrb[0].mxu0
    %v3076 = vadd.f32 %v2754, %v3075
    %v3077 = vpop.f32.mrb[0].mxu0
    %3078 = vmatprep.mubr.f32.mxu0 0.0
    %3079 = vmatmul.mubr.f32.gmra.mrb[0].mxu0 %v2905
    %v3080 = vpop.f32.mrb[0].mxu0
    %v3081 = vadd.f32 %v2759, %v3080
    %v3082 = vpop.f32.mrb[0].mxu0
    %3083 = vmatprep.mubr.f32.mxu0 0.0
    %3084 = vmatmul.mubr.f32.gmra.mrb[0].mxu0 %v2908
    %v3085 = vpop.f32.mrb[0].mxu0
    %v3086 = vadd.f32 %v2764, %v3085
    %v3087 = vpop.f32.mrb[0].mxu0
    %3088 = vmatprep.mubr.f32.mxu0 0.0
    %3089 = vmatmul.mubr.f32.gmra.mrb[0].mxu0 %v2911
    %v3090 = vpop.f32.mrb[0].mxu0
    %v3091 = vadd.f32 %v2769, %v3090
    %v3092 = vpop.f32.mrb[0].mxu0
    %3093 = vmatprep.mubr.f32.mxu0 0.0
    %3094 = vmatmul.mubr.f32.gmra.mrb[0].mxu0 %v2914
    %v3095 = vpop.f32.mrb[0].mxu0
    %v3096 = vadd.f32 %v2774, %v3095
    %v3097 = vpop.f32.mrb[0].mxu0
    %3098 = vmatprep.mubr.f32.mxu0 0.0
    %3099 = vmatmul.mubr.f32.gmra.mrb[0].mxu0 %v2917
    %v3100 = vpop.f32.mrb[0].mxu0
    %v3101 = vadd.f32 %v2779, %v3100
    %v3102 = vpop.f32.mrb[0].mxu0
    %3103 = vmatprep.mubr.f32.mxu0 0.0
    %3104 = vmatmul.mubr.f32.gmra.mrb[0].mxu0 %v2920
    %v3105 = vpop.f32.mrb[0].mxu0
    %v3106 = vadd.f32 %v2784, %v3105
    %v3107 = vpop.f32.mrb[0].mxu0
    %3108 = vmatprep.mubr.f32.mxu0 0.0
    %3109 = vmatmul.mubr.f32.gmra.mrb[0].mxu0 %v2923
    %v3110 = vpop.f32.mrb[0].mxu0
    %v3111 = vadd.f32 %v2789, %v3110
    %v3112 = vpop.f32.mrb[0].mxu0
    %3113 = vmatprep.mubr.f32.mxu0 0.0
    %3114 = vmatmul.mubr.f32.gmra.mrb[0].mxu0 %v2926
    %v3115 = vpop.f32.mrb[0].mxu0
    %v3116 = vadd.f32 %v2794, %v3115
    %v3117 = vpop.f32.mrb[0].mxu0
    %3118 = vmatprep.mubr.f32.mxu0 0.0
    %3119 = vmatmul.mubr.f32.gmra.mrb[0].mxu0 %v2929
    %v3120 = vpop.f32.mrb[0].mxu0
    %v3121 = vadd.f32 %v2799, %v3120
    %v3122 = vpop.f32.mrb[0].mxu0
    %3123 = vmatprep.mubr.f32.mxu0 0.0
    %3124 = vmatmul.mubr.f32.gmra.mrb[0].mxu0 %v2932
    %v3125 = vpop.f32.mrb[0].mxu0
    %v3126 = vadd.f32 %v2804, %v3125
    %v3127 = vpop.f32.mrb[0].mxu0
    %3128 = vmatprep.mubr.f32.mxu0 0.0
    %3129 = vmatmul.mubr.f32.gmra.mrb[0].mxu0 %v2935
    %v3130 = vpop.f32.mrb[0].mxu0
    %v3131 = vadd.f32 %v2809, %v3130
    %v3132 = vpop.f32.mrb[0].mxu0
    %3133 = vmatprep.mubr.f32.mxu0 0.0
    %3134 = vmatmul.mubr.f32.gmra.mrb[0].mxu0 %v2938
    %v3135 = vpop.f32.mrb[0].mxu0
    %v3136 = vadd.f32 %v2814, %v3135
    %v3137 = vpop.f32.mrb[0].mxu0
    %3138 = vmatprep.mubr.f32.mxu0 0.0
    %3139 = vmatmul.mubr.f32.gmra.mrb[0].mxu0 %v2941
    %v3140 = vpop.f32.mrb[0].mxu0
    %v3141 = vadd.f32 %v2819, %v3140
    %v3142 = vpop.f32.mrb[0].mxu0
    %3143 = vmatprep.mubr.f32.mxu0 0.0
    %3144 = vmatmul.mubr.f32.gmra.mrb[0].mxu0 %v2944
    %v3145 = vpop.f32.mrb[0].mxu0
    %v3146 = vadd.f32 %v2824, %v3145
    %v3147 = vpop.f32.mrb[0].mxu0
    %3148 = vmatprep.mubr.f32.mxu0 0.0
    %3149 = vmatmul.mubr.f32.gmra.mrb[0].mxu0 %v2947
    %v3150 = vpop.f32.mrb[0].mxu0
    %v3151 = vadd.f32 %v2829, %v3150
    %v3152 = vpop.f32.mrb[0].mxu0
    %3153 = vmatprep.mubr.f32.mxu0 0.0
    %3154 = vmatmul.mubr.f32.gmra.mrb[0].mxu0 %v2950
    %v3155 = vpop.f32.mrb[0].mxu0
    %v3156 = vadd.f32 %v2834, %v3155
    %v3157 = vpop.f32.mrb[0].mxu0
    %3158 = vmatprep.mubr.f32.mxu0 0.0
    %3159 = vmatmul.mubr.f32.gmra.mrb[0].mxu0 %v2953
    %v3160 = vpop.f32.mrb[0].mxu0
    %v3161 = vadd.f32 %v2839, %v3160
    %v3162 = vpop.f32.mrb[0].mxu0
    %3163 = vmatprep.mubr.f32.mxu0 0.0
    %3164 = vmatmul.mubr.f32.gmra.mrb[0].mxu0 %v2956
    %v3165 = vpop.f32.mrb[0].mxu0
    %v3166 = vadd.f32 %v2844, %v3165
    %v3167 = vpop.f32.mrb[0].mxu0
    %3168 = vmatprep.mubr.f32.mxu0 0.0
    %3169 = vmatmul.mubr.f32.gmra.mrb[0].mxu0 %v2959
    %v3170 = vpop.f32.mrb[0].mxu0
    %v3171 = vadd.f32 %v2849, %v3170
    %v3172 = vpop.f32.mrb[0].mxu0
    %3173 = vmatprep.mubr.f32.mxu0 0.0
    %3174 = vmatmul.mubr.f32.gmra.mrb[0].mxu0 %v2962
    %v3175 = vpop.f32.mrb[0].mxu0
    %v3176 = vadd.f32 %v2854, %v3175
    %v3177 = vpop.f32.mrb[0].mxu0
    %3178 = vmatprep.mubr.f32.mxu0 0.0
    %3179 = vmatmul.mubr.f32.gmra.mrb[0].mxu0 %v2965
    %v3180 = vpop.f32.mrb[0].mxu0
    %v3181 = vadd.f32 %v2859, %v3180
    %v3182 = vpop.f32.mrb[0].mxu0
    %3183 = vmatprep.mubr.f32.mxu0 0.0
    %3184 = vmatmul.mubr.f32.gmra.mrb[0].mxu0 %v2968
    %v3185 = vpop.f32.mrb[0].mxu0
    %v3186 = vadd.f32 %v2864, %v3185
    %v3187 = vpop.f32.mrb[0].mxu0
    %3188 = vmatprep.mubr.f32.mxu0 0.0
    %3189 = vmatmul.mubr.f32.gmra.mrb[0].mxu0 %v2971
    %v3190 = vpop.f32.mrb[0].mxu0
    %v3191 = vadd.f32 %v2869, %v3190
    %v3192 = vpop.f32.mrb[0].mxu0
    %3193 = vmatprep.mubr.f32.mxu0 0.0
    %3194 = vmatmul.mubr.f32.gmra.mrb[0].mxu0 %v2974
    %v3195 = vpop.f32.mrb[0].mxu0
    %v3196 = vadd.f32 %v2874, %v3195
    %v3197 = vpop.f32.mrb[0].mxu0
    %3198 = vmatprep.mubr.f32.mxu0 0.0
    %3199 = vmatmul.mubr.f32.gmra.mrb[0].mxu0 %v2977
    %v3200 = vpop.f32.mrb[0].mxu0
    %v3201 = vadd.f32 %v2879, %v3200
    %v3202 = vpop.f32.mrb[0].mxu0
    %3203 = vdwg.mxu0
    %v3204 = vld [vmem:[%s10] sm:$0x1]
    %v3206 = vlaneseq
    %v3207 = vshrl.u32 %v3206, 7
    %v3208 = vsub.s32 0, %v3207
    %v3209 = vrot.slane %v3204, %v3208
    %v3211 = vadd.f32 %v3046, %v3209
    %v3212 = vadd.f32 %v3051, %v3209
    %v3213 = vadd.f32 %v3056, %v3209
    %v3214 = vadd.f32 %v3061, %v3209
    %v3215 = vadd.f32 %v3066, %v3209
    %v3216 = vadd.f32 %v3071, %v3209
    %v3217 = vadd.f32 %v3076, %v3209
    %v3218 = vadd.f32 %v3081, %v3209
    %v3219 = vadd.f32 %v3086, %v3209
    %v3220 = vadd.f32 %v3091, %v3209
    %v3221 = vadd.f32 %v3096, %v3209
    %v3222 = vadd.f32 %v3101, %v3209
    %v3223 = vadd.f32 %v3106, %v3209
    %v3224 = vadd.f32 %v3111, %v3209
    %v3225 = vadd.f32 %v3116, %v3209
    %v3226 = vadd.f32 %v3121, %v3209
    %v3227 = vadd.f32 %v3126, %v3209
    %v3228 = vadd.f32 %v3131, %v3209
    %v3229 = vadd.f32 %v3136, %v3209
    %v3230 = vadd.f32 %v3141, %v3209
    %v3231 = vadd.f32 %v3146, %v3209
    %v3232 = vadd.f32 %v3151, %v3209
    %v3233 = vadd.f32 %v3156, %v3209
    %v3234 = vadd.f32 %v3161, %v3209
    %v3235 = vadd.f32 %v3166, %v3209
    %v3236 = vadd.f32 %v3171, %v3209
    %v3237 = vadd.f32 %v3176, %v3209
    %v3238 = vadd.f32 %v3181, %v3209
    %v3239 = vadd.f32 %v3186, %v3209
    %v3240 = vadd.f32 %v3191, %v3209
    %v3241 = vadd.f32 %v3196, %v3209
    %v3242 = vadd.f32 %v3201, %v3209
    %v3243 = vmax.f32 %v3211, 0.0
    %v3244 = vmax.f32 %v3212, 0.0
    %v3245 = vmax.f32 %v3213, 0.0
    %v3246 = vmax.f32 %v3214, 0.0
    %v3247 = vmax.f32 %v3215, 0.0
    %v3248 = vmax.f32 %v3216, 0.0
    %v3249 = vmax.f32 %v3217, 0.0
    %v3250 = vmax.f32 %v3218, 0.0
    %v3251 = vmax.f32 %v3219, 0.0
    %v3252 = vmax.f32 %v3220, 0.0
    %v3253 = vmax.f32 %v3221, 0.0
    %v3254 = vmax.f32 %v3222, 0.0
    %v3255 = vmax.f32 %v3223, 0.0
    %v3256 = vmax.f32 %v3224, 0.0
    %v3257 = vmax.f32 %v3225, 0.0
    %v3258 = vmax.f32 %v3226, 0.0
    %v3259 = vmax.f32 %v3227, 0.0
    %v3260 = vmax.f32 %v3228, 0.0
    %v3261 = vmax.f32 %v3229, 0.0
    %v3262 = vmax.f32 %v3230, 0.0
    %v3263 = vmax.f32 %v3231, 0.0
    %v3264 = vmax.f32 %v3232, 0.0
    %v3265 = vmax.f32 %v3233, 0.0
    %v3266 = vmax.f32 %v3234, 0.0
    %v3267 = vmax.f32 %v3235, 0.0
    %v3268 = vmax.f32 %v3236, 0.0
    %v3269 = vmax.f32 %v3237, 0.0
    %v3270 = vmax.f32 %v3238, 0.0
    %v3271 = vmax.f32 %v3239, 0.0
    %v3272 = vmax.f32 %v3240, 0.0
    %v3273 = vmax.f32 %v3241, 0.0
    %v3274 = vmax.f32 %v3242, 0.0
    %v3275 = vld [vmem:[%s11] sm:$0x1]
    %v3276 = vld [vmem:[#allocation2] sm:$0x1]
    %3278 = vset.pattern.permute.xlu0 0
    %3279 = vperm.xlu0 %3278, %v3276
    %v3280 = vpop.permute.xlu0 %3279
    %v3282 = vlaneseq
    %v3283 = vshrl.u32 %v3282, 7
    %v3284 = vsub.s32 0, %v3283
    %v3285 = vrot.slane %v3280, %v3284
    %v3287 = vsel %vm2196, %v3275, 0
    %v3290 = vsel %vm2196, %v3243, 0
    %v3293 = vsel %vm2196, %v3244, 0
    %v3296 = vsel %vm2196, %v3245, 0
    %v3299 = vsel %vm2196, %v3246, 0
    %v3302 = vsel %vm2196, %v3247, 0
    %v3305 = vsel %vm2196, %v3248, 0
    %v3308 = vsel %vm2196, %v3249, 0
    %v3311 = vsel %vm2196, %v3250, 0
    %v3314 = vsel %vm2196, %v3251, 0
    %v3317 = vsel %vm2196, %v3252, 0
    %v3320 = vsel %vm2196, %v3253, 0
    %v3323 = vsel %vm2196, %v3254, 0
    %v3326 = vsel %vm2196, %v3255, 0
    %v3329 = vsel %vm2196, %v3256, 0
    %v3332 = vsel %vm2196, %v3257, 0
    %v3335 = vsel %vm2196, %v3258, 0
    %v3338 = vsel %vm2196, %v3259, 0
    %v3341 = vsel %vm2196, %v3260, 0
    %v3344 = vsel %vm2196, %v3261, 0
    %v3347 = vsel %vm2196, %v3262, 0
    %v3350 = vsel %vm2196, %v3263, 0
    %v3353 = vsel %vm2196, %v3264, 0
    %v3356 = vsel %vm2196, %v3265, 0
    %v3359 = vsel %vm2196, %v3266, 0
    %v3362 = vsel %vm2196, %v3267, 0
    %v3365 = vsel %vm2196, %v3268, 0
    %v3368 = vsel %vm2196, %v3269, 0
    %v3371 = vsel %vm2196, %v3270, 0
    %v3374 = vsel %vm2196, %v3271, 0
    %v3377 = vsel %vm2196, %v3272, 0
    %v3380 = vsel %vm2196, %v3273, 0
    %v3383 = vsel %vm2196, %v3274, 0
    %3385 = vmatprep.subr.mxu0 0.0
    %3386 = vmatpush1.xpose.msra.mxu0 %v3290
    %3387 = vmatprep.subr.mxu0 0.0
    %3388 = vmatpush1.xpose.msra.mxu0 %v3293
    %3389 = vmatprep.subr.mxu0 0.0
    %3390 = vmatpush1.xpose.msra.mxu0 %v3296
    %3391 = vmatprep.subr.mxu0 0.0
    %3392 = vmatpush1.xpose.msra.mxu0 %v3299
    %3393 = vmatprep.subr.mxu0 0.0
    %3394 = vmatpush1.xpose.msra.mxu0 %v3302
    %3395 = vmatprep.subr.mxu0 0.0
    %3396 = vmatpush1.xpose.msra.mxu0 %v3305
    %3397 = vmatprep.subr.mxu0 0.0
    %3398 = vmatpush1.xpose.msra.mxu0 %v3308
    %3399 = vmatprep.subr.mxu0 0.0
    %3400 = vmatpush1.xpose.msra.mxu0 %v3311
    %3401 = vmatprep.subr.mxu0 0.0
    %3402 = vmatpush1.xpose.msra.mxu0 %v3314
    %3403 = vmatprep.subr.mxu0 0.0
    %3404 = vmatpush1.xpose.msra.mxu0 %v3317
    %3405 = vmatprep.subr.mxu0 0.0
    %3406 = vmatpush1.xpose.msra.mxu0 %v3320
    %3407 = vmatprep.subr.mxu0 0.0
    %3408 = vmatpush1.xpose.msra.mxu0 %v3323
    %3409 = vmatprep.subr.mxu0 0.0
    %3410 = vmatpush1.xpose.msra.mxu0 %v3326
    %3411 = vmatprep.subr.mxu0 0.0
    %3412 = vmatpush1.xpose.msra.mxu0 %v3329
    %3413 = vmatprep.subr.mxu0 0.0
    %3414 = vmatpush1.xpose.msra.mxu0 %v3332
    %3415 = vmatprep.subr.mxu0 0.0
    %3416 = vmatpush1.xpose.msra.mxu0 %v3335
    %3417 = vmatprep.subr.mxu0 0.0
    %3418 = vmatpush1.xpose.msra.mxu0 %v3338
    %3419 = vmatprep.subr.mxu0 0.0
    %3420 = vmatpush1.xpose.msra.mxu0 %v3341
    %3421 = vmatprep.subr.mxu0 0.0
    %3422 = vmatpush1.xpose.msra.mxu0 %v3344
    %3423 = vmatprep.subr.mxu0 0.0
    %3424 = vmatpush1.xpose.msra.mxu0 %v3347
    %3425 = vmatprep.subr.mxu0 0.0
    %3426 = vmatpush1.xpose.msra.mxu0 %v3350
    %3427 = vmatprep.subr.mxu0 0.0
    %3428 = vmatpush1.xpose.msra.mxu0 %v3353
    %3429 = vmatprep.subr.mxu0 0.0
    %3430 = vmatpush1.xpose.msra.mxu0 %v3356
    %3431 = vmatprep.subr.mxu0 0.0
    %3432 = vmatpush1.xpose.msra.mxu0 %v3359
    %3433 = vmatprep.subr.mxu0 0.0
    %3434 = vmatpush1.xpose.msra.mxu0 %v3362
    %3435 = vmatprep.subr.mxu0 0.0
    %3436 = vmatpush1.xpose.msra.mxu0 %v3365
    %3437 = vmatprep.subr.mxu0 0.0
    %3438 = vmatpush1.xpose.msra.mxu0 %v3368
    %3439 = vmatprep.subr.mxu0 0.0
    %3440 = vmatpush1.xpose.msra.mxu0 %v3371
    %3441 = vmatprep.subr.mxu0 0.0
    %3442 = vmatpush1.xpose.msra.mxu0 %v3374
    %3443 = vmatprep.subr.mxu0 0.0
    %3444 = vmatpush1.xpose.msra.mxu0 %v3377
    %3445 = vmatprep.subr.mxu0 0.0
    %3446 = vmatpush1.xpose.msra.mxu0 %v3380
    %3447 = vmatprep.subr.mxu0 0.0
    %3448 = vmatpush1.xpose.msra.mxu0 %v3383
    %3449 = vmatprep.mubr.f32.mxu0 0.0
    %3450 = vmatmul.mubr.f32.gmra.mrb[0].mxu0 %v3287
    %v3451 = vpop.f32.mrb[0].mxu0
    %v3452 = vadd.f32 %v3285, %v3451
    %v3453 = vpop.f32.mrb[0].mxu0
    %v3454 = vadd.f32 %v3285, %v3453
    %3455 = vdwg.mxu0
    %v3456 = vxor.u32 %v3452, 2147483648
    %v3457 = vxor.u32 %v3454, 2147483648
    %v3458 = vmul.f32 %v3456, 1.442695
    %v3459 = vpow.pop %v3458
    %v3460 = vmul.f32 %v3457, 1.442695
    %v3461 = vpow.pop %v3460
    %v3462 = vadd.f32 %v3459, 1.0
    %v3463 = vadd.f32 %v3461, 1.0
    %v3464 = vrcp.pop %v3462
    %v3465 = vmul.f32 1.0, %v3464
    %v3466 = vrcp.pop %v3463
    %v3467 = vmul.f32 1.0, %v3466
    %v3470 = vcombine.low %v3465, %v3467
    %v3472 = vunpack.c.l.s4 1966171168
    %v3473 = vunpack.c.0.s8 %v3472
    %v3474 = vlaneseq
    %v3475 = vshrl.u32 %v3474, 7
    %v3476 = vsub.s32 %v3473, %v3475
    %v3477 = vrot.slane %v3470, %v3476
    %v3479 = vunpack.c.l.s4 1966171168
    %v3480 = vunpack.c.0.s8 %v3479
    %v3481 = vlaneseq
    %v3482 = vshrl.u32 %v3481, 7
    %v3483 = vsub.s32 %v3480, %v3482
    %v3484 = vrot.slane %v3477, %v3483
    %v3486 = vlaneseq
    %vm3487 = vcmp.ge.s32.totalorder %v3486, 0
    %vm3488 = vcmp.lt.s32.totalorder %v3486, 256
    %vm3489 = vmand %vm3487, %vm3488
    %3490 = vst.msk [vmem:[#allocation3] sm:$0x3] %vm3489, %v3484
    // Predicated region
    $region54: #{tpu_custom_call.1} parent=1 // pred_check
      _
    $region55: #{tpu_custom_call.1} parent=1 // pred_check_branch
      %3492 = sbr.rel (0) target = $region57
    $region56: #{tpu_custom_call.1} parent=1 // pred_region
      %s3494 = ssub.s32 32, 32
      %3495 = vsyncadd [#allocation4], %s3494
      %s3497 = sshll.u32 [#allocation3], 4
      %s3498 = int_to_ptr.vmem [resolvable:$true] %s3497
      %3500 = dma.vmem_to_hbm [thread:$0]  %s3498, 32, %s13, [#allocation4]
    $region57: #{tpu_custom_call.1} parent=1 // pred_fallthru
      _
    // Predicated region
    $region58: #{tpu_custom_call.1} parent=1 // pred_check
      _
    $region59: #{tpu_custom_call.1} parent=1 // pred_check_branch
      %3502 = sbr.rel (0) target = $region61
    $region60: #{tpu_custom_call.1} parent=1 // pred_region
      %3503 = dma.done [#allocation4], 32
    $region61: #{tpu_custom_call.1} parent=1 // pred_fallthru
      _
    %3504 = vsyncpa [#allocation4], 1

</llo_original>
